<compile_context>
chip_gen: v6e
topology: v6e:2x2x1
jax: 0.10.0
libtpu: 0.0.40
codegen_flags: <defaults>
</compile_context>

<pallas_src>
import jax
import jax.numpy as jnp
from jax.experimental import pallas as pl
from jax.experimental.pallas import tpu as pltpu

IMG_SIZE = 28  # matches img_size in the reference module

# Parity (ph, pw) order of the conv1 output lane slabs.  Chosen so the conv2
# shift groups read lane-aligned prefixes: (0,0)->[0:64], (0,1)->[0:128],
# (1,0)/(1,1)->full [0:256].
_PARITY_ORDER = ((1, 1), (1, 0), (0, 1), (0, 0))


# ------------------------------ Pallas kernel -------------------------------

def _make_disc_kernel(bt):
    """Fused conv1 + conv2 + flatten/linear/sigmoid kernel for `bt` images."""
    rows = bt * 64                      # one GEMM row per (image, 8x8 block)

    def kernel(p1_ref, w1_ref, w2_ref, w3_ref, b3_ref, o_ref):
        # ---- Conv2d(1, 64, k=3, s=2, p=1, bias=False) + LeakyReLU(0.2) ------
        # p1: (rows, 36) bf16, row = (n, i, j) on the 8x8 stride-parity grid
        #     (i==0 / j==0 parity rows are zero patches = conv2's zero padding),
        #     col = parity*9 + tap with parity order _PARITY_ORDER.
        # w1: (36, 256) bf16 block-diagonal over the 4 parities, 64 real output
        #     channels each (no lane padding).
        y1 = jnp.dot(p1_ref[...], w1_ref[...],
                     preferred_element_type=jnp.float32)           # (rows, 256)
        y1 = jnp.maximum(y1, 0.2 * y1)                             # LeakyReLU
        # TODO(synk): Dropout2d(0.3) is identity at inference; not implemented.
        y1b = y1.astype(jnp.bfloat16)

        # ---- Conv2d(64, 128, k=3, s=2, p=1, bias=False): 4 grouped GEMMs ----
        # Taps grouped by output shift (di,dj); each group contracts only the
        # parity slabs it needs (aligned prefixes of y1b).  Group (1,0) keeps
        # 128 zero K rows so its lhs is the aligned full 256 lanes.
        acc00 = jnp.dot(y1b[:, 0:64],  w2_ref[0:64, :],
                        preferred_element_type=jnp.float32)        # K=64
        acc01 = jnp.dot(y1b[:, 0:128], w2_ref[64:192, :],
                        preferred_element_type=jnp.float32)        # K=128
        a = acc00 + pltpu.roll(acc01, shift=rows - 1, axis=0)      # dj=+1 row

        acc10 = jnp.dot(y1b, w2_ref[192:448, :],
                        preferred_element_type=jnp.float32)        # K=256(128 real)
        acc11 = jnp.dot(y1b, w2_ref[448:704, :],
                        preferred_element_type=jnp.float32)        # K=256
        b = acc10 + pltpu.roll(acc11, shift=rows - 1, axis=0)      # dj=+1 row

        # y2[r] = acc00[r] + acc01[r+1] + acc10[r+8] + acc11[r+9].  Roll
        # wrap-around only lands on i==7 / j==7 rows, which the folded linear
        # weight zeroes out.
        y2 = a + pltpu.roll(b, shift=rows - 8, axis=0)             # di=+1 block
        y2 = jnp.maximum(y2, 0.2 * y2)                             # LeakyReLU
        # TODO(synk): second Dropout2d(0.3) likewise identity at inference.

        # ---- Flatten + Linear(6272, 1) + Sigmoid (fused epilogue) -----------
        # w3 folded to (i*8+j, c) order with i==7 / j==7 rows zeroed, so no
        # NCHW transpose, masking or 7-wide slicing is needed.
        prod = y2.reshape(bt, 64, 128) * w3_ref[...][None, :, :]
        red = jnp.sum(prod, axis=1)                                # (bt, 128)
        logit = jnp.sum(red, axis=1, keepdims=True) + b3_ref[0, 0]  # (bt, 1)
        sig = 1.0 / (1.0 + jnp.exp(-logit))
        o_ref[...] = jnp.broadcast_to(sig, (bt, 128))              # lane-dense

    return kernel


# ------------------------------ host-side prep ------------------------------

def _conv1_parity_patches(img_nchw):
    """im2col for conv1 in stride-parity (space-to-depth) row order.

    Output (N*64, 36) bf16: row r = n*64 + i*8 + j (i, j in 0..7 over the
    padded 16x16 parity grid; i==0 / j==0 parity rows are zero patches that
    play the role of conv2's zero padding), col = parity*9 + (ky*3 + kx) with
    the parity order given by _PARITY_ORDER.
    """
    n = img_nchw.shape[0]
    x = img_nchw[:, 0, :, :]                                   # (N, 28, 28)
    xp = jnp.pad(x, ((0, 0), (1, 1), (1, 1)))                  # conv1 padding
    taps = [xp[:, ky:ky + 28:2, kx:kx + 28:2]
            for ky in range(3) for kx in range(3)]             # 9 x (N,14,14)
    pat = jnp.stack(taps, axis=-1)                             # (N, 14, 14, 9)
    pat = jnp.pad(pat, ((0, 0), (2, 0), (2, 0), (0, 0)))       # (N, 16, 16, 9)
    sd = pat.reshape(n, 8, 2, 8, 2, 9)                         # (n,i,ph,j,pw,k)
    slabs = [sd[:, :, ph, :, pw, :] for (ph, pw) in _PARITY_ORDER]
    p1 = jnp.stack(slabs, axis=3)                              # (n, i, j, 4, 9)
    return p1.reshape(n * 64, 36).astype(jnp.bfloat16)


def _prep_weights(params):
    """Pre-permute / pack PyTorch-layout weights for the fused kernel."""
    w1, w2, w3, b3 = params

    # conv1 (64,1,3,3) -> (9,64); block-diagonal over 4 parities -> (36,256).
    w1m = jnp.transpose(w1.reshape(64, 9))                     # (9, 64)
    w1bd = jnp.kron(jnp.eye(4, dtype=w1m.dtype), w1m).astype(jnp.bfloat16)

    # conv2 (128,64,3,3): per-tap (cin,cout) blocks, grouped by output shift
    # (di,dj), stacked along K to match the y1 parity-lane order.
    def tap(ky, kx):                                           # (64, 128)
        return jnp.transpose(w2[:, :, ky, kx], (1, 0))

    zeros = jnp.zeros((64, 128), w2.dtype)
    g00 = tap(0, 0)                                                       # K=64
    g01 = jnp.concatenate([tap(0, 2), tap(0, 1)], axis=0)                 # K=128
    g10 = jnp.concatenate([tap(2, 0), zeros, tap(1, 0), zeros], axis=0)   # K=256
    g11 = jnp.concatenate([tap(2, 2), tap(2, 1), tap(1, 2), tap(1, 1)], axis=0)
    w2p = jnp.concatenate([g00, g01, g10, g11], axis=0).astype(jnp.bfloat16)

    # linear (1, 6272) over the NCHW flatten (c,7,7): fold to (i*8+j, c) with
    # the i==7 / j==7 rows zeroed (7x7 validity mask baked into the weight).
    w3r = jnp.transpose(w3.reshape(128, 7, 7), (1, 2, 0))      # (7, 7, 128)
    w3f = jnp.pad(w3r, ((0, 1), (0, 1), (0, 0))).reshape(64, 128)
    w3f = w3f.astype(jnp.float32)

    b3s = jnp.reshape(b3, (1, 1)).astype(jnp.float32)
    return w1bd, w2p, w3f, b3s


def init_params(key):
    k1, k2, k3, k4 = jax.random.split(key, 4)
    # torch layouts: conv (Cout, Cin, KH, KW), linear (out_features, in_features)
    w1 = 0.05 * jax.random.normal(k1, (64, 1, 3, 3), jnp.float32)
    w2 = 0.05 * jax.random.normal(k2, (128, 64, 3, 3), jnp.float32)
    feat = 128 * (IMG_SIZE // 4) * (IMG_SIZE // 4)             # 6272
    w3 = 0.05 * jax.random.normal(k3, (1, feat), jnp.float32)
    b3 = 0.05 * jax.random.normal(k4, (1,), jnp.float32)
    return w1, w2, w3, b3


# --------------------------------- forward ----------------------------------

def _pick_bt(n):
    """Largest batch tile <= 64 dividing n with >= 2 grid steps.

    bt=64 keeps per-step scratch (~2 MB/img f32) under ~25 MB, safe on v7x's
    64 MiB VMEM; >=2 steps lets megacore shard the grid across TensorCores.
    """
    for cand in (64, 32, 16, 8):
        if n % cand == 0 and n // cand >= 2:
            return cand
    return n                              # tiny batches: single grid step


def discriminator_forward(img_nchw, params):
    n = img_nchw.shape[0]
    bt = _pick_bt(n)

    p1 = _conv1_parity_patches(img_nchw)
    w1bd, w2p, w3f, b3s = _prep_weights(params)

    macs_per_row = 36 * 256 + 704 * 128 + 64 * 128   # conv1 + conv2 + epilogue
    flops = 2 * n * 64 * macs_per_row
    bytes_accessed = (p1.size * 2 + w1bd.size * 2 + w2p.size * 2 +
                      w3f.size * 4 + 4 + n * 128 * 4)

    out = pl.pallas_call(
        _make_disc_kernel(bt),
        out_shape=jax.ShapeDtypeStruct((n, 128), jnp.float32),
        grid=(n // bt,),
        in_specs=[
            pl.BlockSpec((bt * 64, 36), lambda i: (i, 0)),       # batch-tiled patches
            pl.BlockSpec((36, 256), lambda i: (0, 0)),           # conv1 W (resident)
            pl.BlockSpec((704, 128), lambda i: (0, 0)),          # conv2 W (resident)
            pl.BlockSpec((64, 128), lambda i: (0, 0)),           # folded linear W
            pl.BlockSpec(memory_space=pltpu.MemorySpace.SMEM),   # scalar bias
        ],
        out_specs=pl.BlockSpec((bt, 128), lambda i: (i, 0)),
        compiler_params=pltpu.CompilerParams(
            dimension_semantics=("parallel",),
            vmem_limit_bytes=40 * 1024 * 1024,
        ),
        cost_estimate=pl.CostEstimate(
            flops=flops, transcendentals=n, bytes_accessed=bytes_accessed),
    )(p1, w1bd, w2p, w3f, b3s)
    return out[:, :1]                                            # (n, 1)


# ----------------------------- plain-JAX reference --------------------------

def _reference_forward(img, params):
    """f32 XLA reference matching the PyTorch module (inference mode)."""
    w1, w2, w3, b3 = params
    dn = ("NCHW", "OIHW", "NCHW")
    y1 = jax.lax.conv_general_dilated(img, w1, (2, 2), ((1, 1), (1, 1)),
                                      dimension_numbers=dn)
    y1 = jnp.where(y1 > 0, y1, 0.2 * y1)
    y2 = jax.lax.conv_general_dilated(y1, w2, (2, 2), ((1, 1), (1, 1)),
                                      dimension_numbers=dn)
    y2 = jnp.where(y2 > 0, y2, 0.2 * y2)
    logit = y2.reshape(y2.shape[0], -1) @ w3.T + b3
    return 1.0 / (1.0 + jnp.exp(-logit))


# ----------------------------------- main ------------------------------------

if __name__ == "__main__":
    key = jax.random.PRNGKey(0)
    kp, kx = jax.random.split(key)
    params = init_params(kp)
    batch = 16                                   # bt=8 -> 2 grid steps
    img = jax.random.normal(kx, (batch, 1, IMG_SIZE, IMG_SIZE), jnp.float32)

    out = jax.jit(discriminator_forward)(img, params)
    jax.block_until_ready(out)

    ref = _reference_forward(img, params)
    assert out.shape == (batch, 1), out.shape
    assert bool(jnp.all((out > 0.0) & (out < 1.0)))
    assert bool(jnp.allclose(out, ref, atol=5e-2)), (out, ref)
    print("KERNEL_OK")
</pallas_src>

<mosaic_0001>
module attributes {stable_mosaic.version = 11 : i64} {
  func.func @kernel(%arg0: i32, %arg1: memref<512x36xbf16, #tpu.memory_space<vmem>>, %arg2: memref<36x256xbf16, #tpu.memory_space<vmem>>, %arg3: memref<704x128xbf16, #tpu.memory_space<vmem>>, %arg4: memref<64x128xf32, #tpu.memory_space<vmem>>, %arg5: memref<1x1xf32, #tpu.memory_space<smem>>, %arg6: memref<8x128xf32, #tpu.memory_space<vmem>>) attributes {dimension_semantics = [#tpu.dimension_semantics<parallel>], iteration_bounds = array<i64: 2>, scalar_prefetch = 0 : i64, scratch_operands = 0 : i64, tpu.core_type = #tpu.core_type<tc>, window_params = [{transform_indices = @transform_0, window_bounds = array<i64: 512, 36>}, {pipeline_mode = #tpu.pipeline_mode<synchronous>, transform_indices = @transform_1, window_bounds = array<i64: 36, 256>}, {pipeline_mode = #tpu.pipeline_mode<synchronous>, transform_indices = @transform_2, window_bounds = array<i64: 704, 128>}, {pipeline_mode = #tpu.pipeline_mode<synchronous>, transform_indices = @transform_3, window_bounds = array<i64: 64, 128>}, {transform_indices = @transform_4, window_bounds = array<i64: 1, 1>}, {transform_indices = @transform_5, window_bounds = array<i64: 8, 128>}]} {
    %c0 = arith.constant 0 : index
    %c0_0 = arith.constant 0 : index
    %0 = vector.load %arg1[%c0, %c0_0] : memref<512x36xbf16, #tpu.memory_space<vmem>>, vector<512x36xbf16>
    %c0_1 = arith.constant 0 : index
    %c0_2 = arith.constant 0 : index
    %1 = vector.load %arg2[%c0_1, %c0_2] : memref<36x256xbf16, #tpu.memory_space<vmem>>, vector<36x256xbf16>
    %cst = arith.constant dense<0.000000e+00> : vector<512x256xf32>
    %2 = tpu.matmul %0, %1, %cst {dimension_numbers = #tpu.dot_dimension_numbers<[1], [0], [0], [1], [0, 0, 1, 1], [], []>} : vector<512x36xbf16>, vector<36x256xbf16>, vector<512x256xf32> -> vector<512x256xf32>
    %cst_3 = arith.constant 2.000000e-01 : f32
    %3 = vector.broadcast %cst_3 : f32 to vector<512x256xf32>
    %4 = arith.mulf %3, %2 : vector<512x256xf32>
    %5 = arith.maximumf %2, %4 : vector<512x256xf32>
    %6 = arith.truncf %5 : vector<512x256xf32> to vector<512x256xbf16>
    %7 = vector.extract_strided_slice %6 {offsets = [0, 0], sizes = [512, 64], strides = [1, 1]} : vector<512x256xbf16> to vector<512x64xbf16>
    %c0_4 = arith.constant 0 : index
    %c0_5 = arith.constant 0 : index
    %8 = vector.load %arg3[%c0_4, %c0_5] : memref<704x128xbf16, #tpu.memory_space<vmem>>, vector<64x128xbf16>
    %cst_6 = arith.constant dense<0.000000e+00> : vector<512x128xf32>
    %9 = tpu.matmul %7, %8, %cst_6 {dimension_numbers = #tpu.dot_dimension_numbers<[1], [0], [0], [1], [0, 0, 1, 1], [], []>} : vector<512x64xbf16>, vector<64x128xbf16>, vector<512x128xf32> -> vector<512x128xf32>
    %10 = vector.extract_strided_slice %6 {offsets = [0, 0], sizes = [512, 128], strides = [1, 1]} : vector<512x256xbf16> to vector<512x128xbf16>
    %c64 = arith.constant 64 : index
    %c0_7 = arith.constant 0 : index
    %11 = vector.load %arg3[%c64, %c0_7] : memref<704x128xbf16, #tpu.memory_space<vmem>>, vector<128x128xbf16>
    %cst_8 = arith.constant dense<0.000000e+00> : vector<512x128xf32>
    %12 = tpu.matmul %10, %11, %cst_8 {dimension_numbers = #tpu.dot_dimension_numbers<[1], [0], [0], [1], [0, 0, 1, 1], [], []>} : vector<512x128xbf16>, vector<128x128xbf16>, vector<512x128xf32> -> vector<512x128xf32>
    %c511_i32 = arith.constant 511 : i32
    %13 = tpu.dynamic_rotate %12 by %c511_i32 dim 0 : vector<512x128xf32>, i32 -> vector<512x128xf32>
    %14 = arith.addf %9, %13 : vector<512x128xf32>
    %c192 = arith.constant 192 : index
    %c0_9 = arith.constant 0 : index
    %15 = vector.load %arg3[%c192, %c0_9] : memref<704x128xbf16, #tpu.memory_space<vmem>>, vector<256x128xbf16>
    %cst_10 = arith.constant dense<0.000000e+00> : vector<512x128xf32>
    %16 = tpu.matmul %6, %15, %cst_10 {dimension_numbers = #tpu.dot_dimension_numbers<[1], [0], [0], [1], [0, 0, 1, 1], [], []>} : vector<512x256xbf16>, vector<256x128xbf16>, vector<512x128xf32> -> vector<512x128xf32>
    %c448 = arith.constant 448 : index
    %c0_11 = arith.constant 0 : index
    %17 = vector.load %arg3[%c448, %c0_11] : memref<704x128xbf16, #tpu.memory_space<vmem>>, vector<256x128xbf16>
    %cst_12 = arith.constant dense<0.000000e+00> : vector<512x128xf32>
    %18 = tpu.matmul %6, %17, %cst_12 {dimension_numbers = #tpu.dot_dimension_numbers<[1], [0], [0], [1], [0, 0, 1, 1], [], []>} : vector<512x256xbf16>, vector<256x128xbf16>, vector<512x128xf32> -> vector<512x128xf32>
    %c511_i32_13 = arith.constant 511 : i32
    %19 = tpu.dynamic_rotate %18 by %c511_i32_13 dim 0 : vector<512x128xf32>, i32 -> vector<512x128xf32>
    %20 = arith.addf %16, %19 : vector<512x128xf32>
    %c504_i32 = arith.constant 504 : i32
    %21 = tpu.dynamic_rotate %20 by %c504_i32 dim 0 : vector<512x128xf32>, i32 -> vector<512x128xf32>
    %22 = arith.addf %14, %21 : vector<512x128xf32>
    %cst_14 = arith.constant 2.000000e-01 : f32
    %23 = vector.broadcast %cst_14 : f32 to vector<512x128xf32>
    %24 = arith.mulf %23, %22 : vector<512x128xf32>
    %25 = arith.maximumf %22, %24 : vector<512x128xf32>
    %26 = vector.shape_cast %25 : vector<512x128xf32> to vector<8x64x128xf32>
    %c0_15 = arith.constant 0 : index
    %c0_16 = arith.constant 0 : index
    %27 = vector.load %arg4[%c0_15, %c0_16] : memref<64x128xf32, #tpu.memory_space<vmem>>, vector<64x128xf32>
    %28 = vector.shape_cast %27 : vector<64x128xf32> to vector<1x64x128xf32>
    %29 = vector.broadcast %28 : vector<1x64x128xf32> to vector<8x64x128xf32>
    %30 = arith.mulf %26, %29 : vector<8x64x128xf32>
    %cst_17 = arith.constant dense<0.000000e+00> : vector<8x128xf32>
    %31 = vector.multi_reduction <add>, %30, %cst_17 [1] : vector<8x64x128xf32> to vector<8x128xf32>
    %cst_18 = arith.constant dense<0.000000e+00> : vector<8xf32>
    %32 = vector.multi_reduction <add>, %31, %cst_18 [1] : vector<8x128xf32> to vector<8xf32>
    %33 = vector.shape_cast %32 : vector<8xf32> to vector<8x1xf32>
    %c0_19 = arith.constant 0 : index
    %c0_20 = arith.constant 0 : index
    %34 = memref.load %arg5[%c0_19, %c0_20] : memref<1x1xf32, #tpu.memory_space<smem>>
    %35 = vector.broadcast %34 : f32 to vector<8x1xf32>
    %36 = arith.addf %33, %35 : vector<8x1xf32>
    %cst_21 = arith.constant 0.000000e+00 : f32
    %37 = vector.broadcast %cst_21 : f32 to vector<8x1xf32>
    %38 = arith.subf %37, %36 : vector<8x1xf32>
    %39 = math.exp %38 : vector<8x1xf32>
    %cst_22 = arith.constant 1.000000e+00 : f32
    %40 = vector.broadcast %cst_22 : f32 to vector<8x1xf32>
    %41 = arith.addf %40, %39 : vector<8x1xf32>
    %cst_23 = arith.constant 1.000000e+00 : f32
    %42 = vector.broadcast %cst_23 : f32 to vector<8x1xf32>
    %43 = arith.divf %42, %41 : vector<8x1xf32>
    %44 = vector.shape_cast %43 : vector<8x1xf32> to vector<8x1xf32>
    %45 = vector.broadcast %44 : vector<8x1xf32> to vector<8x128xf32>
    %c0_24 = arith.constant 0 : index
    %c0_25 = arith.constant 0 : index
    %46 = vector.load %arg6[%c0_24, %c0_25] : memref<8x128xf32, #tpu.memory_space<vmem>>, vector<8x128xf32>
    tpu.vector_store %arg6[%c0_24, %c0_25], %45 {strides = array<i32>} : memref<8x128xf32, #tpu.memory_space<vmem>>, vector<8x128xf32>,
    return
  }
  func.func @transform_0(%arg0: i32) -> (i32, i32) {
    %c0_i32 = arith.constant 0 : i32
    %c0_i32_0 = arith.constant 0 : i32
    return %arg0, %c0_i32 : i32, i32
  }
  func.func @transform_1(%arg0: i32) -> (i32, i32) {
    %c0_i32 = arith.constant 0 : i32
    %c0_i32_0 = arith.constant 0 : i32
    %c0_i32_1 = arith.constant 0 : i32
    return %c0_i32, %c0_i32_0 : i32, i32
  }
  func.func @transform_2(%arg0: i32) -> (i32, i32) {
    %c0_i32 = arith.constant 0 : i32
    %c0_i32_0 = arith.constant 0 : i32
    %c0_i32_1 = arith.constant 0 : i32
    return %c0_i32, %c0_i32_0 : i32, i32
  }
  func.func @transform_3(%arg0: i32) -> (i32, i32) {
    %c0_i32 = arith.constant 0 : i32
    %c0_i32_0 = arith.constant 0 : i32
    %c0_i32_1 = arith.constant 0 : i32
    return %c0_i32, %c0_i32_0 : i32, i32
  }
  func.func @transform_4(%arg0: i32) -> (i32, i32) {
    %c0_i32 = arith.constant 0 : i32
    %c0_i32_0 = arith.constant 0 : i32
    %c0_i32_1 = arith.constant 0 : i32
    return %c0_i32, %c0_i32_0 : i32, i32
  }
  func.func @transform_5(%arg0: i32) -> (i32, i32) {
    %c0_i32 = arith.constant 0 : i32
    %c0_i32_0 = arith.constant 0 : i32
    return %arg0, %c0_i32 : i32, i32
  }
}

</mosaic_0001>

<llo_original>
// kernel: discriminator_forward.1
$region0: #{discriminator_forward.1}
  #allocation0 [shape = 'u32[]', space=smem, size = 0x4, offset = 0x4, fixed_abs, tag = 'smem constant byte address 0x4 - core index']
  #allocation1 [shape = 'u32[144,128]{1,0:T(1,128)}', space=vmem, size = 0x12000, scoped, tag = 'internal scratch']
  #allocation2 [shape = 'f32[1,1]{1,0:T(1,128)S(6)}', space=smem, size = 0x200, scoped, tag = 'scoped memory for discriminator_forward.1']
  %s0 = inlined_call_operand.vmem [shape: bf16[1024,36], index: 0, kind: input, shape index: {}]
  %s1 = inlined_call_operand.vmem [shape: bf16[36,256], index: 1, kind: input, shape index: {}]
  %s2 = inlined_call_operand.vmem [shape: bf16[704,128], index: 2, kind: input, shape index: {}]
  %s3 = inlined_call_operand.vmem [shape: f32[64,128], index: 3, kind: input, shape index: {}]
  %s4 = inlined_call_operand.<no memory space> [shape: f32[1,1], index: 4, kind: input, shape index: {}]
  %s5 = inlined_call_operand.vmem [shape: f32[16,128], index: 5, kind: output, shape index: {}]
  %s6 = sld [smem:[#allocation0]]
  $region53: #{discriminator_forward.1} parent=0
    _
  %s8 = ssub.s32 1, %s6
  %s9 = scalar_select 0, %s8, %s6
  %10 = sst [smem:[#allocation2]] %s4
  loop: start=0, step=1, limit=4
  $region2: #{discriminator_forward.1} parent=0 // loop_pre_header
    _
  $region3: #{discriminator_forward.1} parent=0 // loop_header
    %s12 = sphi 0, %s16
    %p13 = scmp.ge.s32.totalorder %s12, 4
    %s22 = sphi 0, %s24
    %s25 = sphi 0, %s22
    %s26 = sphi 0, %s25
    %s42 = sphi 0, %s26
    %s46 = sphi 0, %s46
    %s48 = sphi 0, %s46
    %s49 = sphi 0, %s48
    %s63 = sphi 0, %s49
    %s67 = sphi 0, %s67
    %s69 = sphi 0, %s67
    %s70 = sphi 0, %s69
    %s84 = sphi 0, %s70
    %s88 = sphi 0, %s88
    %s90 = sphi 0, %s88
    %s91 = sphi 0, %s90
    %s105 = sphi 0, %s91
    %s109 = sphi 0, %s109
    %s111 = sphi 0, %s109
    %s112 = sphi 0, %s111
    %s126 = sphi 0, %s112
    %s132 = sphi 0, %s134
    %s135 = sphi 0, %s132
    %s136 = sphi 0, %s135
    %s152 = sphi 0, %s136
  $region4: #{discriminator_forward.1} parent=0 // loop_header_branch
    %15 = sbr.rel (%p13) target = $region8
  $region5: #{discriminator_forward.1} parent=0 // loop_body
    %s17 = ssub.s32 %s12, 1
    %s18 = ssub.s32 %s12, 2
    %s19 = sadd.s32 %s12, 1
    %s20 = ssub.s32 %s12, %s19
    %p21 = scmp.eq.s32.totalorder %s20, 0
    %s23 = sadd.s32 %s22, 1
    %s24 = scalar_select %p21, %s22, %s23
    %p27 = pneg %p21
    %p28 = scmp.eq.s32.totalorder %s12, 1
    %p29 = por %p27, %p28
    %p30 = scmp.ne.s32.totalorder %s22, %s25
    %p31 = scmp.eq.s32.totalorder %s12, 0
    %p32 = por %p30, %p31
    %p33 = scmp.ne.s32.totalorder %s22, %s25
    %p34 = scmp.eq.s32.totalorder %s17, 1
    %p35 = por %p33, %p34
    %p36 = scmp.ne.s32.totalorder %s25, %s26
    %p37 = scmp.eq.s32.totalorder %s17, 0
    %p38 = por %p36, %p37
    %p39 = scmp.ne.s32.totalorder %s25, %s26
    %p40 = scmp.eq.s32.totalorder %s18, 1
    %p41 = por %p39, %p40
    %p43 = scmp.ne.s32.totalorder %s26, %s42
    %p44 = scmp.eq.s32.totalorder %s18, 0
    %p45 = por %p43, %p44
    %s47 = sadd.s32 %s46, 1
    %p50 = scmp.eq.s32.totalorder %s12, 1
    %p51 = scmp.ne.s32.totalorder %s46, %s48
    %p52 = scmp.eq.s32.totalorder %s12, 0
    %p53 = por %p51, %p52
    %p54 = scmp.ne.s32.totalorder %s46, %s48
    %p55 = scmp.eq.s32.totalorder %s17, 1
    %p56 = por %p54, %p55
    %p57 = scmp.ne.s32.totalorder %s48, %s49
    %p58 = scmp.eq.s32.totalorder %s17, 0
    %p59 = por %p57, %p58
    %p60 = scmp.ne.s32.totalorder %s48, %s49
    %p61 = scmp.eq.s32.totalorder %s18, 1
    %p62 = por %p60, %p61
    %p64 = scmp.ne.s32.totalorder %s49, %s63
    %p65 = scmp.eq.s32.totalorder %s18, 0
    %p66 = por %p64, %p65
    %s68 = sadd.s32 %s67, 1
    %p71 = scmp.eq.s32.totalorder %s12, 1
    %p72 = scmp.ne.s32.totalorder %s67, %s69
    %p73 = scmp.eq.s32.totalorder %s12, 0
    %p74 = por %p72, %p73
    %p75 = scmp.ne.s32.totalorder %s67, %s69
    %p76 = scmp.eq.s32.totalorder %s17, 1
    %p77 = por %p75, %p76
    %p78 = scmp.ne.s32.totalorder %s69, %s70
    %p79 = scmp.eq.s32.totalorder %s17, 0
    %p80 = por %p78, %p79
    %p81 = scmp.ne.s32.totalorder %s69, %s70
    %p82 = scmp.eq.s32.totalorder %s18, 1
    %p83 = por %p81, %p82
    %p85 = scmp.ne.s32.totalorder %s70, %s84
    %p86 = scmp.eq.s32.totalorder %s18, 0
    %p87 = por %p85, %p86
    %s89 = sadd.s32 %s88, 1
    %p92 = scmp.eq.s32.totalorder %s12, 1
    %p93 = scmp.ne.s32.totalorder %s88, %s90
    %p94 = scmp.eq.s32.totalorder %s12, 0
    %p95 = por %p93, %p94
    %p96 = scmp.ne.s32.totalorder %s88, %s90
    %p97 = scmp.eq.s32.totalorder %s17, 1
    %p98 = por %p96, %p97
    %p99 = scmp.ne.s32.totalorder %s90, %s91
    %p100 = scmp.eq.s32.totalorder %s17, 0
    %p101 = por %p99, %p100
    %p102 = scmp.ne.s32.totalorder %s90, %s91
    %p103 = scmp.eq.s32.totalorder %s18, 1
    %p104 = por %p102, %p103
    %p106 = scmp.ne.s32.totalorder %s91, %s105
    %p107 = scmp.eq.s32.totalorder %s18, 0
    %p108 = por %p106, %p107
    %s110 = sadd.s32 %s109, 1
    %p113 = scmp.eq.s32.totalorder %s12, 1
    %p114 = scmp.ne.s32.totalorder %s109, %s111
    %p115 = scmp.eq.s32.totalorder %s12, 0
    %p116 = por %p114, %p115
    %p117 = scmp.ne.s32.totalorder %s109, %s111
    %p118 = scmp.eq.s32.totalorder %s17, 1
    %p119 = por %p117, %p118
    %p120 = scmp.ne.s32.totalorder %s111, %s112
    %p121 = scmp.eq.s32.totalorder %s17, 0
    %p122 = por %p120, %p121
    %p123 = scmp.ne.s32.totalorder %s111, %s112
    %p124 = scmp.eq.s32.totalorder %s18, 1
    %p125 = por %p123, %p124
    %p127 = scmp.ne.s32.totalorder %s112, %s126
    %p128 = scmp.eq.s32.totalorder %s18, 0
    %p129 = por %p127, %p128
    %s130 = ssub.s32 %s12, %s19
    %p131 = scmp.eq.s32.totalorder %s130, 0
    %s133 = sadd.s32 %s132, 1
    %s134 = scalar_select %p131, %s132, %s133
    %p137 = pneg %p131
    %p138 = scmp.eq.s32.totalorder %s12, 1
    %p139 = por %p137, %p138
    %p140 = scmp.ne.s32.totalorder %s132, %s135
    %p141 = scmp.eq.s32.totalorder %s12, 0
    %p142 = por %p140, %p141
    %p143 = scmp.ne.s32.totalorder %s132, %s135
    %p144 = scmp.eq.s32.totalorder %s17, 1
    %p145 = por %p143, %p144
    %p146 = scmp.ne.s32.totalorder %s135, %s136
    %p147 = scmp.eq.s32.totalorder %s17, 0
    %p148 = por %p146, %p147
    %p149 = scmp.ne.s32.totalorder %s135, %s136
    %p150 = scmp.eq.s32.totalorder %s18, 1
    %p151 = por %p149, %p150
    %p153 = scmp.ne.s32.totalorder %s136, %s152
    %p154 = scmp.eq.s32.totalorder %s18, 0
    %p155 = por %p153, %p154
    %p156 = scmp.le.s32.totalorder 1, %s12
    %p157 = scmp.lt.s32.totalorder %s12, 3
    %p158 = pnand %p156, %p157
    %p159 = pneg %p158
    // Predicated region
    $region9: #{discriminator_forward.1} parent=5 // pred_check
      _
    $region10: #{discriminator_forward.1} parent=5 // pred_check_branch
      %161 = sbr.rel (%p158) target = $region12
    $region11: #{discriminator_forward.1} parent=5 // pred_region
      %s162 = ssub.s32 %s12, 1
      // Predicated region
      $region13: #{discriminator_forward.1} parent=11 // pred_check
        %p163 = pneg %p59
      $region14: #{discriminator_forward.1} parent=11 // pred_check_branch
        %165 = sbr.rel (%p163) target = $region16
      $region15: #{discriminator_forward.1} parent=11 // pred_region
        _
      $region16: #{discriminator_forward.1} parent=11 // pred_fallthru
        _
      // Predicated region
      $region17: #{discriminator_forward.1} parent=11 // pred_check
        %p166 = pneg %p80
      $region18: #{discriminator_forward.1} parent=11 // pred_check_branch
        %168 = sbr.rel (%p166) target = $region20
      $region19: #{discriminator_forward.1} parent=11 // pred_region
        _
      $region20: #{discriminator_forward.1} parent=11 // pred_fallthru
        _
      // Predicated region
      $region21: #{discriminator_forward.1} parent=11 // pred_check
        %p169 = pneg %p101
      $region22: #{discriminator_forward.1} parent=11 // pred_check_branch
        %171 = sbr.rel (%p169) target = $region24
      $region23: #{discriminator_forward.1} parent=11 // pred_region
        _
      $region24: #{discriminator_forward.1} parent=11 // pred_fallthru
        _
      // Predicated region
      $region25: #{discriminator_forward.1} parent=11 // pred_check
        %p172 = pneg %p122
      $region26: #{discriminator_forward.1} parent=11 // pred_check_branch
        %174 = sbr.rel (%p172) target = $region28
      $region27: #{discriminator_forward.1} parent=11 // pred_region
        _
      $region28: #{discriminator_forward.1} parent=11 // pred_fallthru
        _
    $region12: #{discriminator_forward.1} parent=5 // pred_fallthru
      _
    %p175 = scmp.lt.s32.totalorder %s12, 2
    // Predicated region
    $region29: #{discriminator_forward.1} parent=5 // pred_check
      %p176 = pneg %p175
    $region30: #{discriminator_forward.1} parent=5 // pred_check_branch
      %178 = sbr.rel (%p176) target = $region32
    $region31: #{discriminator_forward.1} parent=5 // pred_region
      // Predicated region
      $region33: #{discriminator_forward.1} parent=31 // pred_check
        %p179 = pneg %p32
      $region34: #{discriminator_forward.1} parent=31 // pred_check_branch
        %181 = sbr.rel (%p179) target = $region36
      $region35: #{discriminator_forward.1} parent=31 // pred_region
        %s182 = smul.u32 64, %s12
        %p183 = scmp.lt.s32.totalorder %s182, 127
        %s184 = scalar_select %p183, %s182, 127
        %s185 = smul.addr %s184, 4
        %s186 = scalar_lea.vmem %s0, %s185
        %s187 = smul.u32 64, %s12
      $region36: #{discriminator_forward.1} parent=31 // pred_fallthru
        _
    $region32: #{discriminator_forward.1} parent=5 // pred_fallthru
      _
    %p188 = scmp.le.s32.totalorder 1, %s12
    %p189 = scmp.lt.s32.totalorder %s12, 3
    %p190 = pnand %p188, %p189
    %p191 = pneg %p190
    // Predicated region
    $region37: #{discriminator_forward.1} parent=5 // pred_check
      _
    $region38: #{discriminator_forward.1} parent=5 // pred_check_branch
      %193 = sbr.rel (%p190) target = $region40
    $region39: #{discriminator_forward.1} parent=5 // pred_region
      %s194 = ssub.s32 %s12, 1
      %s195 = smul.u32 64, %s17
      %p196 = scmp.lt.s32.totalorder %s195, 127
      %s197 = scalar_select %p196, %s195, 127
      %s198 = smul.addr %s197, 4
      %s199 = scalar_lea.vmem %s0, %s198
      %p200 = pneg %p38
      %p201 = pneg %p35
      %p202 = pneg %p59
      %p203 = pneg %p56
      %p204 = pneg %p80
      %p205 = pneg %p77
      %p206 = pneg %p101
      %p207 = pneg %p98
      %p208 = pneg %p122
      %p209 = pneg %p119
      %p210 = pneg %p148
      %p211 = pneg %p145
      %p212 = scmp.lt.s32.totalorder %s17, 1
      %s213 = scalar_select %p212, %s17, 1
      %s214 = smul.addr %s213, 8
      %s215 = scalar_lea.vmem %s5, %s214
      %s216 = smul.u32 64, %s17
      %p217 = scmp.lt.s32.totalorder %s216, 127
      %s218 = scalar_select %p217, %s216, 127
      %s219 = smul.addr %s218, 4
      %s220 = scalar_lea.vmem %s0, %s219
      %s221 = smul.u32 64, %s17
      %p222 = scmp.lt.s32.totalorder %s17, 1
      %s223 = scalar_select %p222, %s17, 1
      %s224 = smul.addr %s223, 8
      %s225 = scalar_lea.vmem %s5, %s224
      %v227 = vld [vmem:[%s220] sm:$0xf]
      %v228 = vld [vmem:[%s220 + $0x4] sm:$0xf]
      %v229 = vld [vmem:[%s220 + $0x8] sm:$0xf]
      %v230 = vld [vmem:[%s220 + $0xc] sm:$0xf]
      %v231 = vld [vmem:[%s220 + $0x10] sm:$0xf]
      %v232 = vld [vmem:[%s220 + $0x14] sm:$0xf]
      %v233 = vld [vmem:[%s220 + $0x18] sm:$0xf]
      %v234 = vld [vmem:[%s220 + $0x1c] sm:$0xf]
      %v235 = vld [vmem:[%s220 + $0x20] sm:$0xf]
      %v236 = vld [vmem:[%s220 + $0x24] sm:$0xf]
      %v237 = vld [vmem:[%s220 + $0x28] sm:$0xf]
      %v238 = vld [vmem:[%s220 + $0x2c] sm:$0xf]
      %v239 = vld [vmem:[%s220 + $0x30] sm:$0xf]
      %v240 = vld [vmem:[%s220 + $0x34] sm:$0xf]
      %v241 = vld [vmem:[%s220 + $0x38] sm:$0xf]
      %v242 = vld [vmem:[%s220 + $0x3c] sm:$0xf]
      %v243 = vld [vmem:[%s220 + $0x40] sm:$0xf]
      %v244 = vld [vmem:[%s220 + $0x44] sm:$0xf]
      %v245 = vld [vmem:[%s220 + $0x48] sm:$0xf]
      %v246 = vld [vmem:[%s220 + $0x4c] sm:$0xf]
      %v247 = vld [vmem:[%s220 + $0x50] sm:$0xf]
      %v248 = vld [vmem:[%s220 + $0x54] sm:$0xf]
      %v249 = vld [vmem:[%s220 + $0x58] sm:$0xf]
      %v250 = vld [vmem:[%s220 + $0x5c] sm:$0xf]
      %v251 = vld [vmem:[%s220 + $0x60] sm:$0xf]
      %v252 = vld [vmem:[%s220 + $0x64] sm:$0xf]
      %v253 = vld [vmem:[%s220 + $0x68] sm:$0xf]
      %v254 = vld [vmem:[%s220 + $0x6c] sm:$0xf]
      %v255 = vld [vmem:[%s220 + $0x70] sm:$0xf]
      %v256 = vld [vmem:[%s220 + $0x74] sm:$0xf]
      %v257 = vld [vmem:[%s220 + $0x78] sm:$0xf]
      %v258 = vld [vmem:[%s220 + $0x7c] sm:$0xf]
      %v259 = vld [vmem:[%s220 + $0x80] sm:$0xf]
      %v260 = vld [vmem:[%s220 + $0x84] sm:$0xf]
      %v261 = vld [vmem:[%s220 + $0x88] sm:$0xf]
      %v262 = vld [vmem:[%s220 + $0x8c] sm:$0xf]
      %v263 = vld [vmem:[%s220 + $0x90] sm:$0xf]
      %v264 = vld [vmem:[%s220 + $0x94] sm:$0xf]
      %v265 = vld [vmem:[%s220 + $0x98] sm:$0xf]
      %v266 = vld [vmem:[%s220 + $0x9c] sm:$0xf]
      %v267 = vld [vmem:[%s220 + $0xa0] sm:$0xf]
      %v268 = vld [vmem:[%s220 + $0xa4] sm:$0xf]
      %v269 = vld [vmem:[%s220 + $0xa8] sm:$0xf]
      %v270 = vld [vmem:[%s220 + $0xac] sm:$0xf]
      %v271 = vld [vmem:[%s220 + $0xb0] sm:$0xf]
      %v272 = vld [vmem:[%s220 + $0xb4] sm:$0xf]
      %v273 = vld [vmem:[%s220 + $0xb8] sm:$0xf]
      %v274 = vld [vmem:[%s220 + $0xbc] sm:$0xf]
      %v275 = vld [vmem:[%s220 + $0xc0] sm:$0xf]
      %v276 = vld [vmem:[%s220 + $0xc4] sm:$0xf]
      %v277 = vld [vmem:[%s220 + $0xc8] sm:$0xf]
      %v278 = vld [vmem:[%s220 + $0xcc] sm:$0xf]
      %v279 = vld [vmem:[%s220 + $0xd0] sm:$0xf]
      %v280 = vld [vmem:[%s220 + $0xd4] sm:$0xf]
      %v281 = vld [vmem:[%s220 + $0xd8] sm:$0xf]
      %v282 = vld [vmem:[%s220 + $0xdc] sm:$0xf]
      %v283 = vld [vmem:[%s220 + $0xe0] sm:$0xf]
      %v284 = vld [vmem:[%s220 + $0xe4] sm:$0xf]
      %v285 = vld [vmem:[%s220 + $0xe8] sm:$0xf]
      %v286 = vld [vmem:[%s220 + $0xec] sm:$0xf]
      %v287 = vld [vmem:[%s220 + $0xf0] sm:$0xf]
      %v288 = vld [vmem:[%s220 + $0xf4] sm:$0xf]
      %v289 = vld [vmem:[%s220 + $0xf8] sm:$0xf]
      %v290 = vld [vmem:[%s220 + $0xfc] sm:$0xf]
      %v291 = vld [vmem:[%s1] sm:$0xff]
      %v292 = vld [vmem:[%s1 + $0x8] sm:$0xff]
      %v293 = vld [vmem:[%s1 + $0x10] sm:$0xff]
      %v294 = vld [vmem:[%s1 + $0x18] sm:$0xff]
      %v295 = vld [vmem:[%s1 + $0x20] sm:$0x33]
      %v360 = vunpack.c.l.b16 %v227
      %v361 = vunpack.c.l.b16 %v228
      %v362 = vunpack.c.l.b16 %v229
      %v363 = vunpack.c.l.b16 %v230
      %v364 = vunpack.c.l.b16 %v231
      %v365 = vunpack.c.l.b16 %v232
      %v366 = vunpack.c.l.b16 %v233
      %v367 = vunpack.c.l.b16 %v234
      %v368 = vunpack.c.l.b16 %v235
      %v369 = vunpack.c.l.b16 %v236
      %v370 = vunpack.c.l.b16 %v237
      %v371 = vunpack.c.l.b16 %v238
      %v372 = vunpack.c.l.b16 %v239
      %v373 = vunpack.c.l.b16 %v240
      %v374 = vunpack.c.l.b16 %v241
      %v375 = vunpack.c.l.b16 %v242
      %v376 = vunpack.c.l.b16 %v243
      %v377 = vunpack.c.l.b16 %v244
      %v378 = vunpack.c.l.b16 %v245
      %v379 = vunpack.c.l.b16 %v246
      %v380 = vunpack.c.l.b16 %v247
      %v381 = vunpack.c.l.b16 %v248
      %v382 = vunpack.c.l.b16 %v249
      %v383 = vunpack.c.l.b16 %v250
      %v384 = vunpack.c.l.b16 %v251
      %v385 = vunpack.c.l.b16 %v252
      %v386 = vunpack.c.l.b16 %v253
      %v387 = vunpack.c.l.b16 %v254
      %v388 = vunpack.c.l.b16 %v255
      %v389 = vunpack.c.l.b16 %v256
      %v390 = vunpack.c.l.b16 %v257
      %v391 = vunpack.c.l.b16 %v258
      %v392 = vunpack.c.l.b16 %v259
      %v393 = vunpack.c.l.b16 %v260
      %v394 = vunpack.c.l.b16 %v261
      %v395 = vunpack.c.l.b16 %v262
      %v396 = vunpack.c.l.b16 %v263
      %v397 = vunpack.c.l.b16 %v264
      %v398 = vunpack.c.l.b16 %v265
      %v399 = vunpack.c.l.b16 %v266
      %v400 = vunpack.c.l.b16 %v267
      %v401 = vunpack.c.l.b16 %v268
      %v402 = vunpack.c.l.b16 %v269
      %v403 = vunpack.c.l.b16 %v270
      %v404 = vunpack.c.l.b16 %v271
      %v405 = vunpack.c.l.b16 %v272
      %v406 = vunpack.c.l.b16 %v273
      %v407 = vunpack.c.l.b16 %v274
      %v408 = vunpack.c.l.b16 %v275
      %v409 = vunpack.c.l.b16 %v276
      %v410 = vunpack.c.l.b16 %v277
      %v411 = vunpack.c.l.b16 %v278
      %v412 = vunpack.c.l.b16 %v279
      %v413 = vunpack.c.l.b16 %v280
      %v414 = vunpack.c.l.b16 %v281
      %v415 = vunpack.c.l.b16 %v282
      %v416 = vunpack.c.l.b16 %v283
      %v417 = vunpack.c.l.b16 %v284
      %v418 = vunpack.c.l.b16 %v285
      %v419 = vunpack.c.l.b16 %v286
      %v420 = vunpack.c.l.b16 %v287
      %v421 = vunpack.c.l.b16 %v288
      %v422 = vunpack.c.l.b16 %v289
      %v423 = vunpack.c.l.b16 %v290
      %v424 = vpack.c.b16 %v361, %v360
      %v425 = vpack.c.b16 %v363, %v362
      %v426 = vpack.c.b16 %v365, %v364
      %v427 = vpack.c.b16 %v367, %v366
      %v428 = vpack.c.b16 %v369, %v368
      %v429 = vpack.c.b16 %v371, %v370
      %v430 = vpack.c.b16 %v373, %v372
      %v431 = vpack.c.b16 %v375, %v374
      %v432 = vpack.c.b16 %v377, %v376
      %v433 = vpack.c.b16 %v379, %v378
      %v434 = vpack.c.b16 %v381, %v380
      %v435 = vpack.c.b16 %v383, %v382
      %v436 = vpack.c.b16 %v385, %v384
      %v437 = vpack.c.b16 %v387, %v386
      %v438 = vpack.c.b16 %v389, %v388
      %v439 = vpack.c.b16 %v391, %v390
      %v440 = vpack.c.b16 %v393, %v392
      %v441 = vpack.c.b16 %v395, %v394
      %v442 = vpack.c.b16 %v397, %v396
      %v443 = vpack.c.b16 %v399, %v398
      %v444 = vpack.c.b16 %v401, %v400
      %v445 = vpack.c.b16 %v403, %v402
      %v446 = vpack.c.b16 %v405, %v404
      %v447 = vpack.c.b16 %v407, %v406
      %v448 = vpack.c.b16 %v409, %v408
      %v449 = vpack.c.b16 %v411, %v410
      %v450 = vpack.c.b16 %v413, %v412
      %v451 = vpack.c.b16 %v415, %v414
      %v452 = vpack.c.b16 %v417, %v416
      %v453 = vpack.c.b16 %v419, %v418
      %v454 = vpack.c.b16 %v421, %v420
      %v455 = vpack.c.b16 %v423, %v422
      %v461 = vunpack.c.l.b16 %v291
      %v462 = vunpack.c.h.b16 %v291
      %v463 = vunpack.c.l.b16 %v292
      %v464 = vunpack.c.h.b16 %v292
      %v465 = vunpack.c.l.b16 %v293
      %v466 = vunpack.c.h.b16 %v293
      %v467 = vunpack.c.l.b16 %v294
      %v468 = vunpack.c.h.b16 %v294
      %v469 = vunpack.c.l.b16 %v295
      %v470 = vunpack.c.h.b16 %v295
      %v471 = vpack.c.b16 %v463, %v461
      %v472 = vpack.c.b16 %v464, %v462
      %v473 = vpack.c.b16 %v467, %v465
      %v474 = vpack.c.b16 %v468, %v466
      %v475 = vpack.c.b16 %v469, %v469
      %v476 = vpack.c.b16 %v470, %v470
      %vm481 = vcmask 293888
      %v483 = vsel %vm481, %v424, 0
      %v486 = vsel %vm481, %v425, 0
      %v489 = vsel %vm481, %v426, 0
      %v492 = vsel %vm481, %v427, 0
      %v495 = vsel %vm481, %v428, 0
      %v498 = vsel %vm481, %v429, 0
      %v501 = vsel %vm481, %v430, 0
      %v504 = vsel %vm481, %v431, 0
      %v507 = vsel %vm481, %v432, 0
      %v510 = vsel %vm481, %v433, 0
      %v513 = vsel %vm481, %v434, 0
      %v516 = vsel %vm481, %v435, 0
      %v519 = vsel %vm481, %v436, 0
      %v522 = vsel %vm481, %v437, 0
      %v525 = vsel %vm481, %v438, 0
      %v528 = vsel %vm481, %v439, 0
      %v531 = vsel %vm481, %v440, 0
      %v534 = vsel %vm481, %v441, 0
      %v537 = vsel %vm481, %v442, 0
      %v540 = vsel %vm481, %v443, 0
      %v543 = vsel %vm481, %v444, 0
      %v546 = vsel %vm481, %v445, 0
      %v549 = vsel %vm481, %v446, 0
      %v552 = vsel %vm481, %v447, 0
      %v555 = vsel %vm481, %v448, 0
      %v558 = vsel %vm481, %v449, 0
      %v561 = vsel %vm481, %v450, 0
      %v564 = vsel %vm481, %v451, 0
      %v567 = vsel %vm481, %v452, 0
      %v570 = vsel %vm481, %v453, 0
      %v573 = vsel %vm481, %v454, 0
      %v576 = vsel %vm481, %v455, 0
      %vm578 = vcmask 1041408
      %v580 = vsel %vm578, %v475, 0
      %v583 = vsel %vm578, %v476, 0
      %585 = vmatprep.subr.bf16.mxu0 0
      %586 = vmatpush1.bf16.msra.mxu0 0
      %587 = vmatprep.subr.bf16.mxu0 0
      %588 = vmatpush1.bf16.msra.mxu0 0
      %589 = vmatprep.subr.bf16.mxu0 0
      %590 = vmatpush1.bf16.msra.mxu0 0
      %591 = vmatprep.subr.bf16.mxu0 0
      %592 = vmatpush1.bf16.msra.mxu0 0
      %593 = vmatprep.subr.bf16.mxu0 0
      %594 = vmatpush1.bf16.msra.mxu0 0
      %595 = vmatprep.subr.bf16.mxu0 %v583
      %596 = vmatpush1.bf16.msra.mxu0 %v580
      %597 = vmatprep.subr.bf16.mxu0 %v474
      %598 = vmatpush1.bf16.msra.mxu0 %v473
      %599 = vmatprep.subr.bf16.mxu0 %v472
      %600 = vmatpush1.bf16.msra.mxu0 %v471
      %601 = vmatprep.subr.bf16.mxu0 0
      %602 = vmatpush2.bf16.msra.mxu0 0
      %603 = vmatprep.subr.bf16.mxu0 0
      %604 = vmatpush2.bf16.msra.mxu0 0
      %605 = vmatprep.subr.bf16.mxu0 0
      %606 = vmatpush2.bf16.msra.mxu0 0
      %607 = vmatprep.subr.bf16.mxu0 0
      %608 = vmatpush2.bf16.msra.mxu0 0
      %609 = vmatprep.subr.bf16.mxu0 0
      %610 = vmatpush2.bf16.msra.mxu0 0
      %611 = vmatprep.subr.bf16.mxu0 0
      %612 = vmatpush2.bf16.msra.mxu0 0
      %613 = vmatprep.subr.bf16.mxu0 0
      %614 = vmatpush2.bf16.msra.mxu0 0
      %615 = vmatprep.subr.bf16.mxu0 0
      %616 = vmatpush2.bf16.msra.mxu0 0
      %617 = vmatprep.mubr.bf16.mxu0 0
      %618 = vmatmul.mubr.bf16.gmra.mxu0 %v483
      %v619 = vpop.f32.mrf.mxu0
      %v620 = vadd.f32 0.0, %v619
      %v621 = vpop.f32.mrf.mxu0
      %v622 = vadd.f32 0.0, %v621
      %v623 = vpop.f32.mrf.mxu0
      %v624 = vadd.f32 0.0, %v623
      %v625 = vpop.f32.mrf.mxu0
      %v626 = vadd.f32 0.0, %v625
      %627 = vmatprep.mubr.bf16.mxu0 0
      %628 = vmatmul.mubr.bf16.gmra.mxu0 %v486
      %v629 = vpop.f32.mrf.mxu0
      %v630 = vadd.f32 0.0, %v629
      %v631 = vpop.f32.mrf.mxu0
      %v632 = vadd.f32 0.0, %v631
      %v633 = vpop.f32.mrf.mxu0
      %v634 = vadd.f32 0.0, %v633
      %v635 = vpop.f32.mrf.mxu0
      %v636 = vadd.f32 0.0, %v635
      %637 = vmatprep.mubr.bf16.mxu0 0
      %638 = vmatmul.mubr.bf16.gmra.mxu0 %v489
      %v639 = vpop.f32.mrf.mxu0
      %v640 = vadd.f32 0.0, %v639
      %v641 = vpop.f32.mrf.mxu0
      %v642 = vadd.f32 0.0, %v641
      %v643 = vpop.f32.mrf.mxu0
      %v644 = vadd.f32 0.0, %v643
      %v645 = vpop.f32.mrf.mxu0
      %v646 = vadd.f32 0.0, %v645
      %647 = vmatprep.mubr.bf16.mxu0 0
      %648 = vmatmul.mubr.bf16.gmra.mxu0 %v492
      %v649 = vpop.f32.mrf.mxu0
      %v650 = vadd.f32 0.0, %v649
      %v651 = vpop.f32.mrf.mxu0
      %v652 = vadd.f32 0.0, %v651
      %v653 = vpop.f32.mrf.mxu0
      %v654 = vadd.f32 0.0, %v653
      %v655 = vpop.f32.mrf.mxu0
      %v656 = vadd.f32 0.0, %v655
      %657 = vmatprep.mubr.bf16.mxu0 0
      %658 = vmatmul.mubr.bf16.gmra.mxu0 %v495
      %v659 = vpop.f32.mrf.mxu0
      %v660 = vadd.f32 0.0, %v659
      %v661 = vpop.f32.mrf.mxu0
      %v662 = vadd.f32 0.0, %v661
      %v663 = vpop.f32.mrf.mxu0
      %v664 = vadd.f32 0.0, %v663
      %v665 = vpop.f32.mrf.mxu0
      %v666 = vadd.f32 0.0, %v665
      %667 = vmatprep.mubr.bf16.mxu0 0
      %668 = vmatmul.mubr.bf16.gmra.mxu0 %v498
      %v669 = vpop.f32.mrf.mxu0
      %v670 = vadd.f32 0.0, %v669
      %v671 = vpop.f32.mrf.mxu0
      %v672 = vadd.f32 0.0, %v671
      %v673 = vpop.f32.mrf.mxu0
      %v674 = vadd.f32 0.0, %v673
      %v675 = vpop.f32.mrf.mxu0
      %v676 = vadd.f32 0.0, %v675
      %677 = vmatprep.mubr.bf16.mxu0 0
      %678 = vmatmul.mubr.bf16.gmra.mxu0 %v501
      %v679 = vpop.f32.mrf.mxu0
      %v680 = vadd.f32 0.0, %v679
      %v681 = vpop.f32.mrf.mxu0
      %v682 = vadd.f32 0.0, %v681
      %v683 = vpop.f32.mrf.mxu0
      %v684 = vadd.f32 0.0, %v683
      %v685 = vpop.f32.mrf.mxu0
      %v686 = vadd.f32 0.0, %v685
      %687 = vmatprep.mubr.bf16.mxu0 0
      %688 = vmatmul.mubr.bf16.gmra.mxu0 %v504
      %v689 = vpop.f32.mrf.mxu0
      %v690 = vadd.f32 0.0, %v689
      %v691 = vpop.f32.mrf.mxu0
      %v692 = vadd.f32 0.0, %v691
      %v693 = vpop.f32.mrf.mxu0
      %v694 = vadd.f32 0.0, %v693
      %v695 = vpop.f32.mrf.mxu0
      %v696 = vadd.f32 0.0, %v695
      %697 = vmatprep.mubr.bf16.mxu0 0
      %698 = vmatmul.mubr.bf16.gmra.mxu0 %v507
      %v699 = vpop.f32.mrf.mxu0
      %v700 = vadd.f32 0.0, %v699
      %v701 = vpop.f32.mrf.mxu0
      %v702 = vadd.f32 0.0, %v701
      %v703 = vpop.f32.mrf.mxu0
      %v704 = vadd.f32 0.0, %v703
      %v705 = vpop.f32.mrf.mxu0
      %v706 = vadd.f32 0.0, %v705
      %707 = vmatprep.mubr.bf16.mxu0 0
      %708 = vmatmul.mubr.bf16.gmra.mxu0 %v510
      %v709 = vpop.f32.mrf.mxu0
      %v710 = vadd.f32 0.0, %v709
      %v711 = vpop.f32.mrf.mxu0
      %v712 = vadd.f32 0.0, %v711
      %v713 = vpop.f32.mrf.mxu0
      %v714 = vadd.f32 0.0, %v713
      %v715 = vpop.f32.mrf.mxu0
      %v716 = vadd.f32 0.0, %v715
      %717 = vmatprep.mubr.bf16.mxu0 0
      %718 = vmatmul.mubr.bf16.gmra.mxu0 %v513
      %v719 = vpop.f32.mrf.mxu0
      %v720 = vadd.f32 0.0, %v719
      %v721 = vpop.f32.mrf.mxu0
      %v722 = vadd.f32 0.0, %v721
      %v723 = vpop.f32.mrf.mxu0
      %v724 = vadd.f32 0.0, %v723
      %v725 = vpop.f32.mrf.mxu0
      %v726 = vadd.f32 0.0, %v725
      %727 = vmatprep.mubr.bf16.mxu0 0
      %728 = vmatmul.mubr.bf16.gmra.mxu0 %v516
      %v729 = vpop.f32.mrf.mxu0
      %v730 = vadd.f32 0.0, %v729
      %v731 = vpop.f32.mrf.mxu0
      %v732 = vadd.f32 0.0, %v731
      %v733 = vpop.f32.mrf.mxu0
      %v734 = vadd.f32 0.0, %v733
      %v735 = vpop.f32.mrf.mxu0
      %v736 = vadd.f32 0.0, %v735
      %737 = vmatprep.mubr.bf16.mxu0 0
      %738 = vmatmul.mubr.bf16.gmra.mxu0 %v519
      %v739 = vpop.f32.mrf.mxu0
      %v740 = vadd.f32 0.0, %v739
      %v741 = vpop.f32.mrf.mxu0
      %v742 = vadd.f32 0.0, %v741
      %v743 = vpop.f32.mrf.mxu0
      %v744 = vadd.f32 0.0, %v743
      %v745 = vpop.f32.mrf.mxu0
      %v746 = vadd.f32 0.0, %v745
      %747 = vmatprep.mubr.bf16.mxu0 0
      %748 = vmatmul.mubr.bf16.gmra.mxu0 %v522
      %v749 = vpop.f32.mrf.mxu0
      %v750 = vadd.f32 0.0, %v749
      %v751 = vpop.f32.mrf.mxu0
      %v752 = vadd.f32 0.0, %v751
      %v753 = vpop.f32.mrf.mxu0
      %v754 = vadd.f32 0.0, %v753
      %v755 = vpop.f32.mrf.mxu0
      %v756 = vadd.f32 0.0, %v755
      %757 = vmatprep.mubr.bf16.mxu0 0
      %758 = vmatmul.mubr.bf16.gmra.mxu0 %v525
      %v759 = vpop.f32.mrf.mxu0
      %v760 = vadd.f32 0.0, %v759
      %v761 = vpop.f32.mrf.mxu0
      %v762 = vadd.f32 0.0, %v761
      %v763 = vpop.f32.mrf.mxu0
      %v764 = vadd.f32 0.0, %v763
      %v765 = vpop.f32.mrf.mxu0
      %v766 = vadd.f32 0.0, %v765
      %767 = vmatprep.mubr.bf16.mxu0 0
      %768 = vmatmul.mubr.bf16.gmra.mxu0 %v528
      %v769 = vpop.f32.mrf.mxu0
      %v770 = vadd.f32 0.0, %v769
      %v771 = vpop.f32.mrf.mxu0
      %v772 = vadd.f32 0.0, %v771
      %v773 = vpop.f32.mrf.mxu0
      %v774 = vadd.f32 0.0, %v773
      %v775 = vpop.f32.mrf.mxu0
      %v776 = vadd.f32 0.0, %v775
      %777 = vmatprep.mubr.bf16.mxu0 0
      %778 = vmatmul.mubr.bf16.gmra.mxu0 %v531
      %v779 = vpop.f32.mrf.mxu0
      %v780 = vadd.f32 0.0, %v779
      %v781 = vpop.f32.mrf.mxu0
      %v782 = vadd.f32 0.0, %v781
      %v783 = vpop.f32.mrf.mxu0
      %v784 = vadd.f32 0.0, %v783
      %v785 = vpop.f32.mrf.mxu0
      %v786 = vadd.f32 0.0, %v785
      %787 = vmatprep.mubr.bf16.mxu0 0
      %788 = vmatmul.mubr.bf16.gmra.mxu0 %v534
      %v789 = vpop.f32.mrf.mxu0
      %v790 = vadd.f32 0.0, %v789
      %v791 = vpop.f32.mrf.mxu0
      %v792 = vadd.f32 0.0, %v791
      %v793 = vpop.f32.mrf.mxu0
      %v794 = vadd.f32 0.0, %v793
      %v795 = vpop.f32.mrf.mxu0
      %v796 = vadd.f32 0.0, %v795
      %797 = vmatprep.mubr.bf16.mxu0 0
      %798 = vmatmul.mubr.bf16.gmra.mxu0 %v537
      %v799 = vpop.f32.mrf.mxu0
      %v800 = vadd.f32 0.0, %v799
      %v801 = vpop.f32.mrf.mxu0
      %v802 = vadd.f32 0.0, %v801
      %v803 = vpop.f32.mrf.mxu0
      %v804 = vadd.f32 0.0, %v803
      %v805 = vpop.f32.mrf.mxu0
      %v806 = vadd.f32 0.0, %v805
      %807 = vmatprep.mubr.bf16.mxu0 0
      %808 = vmatmul.mubr.bf16.gmra.mxu0 %v540
      %v809 = vpop.f32.mrf.mxu0
      %v810 = vadd.f32 0.0, %v809
      %v811 = vpop.f32.mrf.mxu0
      %v812 = vadd.f32 0.0, %v811
      %v813 = vpop.f32.mrf.mxu0
      %v814 = vadd.f32 0.0, %v813
      %v815 = vpop.f32.mrf.mxu0
      %v816 = vadd.f32 0.0, %v815
      %817 = vmatprep.mubr.bf16.mxu0 0
      %818 = vmatmul.mubr.bf16.gmra.mxu0 %v543
      %v819 = vpop.f32.mrf.mxu0
      %v820 = vadd.f32 0.0, %v819
      %v821 = vpop.f32.mrf.mxu0
      %v822 = vadd.f32 0.0, %v821
      %v823 = vpop.f32.mrf.mxu0
      %v824 = vadd.f32 0.0, %v823
      %v825 = vpop.f32.mrf.mxu0
      %v826 = vadd.f32 0.0, %v825
      %827 = vmatprep.mubr.bf16.mxu0 0
      %828 = vmatmul.mubr.bf16.gmra.mxu0 %v546
      %v829 = vpop.f32.mrf.mxu0
      %v830 = vadd.f32 0.0, %v829
      %v831 = vpop.f32.mrf.mxu0
      %v832 = vadd.f32 0.0, %v831
      %v833 = vpop.f32.mrf.mxu0
      %v834 = vadd.f32 0.0, %v833
      %v835 = vpop.f32.mrf.mxu0
      %v836 = vadd.f32 0.0, %v835
      %837 = vmatprep.mubr.bf16.mxu0 0
      %838 = vmatmul.mubr.bf16.gmra.mxu0 %v549
      %v839 = vpop.f32.mrf.mxu0
      %v840 = vadd.f32 0.0, %v839
      %v841 = vpop.f32.mrf.mxu0
      %v842 = vadd.f32 0.0, %v841
      %v843 = vpop.f32.mrf.mxu0
      %v844 = vadd.f32 0.0, %v843
      %v845 = vpop.f32.mrf.mxu0
      %v846 = vadd.f32 0.0, %v845
      %847 = vmatprep.mubr.bf16.mxu0 0
      %848 = vmatmul.mubr.bf16.gmra.mxu0 %v552
      %v849 = vpop.f32.mrf.mxu0
      %v850 = vadd.f32 0.0, %v849
      %v851 = vpop.f32.mrf.mxu0
      %v852 = vadd.f32 0.0, %v851
      %v853 = vpop.f32.mrf.mxu0
      %v854 = vadd.f32 0.0, %v853
      %v855 = vpop.f32.mrf.mxu0
      %v856 = vadd.f32 0.0, %v855
      %857 = vmatprep.mubr.bf16.mxu0 0
      %858 = vmatmul.mubr.bf16.gmra.mxu0 %v555
      %v859 = vpop.f32.mrf.mxu0
      %v860 = vadd.f32 0.0, %v859
      %v861 = vpop.f32.mrf.mxu0
      %v862 = vadd.f32 0.0, %v861
      %v863 = vpop.f32.mrf.mxu0
      %v864 = vadd.f32 0.0, %v863
      %v865 = vpop.f32.mrf.mxu0
      %v866 = vadd.f32 0.0, %v865
      %867 = vmatprep.mubr.bf16.mxu0 0
      %868 = vmatmul.mubr.bf16.gmra.mxu0 %v558
      %v869 = vpop.f32.mrf.mxu0
      %v870 = vadd.f32 0.0, %v869
      %v871 = vpop.f32.mrf.mxu0
      %v872 = vadd.f32 0.0, %v871
      %v873 = vpop.f32.mrf.mxu0
      %v874 = vadd.f32 0.0, %v873
      %v875 = vpop.f32.mrf.mxu0
      %v876 = vadd.f32 0.0, %v875
      %877 = vmatprep.mubr.bf16.mxu0 0
      %878 = vmatmul.mubr.bf16.gmra.mxu0 %v561
      %v879 = vpop.f32.mrf.mxu0
      %v880 = vadd.f32 0.0, %v879
      %v881 = vpop.f32.mrf.mxu0
      %v882 = vadd.f32 0.0, %v881
      %v883 = vpop.f32.mrf.mxu0
      %v884 = vadd.f32 0.0, %v883
      %v885 = vpop.f32.mrf.mxu0
      %v886 = vadd.f32 0.0, %v885
      %887 = vmatprep.mubr.bf16.mxu0 0
      %888 = vmatmul.mubr.bf16.gmra.mxu0 %v564
      %v889 = vpop.f32.mrf.mxu0
      %v890 = vadd.f32 0.0, %v889
      %v891 = vpop.f32.mrf.mxu0
      %v892 = vadd.f32 0.0, %v891
      %v893 = vpop.f32.mrf.mxu0
      %v894 = vadd.f32 0.0, %v893
      %v895 = vpop.f32.mrf.mxu0
      %v896 = vadd.f32 0.0, %v895
      %897 = vmatprep.mubr.bf16.mxu0 0
      %898 = vmatmul.mubr.bf16.gmra.mxu0 %v567
      %v899 = vpop.f32.mrf.mxu0
      %v900 = vadd.f32 0.0, %v899
      %v901 = vpop.f32.mrf.mxu0
      %v902 = vadd.f32 0.0, %v901
      %v903 = vpop.f32.mrf.mxu0
      %v904 = vadd.f32 0.0, %v903
      %v905 = vpop.f32.mrf.mxu0
      %v906 = vadd.f32 0.0, %v905
      %907 = vmatprep.mubr.bf16.mxu0 0
      %908 = vmatmul.mubr.bf16.gmra.mxu0 %v570
      %v909 = vpop.f32.mrf.mxu0
      %v910 = vadd.f32 0.0, %v909
      %v911 = vpop.f32.mrf.mxu0
      %v912 = vadd.f32 0.0, %v911
      %v913 = vpop.f32.mrf.mxu0
      %v914 = vadd.f32 0.0, %v913
      %v915 = vpop.f32.mrf.mxu0
      %v916 = vadd.f32 0.0, %v915
      %917 = vmatprep.mubr.bf16.mxu0 0
      %918 = vmatmul.mubr.bf16.gmra.mxu0 %v573
      %v919 = vpop.f32.mrf.mxu0
      %v920 = vadd.f32 0.0, %v919
      %v921 = vpop.f32.mrf.mxu0
      %v922 = vadd.f32 0.0, %v921
      %v923 = vpop.f32.mrf.mxu0
      %v924 = vadd.f32 0.0, %v923
      %v925 = vpop.f32.mrf.mxu0
      %v926 = vadd.f32 0.0, %v925
      %927 = vmatprep.mubr.bf16.mxu0 0
      %928 = vmatmul.mubr.bf16.gmra.mxu0 %v576
      %v929 = vpop.f32.mrf.mxu0
      %v930 = vadd.f32 0.0, %v929
      %v931 = vpop.f32.mrf.mxu0
      %v932 = vadd.f32 0.0, %v931
      %v933 = vpop.f32.mrf.mxu0
      %v934 = vadd.f32 0.0, %v933
      %v935 = vpop.f32.mrf.mxu0
      %v936 = vadd.f32 0.0, %v935
      %937 = vdwg.mxu0
      %v938 = vmul.f32 %v620, 0.2
      %v939 = vmul.f32 %v622, 0.2
      %v940 = vmul.f32 %v624, 0.2
      %v941 = vmul.f32 %v626, 0.2
      %v942 = vmul.f32 %v630, 0.2
      %v943 = vmul.f32 %v632, 0.2
      %v944 = vmul.f32 %v634, 0.2
      %v945 = vmul.f32 %v636, 0.2
      %v946 = vmul.f32 %v640, 0.2
      %v947 = vmul.f32 %v642, 0.2
      %v948 = vmul.f32 %v644, 0.2
      %v949 = vmul.f32 %v646, 0.2
      %v950 = vmul.f32 %v650, 0.2
      %v951 = vmul.f32 %v652, 0.2
      %v952 = vmul.f32 %v654, 0.2
      %v953 = vmul.f32 %v656, 0.2
      %v954 = vmul.f32 %v660, 0.2
      %v955 = vmul.f32 %v662, 0.2
      %v956 = vmul.f32 %v664, 0.2
      %v957 = vmul.f32 %v666, 0.2
      %v958 = vmul.f32 %v670, 0.2
      %v959 = vmul.f32 %v672, 0.2
      %v960 = vmul.f32 %v674, 0.2
      %v961 = vmul.f32 %v676, 0.2
      %v962 = vmul.f32 %v680, 0.2
      %v963 = vmul.f32 %v682, 0.2
      %v964 = vmul.f32 %v684, 0.2
      %v965 = vmul.f32 %v686, 0.2
      %v966 = vmul.f32 %v690, 0.2
      %v967 = vmul.f32 %v692, 0.2
      %v968 = vmul.f32 %v694, 0.2
      %v969 = vmul.f32 %v696, 0.2
      %v970 = vmul.f32 %v700, 0.2
      %v971 = vmul.f32 %v702, 0.2
      %v972 = vmul.f32 %v704, 0.2
      %v973 = vmul.f32 %v706, 0.2
      %v974 = vmul.f32 %v710, 0.2
      %v975 = vmul.f32 %v712, 0.2
      %v976 = vmul.f32 %v714, 0.2
      %v977 = vmul.f32 %v716, 0.2
      %v978 = vmul.f32 %v720, 0.2
      %v979 = vmul.f32 %v722, 0.2
      %v980 = vmul.f32 %v724, 0.2
      %v981 = vmul.f32 %v726, 0.2
      %v982 = vmul.f32 %v730, 0.2
      %v983 = vmul.f32 %v732, 0.2
      %v984 = vmul.f32 %v734, 0.2
      %v985 = vmul.f32 %v736, 0.2
      %v986 = vmul.f32 %v740, 0.2
      %v987 = vmul.f32 %v742, 0.2
      %v988 = vmul.f32 %v744, 0.2
      %v989 = vmul.f32 %v746, 0.2
      %v990 = vmul.f32 %v750, 0.2
      %v991 = vmul.f32 %v752, 0.2
      %v992 = vmul.f32 %v754, 0.2
      %v993 = vmul.f32 %v756, 0.2
      %v994 = vmul.f32 %v760, 0.2
      %v995 = vmul.f32 %v762, 0.2
      %v996 = vmul.f32 %v764, 0.2
      %v997 = vmul.f32 %v766, 0.2
      %v998 = vmul.f32 %v770, 0.2
      %v999 = vmul.f32 %v772, 0.2
      %v1000 = vmul.f32 %v774, 0.2
      %v1001 = vmul.f32 %v776, 0.2
      %v1002 = vmul.f32 %v780, 0.2
      %v1003 = vmul.f32 %v782, 0.2
      %v1004 = vmul.f32 %v784, 0.2
      %v1005 = vmul.f32 %v786, 0.2
      %v1006 = vmul.f32 %v790, 0.2
      %v1007 = vmul.f32 %v792, 0.2
      %v1008 = vmul.f32 %v794, 0.2
      %v1009 = vmul.f32 %v796, 0.2
      %v1010 = vmul.f32 %v800, 0.2
      %v1011 = vmul.f32 %v802, 0.2
      %v1012 = vmul.f32 %v804, 0.2
      %v1013 = vmul.f32 %v806, 0.2
      %v1014 = vmul.f32 %v810, 0.2
      %v1015 = vmul.f32 %v812, 0.2
      %v1016 = vmul.f32 %v814, 0.2
      %v1017 = vmul.f32 %v816, 0.2
      %v1018 = vmul.f32 %v820, 0.2
      %v1019 = vmul.f32 %v822, 0.2
      %v1020 = vmul.f32 %v824, 0.2
      %v1021 = vmul.f32 %v826, 0.2
      %v1022 = vmul.f32 %v830, 0.2
      %v1023 = vmul.f32 %v832, 0.2
      %v1024 = vmul.f32 %v834, 0.2
      %v1025 = vmul.f32 %v836, 0.2
      %v1026 = vmul.f32 %v840, 0.2
      %v1027 = vmul.f32 %v842, 0.2
      %v1028 = vmul.f32 %v844, 0.2
      %v1029 = vmul.f32 %v846, 0.2
      %v1030 = vmul.f32 %v850, 0.2
      %v1031 = vmul.f32 %v852, 0.2
      %v1032 = vmul.f32 %v854, 0.2
      %v1033 = vmul.f32 %v856, 0.2
      %v1034 = vmul.f32 %v860, 0.2
      %v1035 = vmul.f32 %v862, 0.2
      %v1036 = vmul.f32 %v864, 0.2
      %v1037 = vmul.f32 %v866, 0.2
      %v1038 = vmul.f32 %v870, 0.2
      %v1039 = vmul.f32 %v872, 0.2
      %v1040 = vmul.f32 %v874, 0.2
      %v1041 = vmul.f32 %v876, 0.2
      %v1042 = vmul.f32 %v880, 0.2
      %v1043 = vmul.f32 %v882, 0.2
      %v1044 = vmul.f32 %v884, 0.2
      %v1045 = vmul.f32 %v886, 0.2
      %v1046 = vmul.f32 %v890, 0.2
      %v1047 = vmul.f32 %v892, 0.2
      %v1048 = vmul.f32 %v894, 0.2
      %v1049 = vmul.f32 %v896, 0.2
      %v1050 = vmul.f32 %v900, 0.2
      %v1051 = vmul.f32 %v902, 0.2
      %v1052 = vmul.f32 %v904, 0.2
      %v1053 = vmul.f32 %v906, 0.2
      %v1054 = vmul.f32 %v910, 0.2
      %v1055 = vmul.f32 %v912, 0.2
      %v1056 = vmul.f32 %v914, 0.2
      %v1057 = vmul.f32 %v916, 0.2
      %v1058 = vmul.f32 %v920, 0.2
      %v1059 = vmul.f32 %v922, 0.2
      %v1060 = vmul.f32 %v924, 0.2
      %v1061 = vmul.f32 %v926, 0.2
      %v1062 = vmul.f32 %v930, 0.2
      %v1063 = vmul.f32 %v932, 0.2
      %v1064 = vmul.f32 %v934, 0.2
      %v1065 = vmul.f32 %v936, 0.2
      %v1066 = vmax.f32 %v620, %v938
      %v1067 = vmax.f32 %v622, %v939
      %v1068 = vmax.f32 %v624, %v940
      %v1069 = vmax.f32 %v626, %v941
      %v1070 = vmax.f32 %v630, %v942
      %v1071 = vmax.f32 %v632, %v943
      %v1072 = vmax.f32 %v634, %v944
      %v1073 = vmax.f32 %v636, %v945
      %v1074 = vmax.f32 %v640, %v946
      %v1075 = vmax.f32 %v642, %v947
      %v1076 = vmax.f32 %v644, %v948
      %v1077 = vmax.f32 %v646, %v949
      %v1078 = vmax.f32 %v650, %v950
      %v1079 = vmax.f32 %v652, %v951
      %v1080 = vmax.f32 %v654, %v952
      %v1081 = vmax.f32 %v656, %v953
      %v1082 = vmax.f32 %v660, %v954
      %v1083 = vmax.f32 %v662, %v955
      %v1084 = vmax.f32 %v664, %v956
      %v1085 = vmax.f32 %v666, %v957
      %v1086 = vmax.f32 %v670, %v958
      %v1087 = vmax.f32 %v672, %v959
      %v1088 = vmax.f32 %v674, %v960
      %v1089 = vmax.f32 %v676, %v961
      %v1090 = vmax.f32 %v680, %v962
      %v1091 = vmax.f32 %v682, %v963
      %v1092 = vmax.f32 %v684, %v964
      %v1093 = vmax.f32 %v686, %v965
      %v1094 = vmax.f32 %v690, %v966
      %v1095 = vmax.f32 %v692, %v967
      %v1096 = vmax.f32 %v694, %v968
      %v1097 = vmax.f32 %v696, %v969
      %v1098 = vmax.f32 %v700, %v970
      %v1099 = vmax.f32 %v702, %v971
      %v1100 = vmax.f32 %v704, %v972
      %v1101 = vmax.f32 %v706, %v973
      %v1102 = vmax.f32 %v710, %v974
      %v1103 = vmax.f32 %v712, %v975
      %v1104 = vmax.f32 %v714, %v976
      %v1105 = vmax.f32 %v716, %v977
      %v1106 = vmax.f32 %v720, %v978
      %v1107 = vmax.f32 %v722, %v979
      %v1108 = vmax.f32 %v724, %v980
      %v1109 = vmax.f32 %v726, %v981
      %v1110 = vmax.f32 %v730, %v982
      %v1111 = vmax.f32 %v732, %v983
      %v1112 = vmax.f32 %v734, %v984
      %v1113 = vmax.f32 %v736, %v985
      %v1114 = vmax.f32 %v740, %v986
      %v1115 = vmax.f32 %v742, %v987
      %v1116 = vmax.f32 %v744, %v988
      %v1117 = vmax.f32 %v746, %v989
      %v1118 = vmax.f32 %v750, %v990
      %v1119 = vmax.f32 %v752, %v991
      %v1120 = vmax.f32 %v754, %v992
      %v1121 = vmax.f32 %v756, %v993
      %v1122 = vmax.f32 %v760, %v994
      %v1123 = vmax.f32 %v762, %v995
      %v1124 = vmax.f32 %v764, %v996
      %v1125 = vmax.f32 %v766, %v997
      %v1126 = vmax.f32 %v770, %v998
      %v1127 = vmax.f32 %v772, %v999
      %v1128 = vmax.f32 %v774, %v1000
      %v1129 = vmax.f32 %v776, %v1001
      %v1130 = vmax.f32 %v780, %v1002
      %v1131 = vmax.f32 %v782, %v1003
      %v1132 = vmax.f32 %v784, %v1004
      %v1133 = vmax.f32 %v786, %v1005
      %v1134 = vmax.f32 %v790, %v1006
      %v1135 = vmax.f32 %v792, %v1007
      %v1136 = vmax.f32 %v794, %v1008
      %v1137 = vmax.f32 %v796, %v1009
      %v1138 = vmax.f32 %v800, %v1010
      %v1139 = vmax.f32 %v802, %v1011
      %v1140 = vmax.f32 %v804, %v1012
      %v1141 = vmax.f32 %v806, %v1013
      %v1142 = vmax.f32 %v810, %v1014
      %v1143 = vmax.f32 %v812, %v1015
      %v1144 = vmax.f32 %v814, %v1016
      %v1145 = vmax.f32 %v816, %v1017
      %v1146 = vmax.f32 %v820, %v1018
      %v1147 = vmax.f32 %v822, %v1019
      %v1148 = vmax.f32 %v824, %v1020
      %v1149 = vmax.f32 %v826, %v1021
      %v1150 = vmax.f32 %v830, %v1022
      %v1151 = vmax.f32 %v832, %v1023
      %v1152 = vmax.f32 %v834, %v1024
      %v1153 = vmax.f32 %v836, %v1025
      %v1154 = vmax.f32 %v840, %v1026
      %v1155 = vmax.f32 %v842, %v1027
      %v1156 = vmax.f32 %v844, %v1028
      %v1157 = vmax.f32 %v846, %v1029
      %v1158 = vmax.f32 %v850, %v1030
      %v1159 = vmax.f32 %v852, %v1031
      %v1160 = vmax.f32 %v854, %v1032
      %v1161 = vmax.f32 %v856, %v1033
      %v1162 = vmax.f32 %v860, %v1034
      %v1163 = vmax.f32 %v862, %v1035
      %v1164 = vmax.f32 %v864, %v1036
      %v1165 = vmax.f32 %v866, %v1037
      %v1166 = vmax.f32 %v870, %v1038
      %v1167 = vmax.f32 %v872, %v1039
      %v1168 = vmax.f32 %v874, %v1040
      %v1169 = vmax.f32 %v876, %v1041
      %v1170 = vmax.f32 %v880, %v1042
      %v1171 = vmax.f32 %v882, %v1043
      %v1172 = vmax.f32 %v884, %v1044
      %v1173 = vmax.f32 %v886, %v1045
      %v1174 = vmax.f32 %v890, %v1046
      %v1175 = vmax.f32 %v892, %v1047
      %v1176 = vmax.f32 %v894, %v1048
      %v1177 = vmax.f32 %v896, %v1049
      %v1178 = vmax.f32 %v900, %v1050
      %v1179 = vmax.f32 %v902, %v1051
      %v1180 = vmax.f32 %v904, %v1052
      %v1181 = vmax.f32 %v906, %v1053
      %v1182 = vmax.f32 %v910, %v1054
      %v1183 = vmax.f32 %v912, %v1055
      %v1184 = vmax.f32 %v914, %v1056
      %v1185 = vmax.f32 %v916, %v1057
      %v1186 = vmax.f32 %v920, %v1058
      %v1187 = vmax.f32 %v922, %v1059
      %v1188 = vmax.f32 %v924, %v1060
      %v1189 = vmax.f32 %v926, %v1061
      %v1190 = vmax.f32 %v930, %v1062
      %v1191 = vmax.f32 %v932, %v1063
      %v1192 = vmax.f32 %v934, %v1064
      %v1193 = vmax.f32 %v936, %v1065
      %v1194 = vpack.c.bf16 %v1068, %v1066
      %v1195 = vpack.c.bf16 %v1069, %v1067
      %v1196 = vpack.c.bf16 %v1072, %v1070
      %v1197 = vpack.c.bf16 %v1073, %v1071
      %v1198 = vpack.c.bf16 %v1076, %v1074
      %v1199 = vpack.c.bf16 %v1077, %v1075
      %v1200 = vpack.c.bf16 %v1080, %v1078
      %v1201 = vpack.c.bf16 %v1081, %v1079
      %v1202 = vpack.c.bf16 %v1084, %v1082
      %v1203 = vpack.c.bf16 %v1085, %v1083
      %v1204 = vpack.c.bf16 %v1088, %v1086
      %v1205 = vpack.c.bf16 %v1089, %v1087
      %v1206 = vpack.c.bf16 %v1092, %v1090
      %v1207 = vpack.c.bf16 %v1093, %v1091
      %v1208 = vpack.c.bf16 %v1096, %v1094
      %v1209 = vpack.c.bf16 %v1097, %v1095
      %v1210 = vpack.c.bf16 %v1100, %v1098
      %v1211 = vpack.c.bf16 %v1101, %v1099
      %v1212 = vpack.c.bf16 %v1104, %v1102
      %v1213 = vpack.c.bf16 %v1105, %v1103
      %v1214 = vpack.c.bf16 %v1108, %v1106
      %v1215 = vpack.c.bf16 %v1109, %v1107
      %v1216 = vpack.c.bf16 %v1112, %v1110
      %v1217 = vpack.c.bf16 %v1113, %v1111
      %v1218 = vpack.c.bf16 %v1116, %v1114
      %v1219 = vpack.c.bf16 %v1117, %v1115
      %v1220 = vpack.c.bf16 %v1120, %v1118
      %v1221 = vpack.c.bf16 %v1121, %v1119
      %v1222 = vpack.c.bf16 %v1124, %v1122
      %v1223 = vpack.c.bf16 %v1125, %v1123
      %v1224 = vpack.c.bf16 %v1128, %v1126
      %v1225 = vpack.c.bf16 %v1129, %v1127
      %v1226 = vpack.c.bf16 %v1132, %v1130
      %v1227 = vpack.c.bf16 %v1133, %v1131
      %v1228 = vpack.c.bf16 %v1136, %v1134
      %v1229 = vpack.c.bf16 %v1137, %v1135
      %v1230 = vpack.c.bf16 %v1140, %v1138
      %v1231 = vpack.c.bf16 %v1141, %v1139
      %v1232 = vpack.c.bf16 %v1144, %v1142
      %v1233 = vpack.c.bf16 %v1145, %v1143
      %v1234 = vpack.c.bf16 %v1148, %v1146
      %v1235 = vpack.c.bf16 %v1149, %v1147
      %v1236 = vpack.c.bf16 %v1152, %v1150
      %v1237 = vpack.c.bf16 %v1153, %v1151
      %v1238 = vpack.c.bf16 %v1156, %v1154
      %v1239 = vpack.c.bf16 %v1157, %v1155
      %v1240 = vpack.c.bf16 %v1160, %v1158
      %v1241 = vpack.c.bf16 %v1161, %v1159
      %v1242 = vpack.c.bf16 %v1164, %v1162
      %v1243 = vpack.c.bf16 %v1165, %v1163
      %v1244 = vpack.c.bf16 %v1168, %v1166
      %v1245 = vpack.c.bf16 %v1169, %v1167
      %v1246 = vpack.c.bf16 %v1172, %v1170
      %v1247 = vpack.c.bf16 %v1173, %v1171
      %v1248 = vpack.c.bf16 %v1176, %v1174
      %v1249 = vpack.c.bf16 %v1177, %v1175
      %v1250 = vpack.c.bf16 %v1180, %v1178
      %v1251 = vpack.c.bf16 %v1181, %v1179
      %v1252 = vpack.c.bf16 %v1184, %v1182
      %v1253 = vpack.c.bf16 %v1185, %v1183
      %v1254 = vpack.c.bf16 %v1188, %v1186
      %v1255 = vpack.c.bf16 %v1189, %v1187
      %v1256 = vpack.c.bf16 %v1192, %v1190
      %v1257 = vpack.c.bf16 %v1193, %v1191
      %v1258 = vld [vmem:[%s2] sm:$0xf]
      %v1259 = vld [vmem:[%s2 + $0x4] sm:$0xf]
      %v1260 = vld [vmem:[%s2 + $0x8] sm:$0xf]
      %v1261 = vld [vmem:[%s2 + $0xc] sm:$0xf]
      %v1262 = vld [vmem:[%s2 + $0x10] sm:$0xf]
      %v1263 = vld [vmem:[%s2 + $0x14] sm:$0xf]
      %v1264 = vld [vmem:[%s2 + $0x18] sm:$0xf]
      %v1265 = vld [vmem:[%s2 + $0x1c] sm:$0xf]
      %v1266 = vld [vmem:[%s2 + $0x20] sm:$0xf]
      %v1267 = vld [vmem:[%s2 + $0x24] sm:$0xf]
      %v1268 = vld [vmem:[%s2 + $0x28] sm:$0xf]
      %v1269 = vld [vmem:[%s2 + $0x2c] sm:$0xf]
      %v1270 = vld [vmem:[%s2 + $0x30] sm:$0xf]
      %v1271 = vld [vmem:[%s2 + $0x34] sm:$0xf]
      %v1272 = vld [vmem:[%s2 + $0x38] sm:$0xf]
      %v1273 = vld [vmem:[%s2 + $0x3c] sm:$0xf]
      %v1274 = vld [vmem:[%s2 + $0x40] sm:$0xf]
      %v1275 = vld [vmem:[%s2 + $0x44] sm:$0xf]
      %v1276 = vld [vmem:[%s2 + $0x48] sm:$0xf]
      %v1277 = vld [vmem:[%s2 + $0x4c] sm:$0xf]
      %v1278 = vld [vmem:[%s2 + $0x50] sm:$0xf]
      %v1279 = vld [vmem:[%s2 + $0x54] sm:$0xf]
      %v1280 = vld [vmem:[%s2 + $0x58] sm:$0xf]
      %v1281 = vld [vmem:[%s2 + $0x5c] sm:$0xf]
      %v1298 = vunpack.c.l.b16 %v1266
      %v1299 = vunpack.c.l.b16 %v1267
      %v1300 = vunpack.c.l.b16 %v1268
      %v1301 = vunpack.c.l.b16 %v1269
      %v1302 = vunpack.c.l.b16 %v1270
      %v1303 = vunpack.c.l.b16 %v1271
      %v1304 = vunpack.c.l.b16 %v1272
      %v1305 = vunpack.c.l.b16 %v1273
      %v1306 = vunpack.c.l.b16 %v1274
      %v1307 = vunpack.c.l.b16 %v1275
      %v1308 = vunpack.c.l.b16 %v1276
      %v1309 = vunpack.c.l.b16 %v1277
      %v1310 = vunpack.c.l.b16 %v1278
      %v1311 = vunpack.c.l.b16 %v1279
      %v1312 = vunpack.c.l.b16 %v1280
      %v1313 = vunpack.c.l.b16 %v1281
      %v1314 = vpack.c.b16 %v1299, %v1298
      %v1315 = vpack.c.b16 %v1301, %v1300
      %v1316 = vpack.c.b16 %v1303, %v1302
      %v1317 = vpack.c.b16 %v1305, %v1304
      %v1318 = vpack.c.b16 %v1307, %v1306
      %v1319 = vpack.c.b16 %v1309, %v1308
      %v1320 = vpack.c.b16 %v1311, %v1310
      %v1321 = vpack.c.b16 %v1313, %v1312
      %1330 = vmatprep.subr.bf16.mxu0 0
      %1331 = vmatpush1.bf16.msra.mxu0 %v1321
      %1332 = vmatprep.subr.bf16.mxu0 0
      %1333 = vmatpush1.bf16.msra.mxu0 %v1320
      %1334 = vmatprep.subr.bf16.mxu0 0
      %1335 = vmatpush1.bf16.msra.mxu0 %v1319
      %1336 = vmatprep.subr.bf16.mxu0 0
      %1337 = vmatpush1.bf16.msra.mxu0 %v1318
      %1338 = vmatprep.subr.bf16.mxu0 0
      %1339 = vmatpush1.bf16.msra.mxu0 %v1317
      %1340 = vmatprep.subr.bf16.mxu0 0
      %1341 = vmatpush1.bf16.msra.mxu0 %v1316
      %1342 = vmatprep.subr.bf16.mxu0 0
      %1343 = vmatpush1.bf16.msra.mxu0 %v1315
      %1344 = vmatprep.subr.bf16.mxu0 0
      %1345 = vmatpush1.bf16.msra.mxu0 %v1314
      %1346 = vmatprep.subr.bf16.mxu0 0
      %1347 = vmatpush2.bf16.msra.mxu0 0
      %1348 = vmatprep.subr.bf16.mxu0 0
      %1349 = vmatpush2.bf16.msra.mxu0 0
      %1350 = vmatprep.subr.bf16.mxu0 0
      %1351 = vmatpush2.bf16.msra.mxu0 0
      %1352 = vmatprep.subr.bf16.mxu0 0
      %1353 = vmatpush2.bf16.msra.mxu0 0
      %1354 = vmatprep.subr.bf16.mxu0 0
      %1355 = vmatpush2.bf16.msra.mxu0 0
      %1356 = vmatprep.subr.bf16.mxu0 0
      %1357 = vmatpush2.bf16.msra.mxu0 0
      %1358 = vmatprep.subr.bf16.mxu0 0
      %1359 = vmatpush2.bf16.msra.mxu0 0
      %1360 = vmatprep.subr.bf16.mxu0 0
      %1361 = vmatpush2.bf16.msra.mxu0 0
      %1362 = vmatprep.mubr.bf16.mxu0 0
      %1363 = vmatmul.mubr.bf16.gmra.mxu0 %v1194
      %v1364 = vpop.f32.mrf.mxu0
      %v1365 = vadd.f32 0.0, %v1364
      %v1366 = vpop.f32.mrf.mxu0
      %v1367 = vpop.f32.mrf.mxu0
      %v1368 = vadd.f32 0.0, %v1367
      %v1369 = vpop.f32.mrf.mxu0
      %1370 = vmatprep.mubr.bf16.mxu0 0
      %1371 = vmatmul.mubr.bf16.gmra.mxu0 %v1196
      %v1372 = vpop.f32.mrf.mxu0
      %v1373 = vadd.f32 0.0, %v1372
      %v1374 = vpop.f32.mrf.mxu0
      %v1375 = vpop.f32.mrf.mxu0
      %v1376 = vadd.f32 0.0, %v1375
      %v1377 = vpop.f32.mrf.mxu0
      %1378 = vmatprep.mubr.bf16.mxu0 0
      %1379 = vmatmul.mubr.bf16.gmra.mxu0 %v1198
      %v1380 = vpop.f32.mrf.mxu0
      %v1381 = vadd.f32 0.0, %v1380
      %v1382 = vpop.f32.mrf.mxu0
      %v1383 = vpop.f32.mrf.mxu0
      %v1384 = vadd.f32 0.0, %v1383
      %v1385 = vpop.f32.mrf.mxu0
      %1386 = vmatprep.mubr.bf16.mxu0 0
      %1387 = vmatmul.mubr.bf16.gmra.mxu0 %v1200
      %v1388 = vpop.f32.mrf.mxu0
      %v1389 = vadd.f32 0.0, %v1388
      %v1390 = vpop.f32.mrf.mxu0
      %v1391 = vpop.f32.mrf.mxu0
      %v1392 = vadd.f32 0.0, %v1391
      %v1393 = vpop.f32.mrf.mxu0
      %1394 = vmatprep.mubr.bf16.mxu0 0
      %1395 = vmatmul.mubr.bf16.gmra.mxu0 %v1202
      %v1396 = vpop.f32.mrf.mxu0
      %v1397 = vadd.f32 0.0, %v1396
      %v1398 = vpop.f32.mrf.mxu0
      %v1399 = vpop.f32.mrf.mxu0
      %v1400 = vadd.f32 0.0, %v1399
      %v1401 = vpop.f32.mrf.mxu0
      %1402 = vmatprep.mubr.bf16.mxu0 0
      %1403 = vmatmul.mubr.bf16.gmra.mxu0 %v1204
      %v1404 = vpop.f32.mrf.mxu0
      %v1405 = vadd.f32 0.0, %v1404
      %v1406 = vpop.f32.mrf.mxu0
      %v1407 = vpop.f32.mrf.mxu0
      %v1408 = vadd.f32 0.0, %v1407
      %v1409 = vpop.f32.mrf.mxu0
      %1410 = vmatprep.mubr.bf16.mxu0 0
      %1411 = vmatmul.mubr.bf16.gmra.mxu0 %v1206
      %v1412 = vpop.f32.mrf.mxu0
      %v1413 = vadd.f32 0.0, %v1412
      %v1414 = vpop.f32.mrf.mxu0
      %v1415 = vpop.f32.mrf.mxu0
      %v1416 = vadd.f32 0.0, %v1415
      %v1417 = vpop.f32.mrf.mxu0
      %1418 = vmatprep.mubr.bf16.mxu0 0
      %1419 = vmatmul.mubr.bf16.gmra.mxu0 %v1208
      %v1420 = vpop.f32.mrf.mxu0
      %v1421 = vadd.f32 0.0, %v1420
      %v1422 = vpop.f32.mrf.mxu0
      %v1423 = vpop.f32.mrf.mxu0
      %v1424 = vadd.f32 0.0, %v1423
      %v1425 = vpop.f32.mrf.mxu0
      %1426 = vmatprep.mubr.bf16.mxu0 0
      %1427 = vmatmul.mubr.bf16.gmra.mxu0 %v1210
      %v1428 = vpop.f32.mrf.mxu0
      %v1429 = vadd.f32 0.0, %v1428
      %v1430 = vpop.f32.mrf.mxu0
      %v1431 = vpop.f32.mrf.mxu0
      %v1432 = vadd.f32 0.0, %v1431
      %v1433 = vpop.f32.mrf.mxu0
      %1434 = vmatprep.mubr.bf16.mxu0 0
      %1435 = vmatmul.mubr.bf16.gmra.mxu0 %v1212
      %v1436 = vpop.f32.mrf.mxu0
      %v1437 = vadd.f32 0.0, %v1436
      %v1438 = vpop.f32.mrf.mxu0
      %v1439 = vpop.f32.mrf.mxu0
      %v1440 = vadd.f32 0.0, %v1439
      %v1441 = vpop.f32.mrf.mxu0
      %1442 = vmatprep.mubr.bf16.mxu0 0
      %1443 = vmatmul.mubr.bf16.gmra.mxu0 %v1214
      %v1444 = vpop.f32.mrf.mxu0
      %v1445 = vadd.f32 0.0, %v1444
      %v1446 = vpop.f32.mrf.mxu0
      %v1447 = vpop.f32.mrf.mxu0
      %v1448 = vadd.f32 0.0, %v1447
      %v1449 = vpop.f32.mrf.mxu0
      %1450 = vmatprep.mubr.bf16.mxu0 0
      %1451 = vmatmul.mubr.bf16.gmra.mxu0 %v1216
      %v1452 = vpop.f32.mrf.mxu0
      %v1453 = vadd.f32 0.0, %v1452
      %v1454 = vpop.f32.mrf.mxu0
      %v1455 = vpop.f32.mrf.mxu0
      %v1456 = vadd.f32 0.0, %v1455
      %v1457 = vpop.f32.mrf.mxu0
      %1458 = vmatprep.mubr.bf16.mxu0 0
      %1459 = vmatmul.mubr.bf16.gmra.mxu0 %v1218
      %v1460 = vpop.f32.mrf.mxu0
      %v1461 = vadd.f32 0.0, %v1460
      %v1462 = vpop.f32.mrf.mxu0
      %v1463 = vpop.f32.mrf.mxu0
      %v1464 = vadd.f32 0.0, %v1463
      %v1465 = vpop.f32.mrf.mxu0
      %1466 = vmatprep.mubr.bf16.mxu0 0
      %1467 = vmatmul.mubr.bf16.gmra.mxu0 %v1220
      %v1468 = vpop.f32.mrf.mxu0
      %v1469 = vadd.f32 0.0, %v1468
      %v1470 = vpop.f32.mrf.mxu0
      %v1471 = vpop.f32.mrf.mxu0
      %v1472 = vadd.f32 0.0, %v1471
      %v1473 = vpop.f32.mrf.mxu0
      %1474 = vmatprep.mubr.bf16.mxu0 0
      %1475 = vmatmul.mubr.bf16.gmra.mxu0 %v1222
      %v1476 = vpop.f32.mrf.mxu0
      %v1477 = vadd.f32 0.0, %v1476
      %v1478 = vpop.f32.mrf.mxu0
      %v1479 = vpop.f32.mrf.mxu0
      %v1480 = vadd.f32 0.0, %v1479
      %v1481 = vpop.f32.mrf.mxu0
      %1482 = vmatprep.mubr.bf16.mxu0 0
      %1483 = vmatmul.mubr.bf16.gmra.mxu0 %v1224
      %v1484 = vpop.f32.mrf.mxu0
      %v1485 = vadd.f32 0.0, %v1484
      %v1486 = vpop.f32.mrf.mxu0
      %v1487 = vpop.f32.mrf.mxu0
      %v1488 = vadd.f32 0.0, %v1487
      %v1489 = vpop.f32.mrf.mxu0
      %1490 = vmatprep.mubr.bf16.mxu0 0
      %1491 = vmatmul.mubr.bf16.gmra.mxu0 %v1226
      %v1492 = vpop.f32.mrf.mxu0
      %v1493 = vadd.f32 0.0, %v1492
      %v1494 = vpop.f32.mrf.mxu0
      %v1495 = vpop.f32.mrf.mxu0
      %v1496 = vadd.f32 0.0, %v1495
      %v1497 = vpop.f32.mrf.mxu0
      %1498 = vmatprep.mubr.bf16.mxu0 0
      %1499 = vmatmul.mubr.bf16.gmra.mxu0 %v1228
      %v1500 = vpop.f32.mrf.mxu0
      %v1501 = vadd.f32 0.0, %v1500
      %v1502 = vpop.f32.mrf.mxu0
      %v1503 = vpop.f32.mrf.mxu0
      %v1504 = vadd.f32 0.0, %v1503
      %v1505 = vpop.f32.mrf.mxu0
      %1506 = vmatprep.mubr.bf16.mxu0 0
      %1507 = vmatmul.mubr.bf16.gmra.mxu0 %v1230
      %v1508 = vpop.f32.mrf.mxu0
      %v1509 = vadd.f32 0.0, %v1508
      %v1510 = vpop.f32.mrf.mxu0
      %v1511 = vpop.f32.mrf.mxu0
      %v1512 = vadd.f32 0.0, %v1511
      %v1513 = vpop.f32.mrf.mxu0
      %1514 = vmatprep.mubr.bf16.mxu0 0
      %1515 = vmatmul.mubr.bf16.gmra.mxu0 %v1232
      %v1516 = vpop.f32.mrf.mxu0
      %v1517 = vadd.f32 0.0, %v1516
      %v1518 = vpop.f32.mrf.mxu0
      %v1519 = vpop.f32.mrf.mxu0
      %v1520 = vadd.f32 0.0, %v1519
      %v1521 = vpop.f32.mrf.mxu0
      %1522 = vmatprep.mubr.bf16.mxu0 0
      %1523 = vmatmul.mubr.bf16.gmra.mxu0 %v1234
      %v1524 = vpop.f32.mrf.mxu0
      %v1525 = vadd.f32 0.0, %v1524
      %v1526 = vpop.f32.mrf.mxu0
      %v1527 = vpop.f32.mrf.mxu0
      %v1528 = vadd.f32 0.0, %v1527
      %v1529 = vpop.f32.mrf.mxu0
      %1530 = vmatprep.mubr.bf16.mxu0 0
      %1531 = vmatmul.mubr.bf16.gmra.mxu0 %v1236
      %v1532 = vpop.f32.mrf.mxu0
      %v1533 = vadd.f32 0.0, %v1532
      %v1534 = vpop.f32.mrf.mxu0
      %v1535 = vpop.f32.mrf.mxu0
      %v1536 = vadd.f32 0.0, %v1535
      %v1537 = vpop.f32.mrf.mxu0
      %1538 = vmatprep.mubr.bf16.mxu0 0
      %1539 = vmatmul.mubr.bf16.gmra.mxu0 %v1238
      %v1540 = vpop.f32.mrf.mxu0
      %v1541 = vadd.f32 0.0, %v1540
      %v1542 = vpop.f32.mrf.mxu0
      %v1543 = vpop.f32.mrf.mxu0
      %v1544 = vadd.f32 0.0, %v1543
      %v1545 = vpop.f32.mrf.mxu0
      %1546 = vmatprep.mubr.bf16.mxu0 0
      %1547 = vmatmul.mubr.bf16.gmra.mxu0 %v1240
      %v1548 = vpop.f32.mrf.mxu0
      %v1549 = vadd.f32 0.0, %v1548
      %v1550 = vpop.f32.mrf.mxu0
      %v1551 = vpop.f32.mrf.mxu0
      %v1552 = vadd.f32 0.0, %v1551
      %v1553 = vpop.f32.mrf.mxu0
      %1554 = vmatprep.mubr.bf16.mxu0 0
      %1555 = vmatmul.mubr.bf16.gmra.mxu0 %v1242
      %v1556 = vpop.f32.mrf.mxu0
      %v1557 = vadd.f32 0.0, %v1556
      %v1558 = vpop.f32.mrf.mxu0
      %v1559 = vpop.f32.mrf.mxu0
      %v1560 = vadd.f32 0.0, %v1559
      %v1561 = vpop.f32.mrf.mxu0
      %1562 = vmatprep.mubr.bf16.mxu0 0
      %1563 = vmatmul.mubr.bf16.gmra.mxu0 %v1244
      %v1564 = vpop.f32.mrf.mxu0
      %v1565 = vadd.f32 0.0, %v1564
      %v1566 = vpop.f32.mrf.mxu0
      %v1567 = vpop.f32.mrf.mxu0
      %v1568 = vadd.f32 0.0, %v1567
      %v1569 = vpop.f32.mrf.mxu0
      %1570 = vmatprep.mubr.bf16.mxu0 0
      %1571 = vmatmul.mubr.bf16.gmra.mxu0 %v1246
      %v1572 = vpop.f32.mrf.mxu0
      %v1573 = vadd.f32 0.0, %v1572
      %v1574 = vpop.f32.mrf.mxu0
      %v1575 = vpop.f32.mrf.mxu0
      %v1576 = vadd.f32 0.0, %v1575
      %v1577 = vpop.f32.mrf.mxu0
      %1578 = vmatprep.mubr.bf16.mxu0 0
      %1579 = vmatmul.mubr.bf16.gmra.mxu0 %v1248
      %v1580 = vpop.f32.mrf.mxu0
      %v1581 = vadd.f32 0.0, %v1580
      %v1582 = vpop.f32.mrf.mxu0
      %v1583 = vpop.f32.mrf.mxu0
      %v1584 = vadd.f32 0.0, %v1583
      %v1585 = vpop.f32.mrf.mxu0
      %1586 = vmatprep.mubr.bf16.mxu0 0
      %1587 = vmatmul.mubr.bf16.gmra.mxu0 %v1250
      %v1588 = vpop.f32.mrf.mxu0
      %v1589 = vadd.f32 0.0, %v1588
      %v1590 = vpop.f32.mrf.mxu0
      %v1591 = vpop.f32.mrf.mxu0
      %v1592 = vadd.f32 0.0, %v1591
      %v1593 = vpop.f32.mrf.mxu0
      %1594 = vmatprep.mubr.bf16.mxu0 0
      %1595 = vmatmul.mubr.bf16.gmra.mxu0 %v1252
      %v1596 = vpop.f32.mrf.mxu0
      %v1597 = vadd.f32 0.0, %v1596
      %v1598 = vpop.f32.mrf.mxu0
      %v1599 = vpop.f32.mrf.mxu0
      %v1600 = vadd.f32 0.0, %v1599
      %v1601 = vpop.f32.mrf.mxu0
      %1602 = vmatprep.mubr.bf16.mxu0 0
      %1603 = vmatmul.mubr.bf16.gmra.mxu0 %v1254
      %v1604 = vpop.f32.mrf.mxu0
      %v1605 = vadd.f32 0.0, %v1604
      %v1606 = vpop.f32.mrf.mxu0
      %v1607 = vpop.f32.mrf.mxu0
      %v1608 = vadd.f32 0.0, %v1607
      %v1609 = vpop.f32.mrf.mxu0
      %1610 = vmatprep.mubr.bf16.mxu0 0
      %1611 = vmatmul.mubr.bf16.gmra.mxu0 %v1256
      %v1612 = vpop.f32.mrf.mxu0
      %v1613 = vadd.f32 0.0, %v1612
      %v1614 = vpop.f32.mrf.mxu0
      %v1615 = vpop.f32.mrf.mxu0
      %v1616 = vadd.f32 0.0, %v1615
      %v1617 = vpop.f32.mrf.mxu0
      %1618 = vdwg.mxu0
      %v1619 = vrot.slane %v1365, 1
      %v1620 = vrot.slane %v1368, 1
      %v1621 = vrot.slane %v1373, 1
      %v1622 = vrot.slane %v1376, 1
      %v1623 = vrot.slane %v1381, 1
      %v1624 = vrot.slane %v1384, 1
      %v1625 = vrot.slane %v1389, 1
      %v1626 = vrot.slane %v1392, 1
      %v1627 = vrot.slane %v1397, 1
      %v1628 = vrot.slane %v1400, 1
      %v1629 = vrot.slane %v1405, 1
      %v1630 = vrot.slane %v1408, 1
      %v1631 = vrot.slane %v1413, 1
      %v1632 = vrot.slane %v1416, 1
      %v1633 = vrot.slane %v1421, 1
      %v1634 = vrot.slane %v1424, 1
      %v1635 = vrot.slane %v1429, 1
      %v1636 = vrot.slane %v1432, 1
      %v1637 = vrot.slane %v1437, 1
      %v1638 = vrot.slane %v1440, 1
      %v1639 = vrot.slane %v1445, 1
      %v1640 = vrot.slane %v1448, 1
      %v1641 = vrot.slane %v1453, 1
      %v1642 = vrot.slane %v1456, 1
      %v1643 = vrot.slane %v1461, 1
      %v1644 = vrot.slane %v1464, 1
      %v1645 = vrot.slane %v1469, 1
      %v1646 = vrot.slane %v1472, 1
      %v1647 = vrot.slane %v1477, 1
      %v1648 = vrot.slane %v1480, 1
      %v1649 = vrot.slane %v1485, 1
      %v1650 = vrot.slane %v1488, 1
      %v1651 = vrot.slane %v1493, 1
      %v1652 = vrot.slane %v1496, 1
      %v1653 = vrot.slane %v1501, 1
      %v1654 = vrot.slane %v1504, 1
      %v1655 = vrot.slane %v1509, 1
      %v1656 = vrot.slane %v1512, 1
      %v1657 = vrot.slane %v1517, 1
      %v1658 = vrot.slane %v1520, 1
      %v1659 = vrot.slane %v1525, 1
      %v1660 = vrot.slane %v1528, 1
      %v1661 = vrot.slane %v1533, 1
      %v1662 = vrot.slane %v1536, 1
      %v1663 = vrot.slane %v1541, 1
      %v1664 = vrot.slane %v1544, 1
      %v1665 = vrot.slane %v1549, 1
      %v1666 = vrot.slane %v1552, 1
      %v1667 = vrot.slane %v1557, 1
      %v1668 = vrot.slane %v1560, 1
      %v1669 = vrot.slane %v1565, 1
      %v1670 = vrot.slane %v1568, 1
      %v1671 = vrot.slane %v1573, 1
      %v1672 = vrot.slane %v1576, 1
      %v1673 = vrot.slane %v1581, 1
      %v1674 = vrot.slane %v1584, 1
      %v1675 = vrot.slane %v1589, 1
      %v1676 = vrot.slane %v1592, 1
      %v1677 = vrot.slane %v1597, 1
      %v1678 = vrot.slane %v1600, 1
      %v1679 = vrot.slane %v1605, 1
      %v1680 = vrot.slane %v1608, 1
      %v1681 = vrot.slane %v1613, 1
      %v1682 = vrot.slane %v1616, 1
      %v1683 = vlaneseq
      %v1684 = vshrl.u32 %v1683, 7
      %vm1685 = vcmp.lt.s32.totalorder %v1684, 7
      %v1686 = vsel %vm1685, %v1681, %v1682
      %v1687 = vsel %vm1685, %v1680, %v1681
      %v1688 = vsel %vm1685, %v1679, %v1680
      %v1689 = vsel %vm1685, %v1678, %v1679
      %v1690 = vsel %vm1685, %v1677, %v1678
      %v1691 = vsel %vm1685, %v1676, %v1677
      %v1692 = vsel %vm1685, %v1675, %v1676
      %v1693 = vsel %vm1685, %v1674, %v1675
      %v1694 = vsel %vm1685, %v1673, %v1674
      %v1695 = vsel %vm1685, %v1672, %v1673
      %v1696 = vsel %vm1685, %v1671, %v1672
      %v1697 = vsel %vm1685, %v1670, %v1671
      %v1698 = vsel %vm1685, %v1669, %v1670
      %v1699 = vsel %vm1685, %v1668, %v1669
      %v1700 = vsel %vm1685, %v1667, %v1668
      %v1701 = vsel %vm1685, %v1666, %v1667
      %v1702 = vsel %vm1685, %v1665, %v1666
      %v1703 = vsel %vm1685, %v1664, %v1665
      %v1704 = vsel %vm1685, %v1663, %v1664
      %v1705 = vsel %vm1685, %v1662, %v1663
      %v1706 = vsel %vm1685, %v1661, %v1662
      %v1707 = vsel %vm1685, %v1660, %v1661
      %v1708 = vsel %vm1685, %v1659, %v1660
      %v1709 = vsel %vm1685, %v1658, %v1659
      %v1710 = vsel %vm1685, %v1657, %v1658
      %v1711 = vsel %vm1685, %v1656, %v1657
      %v1712 = vsel %vm1685, %v1655, %v1656
      %v1713 = vsel %vm1685, %v1654, %v1655
      %v1714 = vsel %vm1685, %v1653, %v1654
      %v1715 = vsel %vm1685, %v1652, %v1653
      %v1716 = vsel %vm1685, %v1651, %v1652
      %v1717 = vsel %vm1685, %v1650, %v1651
      %v1718 = vsel %vm1685, %v1649, %v1650
      %v1719 = vsel %vm1685, %v1648, %v1649
      %v1720 = vsel %vm1685, %v1647, %v1648
      %v1721 = vsel %vm1685, %v1646, %v1647
      %v1722 = vsel %vm1685, %v1645, %v1646
      %v1723 = vsel %vm1685, %v1644, %v1645
      %v1724 = vsel %vm1685, %v1643, %v1644
      %v1725 = vsel %vm1685, %v1642, %v1643
      %v1726 = vsel %vm1685, %v1641, %v1642
      %v1727 = vsel %vm1685, %v1640, %v1641
      %v1728 = vsel %vm1685, %v1639, %v1640
      %v1729 = vsel %vm1685, %v1638, %v1639
      %v1730 = vsel %vm1685, %v1637, %v1638
      %v1731 = vsel %vm1685, %v1636, %v1637
      %v1732 = vsel %vm1685, %v1635, %v1636
      %v1733 = vsel %vm1685, %v1634, %v1635
      %v1734 = vsel %vm1685, %v1633, %v1634
      %v1735 = vsel %vm1685, %v1632, %v1633
      %v1736 = vsel %vm1685, %v1631, %v1632
      %v1737 = vsel %vm1685, %v1630, %v1631
      %v1738 = vsel %vm1685, %v1629, %v1630
      %v1739 = vsel %vm1685, %v1628, %v1629
      %v1740 = vsel %vm1685, %v1627, %v1628
      %v1741 = vsel %vm1685, %v1626, %v1627
      %v1742 = vsel %vm1685, %v1625, %v1626
      %v1743 = vsel %vm1685, %v1624, %v1625
      %v1744 = vsel %vm1685, %v1623, %v1624
      %v1745 = vsel %vm1685, %v1622, %v1623
      %v1746 = vsel %vm1685, %v1621, %v1622
      %v1747 = vsel %vm1685, %v1620, %v1621
      %v1748 = vsel %vm1685, %v1619, %v1620
      %v1749 = vsel %vm1685, %v1682, %v1619
      %v1758 = vunpack.c.l.b16 %v1258
      %v1759 = vunpack.c.l.b16 %v1259
      %v1760 = vunpack.c.l.b16 %v1260
      %v1761 = vunpack.c.l.b16 %v1261
      %v1762 = vunpack.c.l.b16 %v1262
      %v1763 = vunpack.c.l.b16 %v1263
      %v1764 = vunpack.c.l.b16 %v1264
      %v1765 = vunpack.c.l.b16 %v1265
      %v1766 = vpack.c.b16 %v1759, %v1758
      %v1767 = vpack.c.b16 %v1761, %v1760
      %v1768 = vpack.c.b16 %v1763, %v1762
      %v1769 = vpack.c.b16 %v1765, %v1764
      %vm1774 = vcmask 523264
      %v1776 = vsel %vm1774, %v1194, 0
      %v1779 = vsel %vm1774, %v1196, 0
      %v1782 = vsel %vm1774, %v1198, 0
      %v1785 = vsel %vm1774, %v1200, 0
      %v1788 = vsel %vm1774, %v1202, 0
      %v1791 = vsel %vm1774, %v1204, 0
      %v1794 = vsel %vm1774, %v1206, 0
      %v1797 = vsel %vm1774, %v1208, 0
      %v1800 = vsel %vm1774, %v1210, 0
      %v1803 = vsel %vm1774, %v1212, 0
      %v1806 = vsel %vm1774, %v1214, 0
      %v1809 = vsel %vm1774, %v1216, 0
      %v1812 = vsel %vm1774, %v1218, 0
      %v1815 = vsel %vm1774, %v1220, 0
      %v1818 = vsel %vm1774, %v1222, 0
      %v1821 = vsel %vm1774, %v1224, 0
      %v1824 = vsel %vm1774, %v1226, 0
      %v1827 = vsel %vm1774, %v1228, 0
      %v1830 = vsel %vm1774, %v1230, 0
      %v1833 = vsel %vm1774, %v1232, 0
      %v1836 = vsel %vm1774, %v1234, 0
      %v1839 = vsel %vm1774, %v1236, 0
      %v1842 = vsel %vm1774, %v1238, 0
      %v1845 = vsel %vm1774, %v1240, 0
      %v1848 = vsel %vm1774, %v1242, 0
      %v1851 = vsel %vm1774, %v1244, 0
      %v1854 = vsel %vm1774, %v1246, 0
      %v1857 = vsel %vm1774, %v1248, 0
      %v1860 = vsel %vm1774, %v1250, 0
      %v1863 = vsel %vm1774, %v1252, 0
      %v1866 = vsel %vm1774, %v1254, 0
      %v1869 = vsel %vm1774, %v1256, 0
      %1871 = vmatprep.subr.bf16.mxu0 0
      %1872 = vmatpush1.bf16.msra.mxu0 0
      %1873 = vmatprep.subr.bf16.mxu0 0
      %1874 = vmatpush1.bf16.msra.mxu0 0
      %1875 = vmatprep.subr.bf16.mxu0 0
      %1876 = vmatpush1.bf16.msra.mxu0 0
      %1877 = vmatprep.subr.bf16.mxu0 0
      %1878 = vmatpush1.bf16.msra.mxu0 0
      %1879 = vmatprep.subr.bf16.mxu0 0
      %1880 = vmatpush1.bf16.msra.mxu0 %v1769
      %1881 = vmatprep.subr.bf16.mxu0 0
      %1882 = vmatpush1.bf16.msra.mxu0 %v1768
      %1883 = vmatprep.subr.bf16.mxu0 0
      %1884 = vmatpush1.bf16.msra.mxu0 %v1767
      %1885 = vmatprep.subr.bf16.mxu0 0
      %1886 = vmatpush1.bf16.msra.mxu0 %v1766
      %1887 = vmatprep.subr.bf16.mxu0 0
      %1888 = vmatpush2.bf16.msra.mxu0 0
      %1889 = vmatprep.subr.bf16.mxu0 0
      %1890 = vmatpush2.bf16.msra.mxu0 0
      %1891 = vmatprep.subr.bf16.mxu0 0
      %1892 = vmatpush2.bf16.msra.mxu0 0
      %1893 = vmatprep.subr.bf16.mxu0 0
      %1894 = vmatpush2.bf16.msra.mxu0 0
      %1895 = vmatprep.subr.bf16.mxu0 0
      %1896 = vmatpush2.bf16.msra.mxu0 0
      %1897 = vmatprep.subr.bf16.mxu0 0
      %1898 = vmatpush2.bf16.msra.mxu0 0
      %1899 = vmatprep.subr.bf16.mxu0 0
      %1900 = vmatpush2.bf16.msra.mxu0 0
      %1901 = vmatprep.subr.bf16.mxu0 0
      %1902 = vmatpush2.bf16.msra.mxu0 0
      %1903 = vmatprep.mubr.bf16.mxu0 0
      %1904 = vmatmul.mubr.bf16.gmra.mxu0 %v1776
      %v1905 = vpop.f32.mrf.mxu0
      %v1906 = vadd.f32 %v1748, %v1905
      %v1907 = vpop.f32.mrf.mxu0
      %v1908 = vpop.f32.mrf.mxu0
      %v1909 = vadd.f32 %v1747, %v1908
      %v1910 = vpop.f32.mrf.mxu0
      %1911 = vmatprep.mubr.bf16.mxu0 0
      %1912 = vmatmul.mubr.bf16.gmra.mxu0 %v1779
      %v1913 = vpop.f32.mrf.mxu0
      %v1914 = vadd.f32 %v1746, %v1913
      %v1915 = vpop.f32.mrf.mxu0
      %v1916 = vpop.f32.mrf.mxu0
      %v1917 = vadd.f32 %v1745, %v1916
      %v1918 = vpop.f32.mrf.mxu0
      %1919 = vmatprep.mubr.bf16.mxu0 0
      %1920 = vmatmul.mubr.bf16.gmra.mxu0 %v1782
      %v1921 = vpop.f32.mrf.mxu0
      %v1922 = vadd.f32 %v1744, %v1921
      %v1923 = vpop.f32.mrf.mxu0
      %v1924 = vpop.f32.mrf.mxu0
      %v1925 = vadd.f32 %v1743, %v1924
      %v1926 = vpop.f32.mrf.mxu0
      %1927 = vmatprep.mubr.bf16.mxu0 0
      %1928 = vmatmul.mubr.bf16.gmra.mxu0 %v1785
      %v1929 = vpop.f32.mrf.mxu0
      %v1930 = vadd.f32 %v1742, %v1929
      %v1931 = vpop.f32.mrf.mxu0
      %v1932 = vpop.f32.mrf.mxu0
      %v1933 = vadd.f32 %v1741, %v1932
      %v1934 = vpop.f32.mrf.mxu0
      %1935 = vmatprep.mubr.bf16.mxu0 0
      %1936 = vmatmul.mubr.bf16.gmra.mxu0 %v1788
      %v1937 = vpop.f32.mrf.mxu0
      %v1938 = vadd.f32 %v1740, %v1937
      %v1939 = vpop.f32.mrf.mxu0
      %v1940 = vpop.f32.mrf.mxu0
      %v1941 = vadd.f32 %v1739, %v1940
      %v1942 = vpop.f32.mrf.mxu0
      %1943 = vmatprep.mubr.bf16.mxu0 0
      %1944 = vmatmul.mubr.bf16.gmra.mxu0 %v1791
      %v1945 = vpop.f32.mrf.mxu0
      %v1946 = vadd.f32 %v1738, %v1945
      %v1947 = vpop.f32.mrf.mxu0
      %v1948 = vpop.f32.mrf.mxu0
      %v1949 = vadd.f32 %v1737, %v1948
      %v1950 = vpop.f32.mrf.mxu0
      %1951 = vmatprep.mubr.bf16.mxu0 0
      %1952 = vmatmul.mubr.bf16.gmra.mxu0 %v1794
      %v1953 = vpop.f32.mrf.mxu0
      %v1954 = vadd.f32 %v1736, %v1953
      %v1955 = vpop.f32.mrf.mxu0
      %v1956 = vpop.f32.mrf.mxu0
      %v1957 = vadd.f32 %v1735, %v1956
      %v1958 = vpop.f32.mrf.mxu0
      %1959 = vmatprep.mubr.bf16.mxu0 0
      %1960 = vmatmul.mubr.bf16.gmra.mxu0 %v1797
      %v1961 = vpop.f32.mrf.mxu0
      %v1962 = vadd.f32 %v1734, %v1961
      %v1963 = vpop.f32.mrf.mxu0
      %v1964 = vpop.f32.mrf.mxu0
      %v1965 = vadd.f32 %v1733, %v1964
      %v1966 = vpop.f32.mrf.mxu0
      %1967 = vmatprep.mubr.bf16.mxu0 0
      %1968 = vmatmul.mubr.bf16.gmra.mxu0 %v1800
      %v1969 = vpop.f32.mrf.mxu0
      %v1970 = vadd.f32 %v1732, %v1969
      %v1971 = vpop.f32.mrf.mxu0
      %v1972 = vpop.f32.mrf.mxu0
      %v1973 = vadd.f32 %v1731, %v1972
      %v1974 = vpop.f32.mrf.mxu0
      %1975 = vmatprep.mubr.bf16.mxu0 0
      %1976 = vmatmul.mubr.bf16.gmra.mxu0 %v1803
      %v1977 = vpop.f32.mrf.mxu0
      %v1978 = vadd.f32 %v1730, %v1977
      %v1979 = vpop.f32.mrf.mxu0
      %v1980 = vpop.f32.mrf.mxu0
      %v1981 = vadd.f32 %v1729, %v1980
      %v1982 = vpop.f32.mrf.mxu0
      %1983 = vmatprep.mubr.bf16.mxu0 0
      %1984 = vmatmul.mubr.bf16.gmra.mxu0 %v1806
      %v1985 = vpop.f32.mrf.mxu0
      %v1986 = vadd.f32 %v1728, %v1985
      %v1987 = vpop.f32.mrf.mxu0
      %v1988 = vpop.f32.mrf.mxu0
      %v1989 = vadd.f32 %v1727, %v1988
      %v1990 = vpop.f32.mrf.mxu0
      %1991 = vmatprep.mubr.bf16.mxu0 0
      %1992 = vmatmul.mubr.bf16.gmra.mxu0 %v1809
      %v1993 = vpop.f32.mrf.mxu0
      %v1994 = vadd.f32 %v1726, %v1993
      %v1995 = vpop.f32.mrf.mxu0
      %v1996 = vpop.f32.mrf.mxu0
      %v1997 = vadd.f32 %v1725, %v1996
      %v1998 = vpop.f32.mrf.mxu0
      %1999 = vmatprep.mubr.bf16.mxu0 0
      %2000 = vmatmul.mubr.bf16.gmra.mxu0 %v1812
      %v2001 = vpop.f32.mrf.mxu0
      %v2002 = vadd.f32 %v1724, %v2001
      %v2003 = vpop.f32.mrf.mxu0
      %v2004 = vpop.f32.mrf.mxu0
      %v2005 = vadd.f32 %v1723, %v2004
      %v2006 = vpop.f32.mrf.mxu0
      %2007 = vmatprep.mubr.bf16.mxu0 0
      %2008 = vmatmul.mubr.bf16.gmra.mxu0 %v1815
      %v2009 = vpop.f32.mrf.mxu0
      %v2010 = vadd.f32 %v1722, %v2009
      %v2011 = vpop.f32.mrf.mxu0
      %v2012 = vpop.f32.mrf.mxu0
      %v2013 = vadd.f32 %v1721, %v2012
      %v2014 = vpop.f32.mrf.mxu0
      %2015 = vmatprep.mubr.bf16.mxu0 0
      %2016 = vmatmul.mubr.bf16.gmra.mxu0 %v1818
      %v2017 = vpop.f32.mrf.mxu0
      %v2018 = vadd.f32 %v1720, %v2017
      %v2019 = vpop.f32.mrf.mxu0
      %v2020 = vpop.f32.mrf.mxu0
      %v2021 = vadd.f32 %v1719, %v2020
      %v2022 = vpop.f32.mrf.mxu0
      %2023 = vmatprep.mubr.bf16.mxu0 0
      %2024 = vmatmul.mubr.bf16.gmra.mxu0 %v1821
      %v2025 = vpop.f32.mrf.mxu0
      %v2026 = vadd.f32 %v1718, %v2025
      %v2027 = vpop.f32.mrf.mxu0
      %v2028 = vpop.f32.mrf.mxu0
      %v2029 = vadd.f32 %v1717, %v2028
      %v2030 = vpop.f32.mrf.mxu0
      %2031 = vmatprep.mubr.bf16.mxu0 0
      %2032 = vmatmul.mubr.bf16.gmra.mxu0 %v1824
      %v2033 = vpop.f32.mrf.mxu0
      %v2034 = vadd.f32 %v1716, %v2033
      %v2035 = vpop.f32.mrf.mxu0
      %v2036 = vpop.f32.mrf.mxu0
      %v2037 = vadd.f32 %v1715, %v2036
      %v2038 = vpop.f32.mrf.mxu0
      %2039 = vmatprep.mubr.bf16.mxu0 0
      %2040 = vmatmul.mubr.bf16.gmra.mxu0 %v1827
      %v2041 = vpop.f32.mrf.mxu0
      %v2042 = vadd.f32 %v1714, %v2041
      %v2043 = vpop.f32.mrf.mxu0
      %v2044 = vpop.f32.mrf.mxu0
      %v2045 = vadd.f32 %v1713, %v2044
      %v2046 = vpop.f32.mrf.mxu0
      %2047 = vmatprep.mubr.bf16.mxu0 0
      %2048 = vmatmul.mubr.bf16.gmra.mxu0 %v1830
      %v2049 = vpop.f32.mrf.mxu0
      %v2050 = vadd.f32 %v1712, %v2049
      %v2051 = vpop.f32.mrf.mxu0
      %v2052 = vpop.f32.mrf.mxu0
      %v2053 = vadd.f32 %v1711, %v2052
      %v2054 = vpop.f32.mrf.mxu0
      %2055 = vmatprep.mubr.bf16.mxu0 0
      %2056 = vmatmul.mubr.bf16.gmra.mxu0 %v1833
      %v2057 = vpop.f32.mrf.mxu0
      %v2058 = vadd.f32 %v1710, %v2057
      %v2059 = vpop.f32.mrf.mxu0
      %v2060 = vpop.f32.mrf.mxu0
      %v2061 = vadd.f32 %v1709, %v2060
      %v2062 = vpop.f32.mrf.mxu0
      %2063 = vmatprep.mubr.bf16.mxu0 0
      %2064 = vmatmul.mubr.bf16.gmra.mxu0 %v1836
      %v2065 = vpop.f32.mrf.mxu0
      %v2066 = vadd.f32 %v1708, %v2065
      %v2067 = vpop.f32.mrf.mxu0
      %v2068 = vpop.f32.mrf.mxu0
      %v2069 = vadd.f32 %v1707, %v2068
      %v2070 = vpop.f32.mrf.mxu0
      %2071 = vmatprep.mubr.bf16.mxu0 0
      %2072 = vmatmul.mubr.bf16.gmra.mxu0 %v1839
      %v2073 = vpop.f32.mrf.mxu0
      %v2074 = vadd.f32 %v1706, %v2073
      %v2075 = vpop.f32.mrf.mxu0
      %v2076 = vpop.f32.mrf.mxu0
      %v2077 = vadd.f32 %v1705, %v2076
      %v2078 = vpop.f32.mrf.mxu0
      %2079 = vmatprep.mubr.bf16.mxu0 0
      %2080 = vmatmul.mubr.bf16.gmra.mxu0 %v1842
      %v2081 = vpop.f32.mrf.mxu0
      %v2082 = vadd.f32 %v1704, %v2081
      %v2083 = vpop.f32.mrf.mxu0
      %v2084 = vpop.f32.mrf.mxu0
      %v2085 = vadd.f32 %v1703, %v2084
      %v2086 = vpop.f32.mrf.mxu0
      %2087 = vmatprep.mubr.bf16.mxu0 0
      %2088 = vmatmul.mubr.bf16.gmra.mxu0 %v1845
      %v2089 = vpop.f32.mrf.mxu0
      %v2090 = vadd.f32 %v1702, %v2089
      %v2091 = vpop.f32.mrf.mxu0
      %v2092 = vpop.f32.mrf.mxu0
      %v2093 = vadd.f32 %v1701, %v2092
      %v2094 = vpop.f32.mrf.mxu0
      %2095 = vmatprep.mubr.bf16.mxu0 0
      %2096 = vmatmul.mubr.bf16.gmra.mxu0 %v1848
      %v2097 = vpop.f32.mrf.mxu0
      %v2098 = vadd.f32 %v1700, %v2097
      %v2099 = vpop.f32.mrf.mxu0
      %v2100 = vpop.f32.mrf.mxu0
      %v2101 = vadd.f32 %v1699, %v2100
      %v2102 = vpop.f32.mrf.mxu0
      %2103 = vmatprep.mubr.bf16.mxu0 0
      %2104 = vmatmul.mubr.bf16.gmra.mxu0 %v1851
      %v2105 = vpop.f32.mrf.mxu0
      %v2106 = vadd.f32 %v1698, %v2105
      %v2107 = vpop.f32.mrf.mxu0
      %v2108 = vpop.f32.mrf.mxu0
      %v2109 = vadd.f32 %v1697, %v2108
      %v2110 = vpop.f32.mrf.mxu0
      %2111 = vmatprep.mubr.bf16.mxu0 0
      %2112 = vmatmul.mubr.bf16.gmra.mxu0 %v1854
      %v2113 = vpop.f32.mrf.mxu0
      %v2114 = vadd.f32 %v1696, %v2113
      %v2115 = vpop.f32.mrf.mxu0
      %v2116 = vpop.f32.mrf.mxu0
      %v2117 = vadd.f32 %v1695, %v2116
      %v2118 = vpop.f32.mrf.mxu0
      %2119 = vmatprep.mubr.bf16.mxu0 0
      %2120 = vmatmul.mubr.bf16.gmra.mxu0 %v1857
      %v2121 = vpop.f32.mrf.mxu0
      %v2122 = vadd.f32 %v1694, %v2121
      %v2123 = vpop.f32.mrf.mxu0
      %v2124 = vpop.f32.mrf.mxu0
      %v2125 = vadd.f32 %v1693, %v2124
      %v2126 = vpop.f32.mrf.mxu0
      %2127 = vmatprep.mubr.bf16.mxu0 0
      %2128 = vmatmul.mubr.bf16.gmra.mxu0 %v1860
      %v2129 = vpop.f32.mrf.mxu0
      %v2130 = vadd.f32 %v1692, %v2129
      %v2131 = vpop.f32.mrf.mxu0
      %v2132 = vpop.f32.mrf.mxu0
      %v2133 = vadd.f32 %v1691, %v2132
      %v2134 = vpop.f32.mrf.mxu0
      %2135 = vmatprep.mubr.bf16.mxu0 0
      %2136 = vmatmul.mubr.bf16.gmra.mxu0 %v1863
      %v2137 = vpop.f32.mrf.mxu0
      %v2138 = vadd.f32 %v1690, %v2137
      %v2139 = vpop.f32.mrf.mxu0
      %v2140 = vpop.f32.mrf.mxu0
      %v2141 = vadd.f32 %v1689, %v2140
      %v2142 = vpop.f32.mrf.mxu0
      %2143 = vmatprep.mubr.bf16.mxu0 0
      %2144 = vmatmul.mubr.bf16.gmra.mxu0 %v1866
      %v2145 = vpop.f32.mrf.mxu0
      %v2146 = vadd.f32 %v1688, %v2145
      %v2147 = vpop.f32.mrf.mxu0
      %v2148 = vpop.f32.mrf.mxu0
      %v2149 = vadd.f32 %v1687, %v2148
      %v2150 = vpop.f32.mrf.mxu0
      %2151 = vmatprep.mubr.bf16.mxu0 0
      %2152 = vmatmul.mubr.bf16.gmra.mxu0 %v1869
      %v2153 = vpop.f32.mrf.mxu0
      %v2154 = vadd.f32 %v1686, %v2153
      %v2155 = vpop.f32.mrf.mxu0
      %v2156 = vpop.f32.mrf.mxu0
      %v2157 = vadd.f32 %v1749, %v2156
      %v2158 = vpop.f32.mrf.mxu0
      %2159 = vdwg.mxu0
      %v2160 = vld [vmem:[%s2 + $0x60] sm:$0xf]
      %v2161 = vld [vmem:[%s2 + $0x64] sm:$0xf]
      %v2162 = vld [vmem:[%s2 + $0x68] sm:$0xf]
      %v2163 = vld [vmem:[%s2 + $0x6c] sm:$0xf]
      %v2164 = vld [vmem:[%s2 + $0x70] sm:$0xf]
      %v2165 = vld [vmem:[%s2 + $0x74] sm:$0xf]
      %v2166 = vld [vmem:[%s2 + $0x78] sm:$0xf]
      %v2167 = vld [vmem:[%s2 + $0x7c] sm:$0xf]
      %v2168 = vld [vmem:[%s2 + $0x80] sm:$0xf]
      %v2169 = vld [vmem:[%s2 + $0x84] sm:$0xf]
      %v2170 = vld [vmem:[%s2 + $0x88] sm:$0xf]
      %v2171 = vld [vmem:[%s2 + $0x8c] sm:$0xf]
      %v2172 = vld [vmem:[%s2 + $0x90] sm:$0xf]
      %v2173 = vld [vmem:[%s2 + $0x94] sm:$0xf]
      %v2174 = vld [vmem:[%s2 + $0x98] sm:$0xf]
      %v2175 = vld [vmem:[%s2 + $0x9c] sm:$0xf]
      %v2176 = vld [vmem:[%s2 + $0xa0] sm:$0xf]
      %v2177 = vld [vmem:[%s2 + $0xa4] sm:$0xf]
      %v2178 = vld [vmem:[%s2 + $0xa8] sm:$0xf]
      %v2179 = vld [vmem:[%s2 + $0xac] sm:$0xf]
      %v2180 = vld [vmem:[%s2 + $0xb0] sm:$0xf]
      %v2181 = vld [vmem:[%s2 + $0xb4] sm:$0xf]
      %v2182 = vld [vmem:[%s2 + $0xb8] sm:$0xf]
      %v2183 = vld [vmem:[%s2 + $0xbc] sm:$0xf]
      %v2184 = vld [vmem:[%s2 + $0xc0] sm:$0xf]
      %v2185 = vld [vmem:[%s2 + $0xc4] sm:$0xf]
      %v2186 = vld [vmem:[%s2 + $0xc8] sm:$0xf]
      %v2187 = vld [vmem:[%s2 + $0xcc] sm:$0xf]
      %v2188 = vld [vmem:[%s2 + $0xd0] sm:$0xf]
      %v2189 = vld [vmem:[%s2 + $0xd4] sm:$0xf]
      %v2190 = vld [vmem:[%s2 + $0xd8] sm:$0xf]
      %v2191 = vld [vmem:[%s2 + $0xdc] sm:$0xf]
      %v2192 = vld [vmem:[%s2 + $0xe0] sm:$0xf]
      %v2193 = vld [vmem:[%s2 + $0xe4] sm:$0xf]
      %v2194 = vld [vmem:[%s2 + $0xe8] sm:$0xf]
      %v2195 = vld [vmem:[%s2 + $0xec] sm:$0xf]
      %v2196 = vld [vmem:[%s2 + $0xf0] sm:$0xf]
      %v2197 = vld [vmem:[%s2 + $0xf4] sm:$0xf]
      %v2198 = vld [vmem:[%s2 + $0xf8] sm:$0xf]
      %v2199 = vld [vmem:[%s2 + $0xfc] sm:$0xf]
      %v2200 = vld [vmem:[%s2 + $0x100] sm:$0xf]
      %v2201 = vld [vmem:[%s2 + $0x104] sm:$0xf]
      %v2202 = vld [vmem:[%s2 + $0x108] sm:$0xf]
      %v2203 = vld [vmem:[%s2 + $0x10c] sm:$0xf]
      %v2204 = vld [vmem:[%s2 + $0x110] sm:$0xf]
      %v2205 = vld [vmem:[%s2 + $0x114] sm:$0xf]
      %v2206 = vld [vmem:[%s2 + $0x118] sm:$0xf]
      %v2207 = vld [vmem:[%s2 + $0x11c] sm:$0xf]
      %v2208 = vld [vmem:[%s2 + $0x120] sm:$0xf]
      %v2209 = vld [vmem:[%s2 + $0x124] sm:$0xf]
      %v2210 = vld [vmem:[%s2 + $0x128] sm:$0xf]
      %v2211 = vld [vmem:[%s2 + $0x12c] sm:$0xf]
      %v2212 = vld [vmem:[%s2 + $0x130] sm:$0xf]
      %v2213 = vld [vmem:[%s2 + $0x134] sm:$0xf]
      %v2214 = vld [vmem:[%s2 + $0x138] sm:$0xf]
      %v2215 = vld [vmem:[%s2 + $0x13c] sm:$0xf]
      %v2216 = vld [vmem:[%s2 + $0x140] sm:$0xf]
      %v2217 = vld [vmem:[%s2 + $0x144] sm:$0xf]
      %v2218 = vld [vmem:[%s2 + $0x148] sm:$0xf]
      %v2219 = vld [vmem:[%s2 + $0x14c] sm:$0xf]
      %v2220 = vld [vmem:[%s2 + $0x150] sm:$0xf]
      %v2221 = vld [vmem:[%s2 + $0x154] sm:$0xf]
      %v2222 = vld [vmem:[%s2 + $0x158] sm:$0xf]
      %v2223 = vld [vmem:[%s2 + $0x15c] sm:$0xf]
      %v2256 = vunpack.c.l.b16 %v2192
      %v2257 = vunpack.c.l.b16 %v2193
      %v2258 = vunpack.c.l.b16 %v2194
      %v2259 = vunpack.c.l.b16 %v2195
      %v2260 = vunpack.c.l.b16 %v2196
      %v2261 = vunpack.c.l.b16 %v2197
      %v2262 = vunpack.c.l.b16 %v2198
      %v2263 = vunpack.c.l.b16 %v2199
      %v2264 = vunpack.c.l.b16 %v2200
      %v2265 = vunpack.c.l.b16 %v2201
      %v2266 = vunpack.c.l.b16 %v2202
      %v2267 = vunpack.c.l.b16 %v2203
      %v2268 = vunpack.c.l.b16 %v2204
      %v2269 = vunpack.c.l.b16 %v2205
      %v2270 = vunpack.c.l.b16 %v2206
      %v2271 = vunpack.c.l.b16 %v2207
      %v2272 = vunpack.c.l.b16 %v2208
      %v2273 = vunpack.c.l.b16 %v2209
      %v2274 = vunpack.c.l.b16 %v2210
      %v2275 = vunpack.c.l.b16 %v2211
      %v2276 = vunpack.c.l.b16 %v2212
      %v2277 = vunpack.c.l.b16 %v2213
      %v2278 = vunpack.c.l.b16 %v2214
      %v2279 = vunpack.c.l.b16 %v2215
      %v2280 = vunpack.c.l.b16 %v2216
      %v2281 = vunpack.c.l.b16 %v2217
      %v2282 = vunpack.c.l.b16 %v2218
      %v2283 = vunpack.c.l.b16 %v2219
      %v2284 = vunpack.c.l.b16 %v2220
      %v2285 = vunpack.c.l.b16 %v2221
      %v2286 = vunpack.c.l.b16 %v2222
      %v2287 = vunpack.c.l.b16 %v2223
      %v2288 = vpack.c.b16 %v2257, %v2256
      %v2289 = vpack.c.b16 %v2259, %v2258
      %v2290 = vpack.c.b16 %v2261, %v2260
      %v2291 = vpack.c.b16 %v2263, %v2262
      %v2292 = vpack.c.b16 %v2265, %v2264
      %v2293 = vpack.c.b16 %v2267, %v2266
      %v2294 = vpack.c.b16 %v2269, %v2268
      %v2295 = vpack.c.b16 %v2271, %v2270
      %v2296 = vpack.c.b16 %v2273, %v2272
      %v2297 = vpack.c.b16 %v2275, %v2274
      %v2298 = vpack.c.b16 %v2277, %v2276
      %v2299 = vpack.c.b16 %v2279, %v2278
      %v2300 = vpack.c.b16 %v2281, %v2280
      %v2301 = vpack.c.b16 %v2283, %v2282
      %v2302 = vpack.c.b16 %v2285, %v2284
      %v2303 = vpack.c.b16 %v2287, %v2286
      %2320 = vmatprep.subr.bf16.mxu0 0
      %2321 = vmatpush1.bf16.msra.mxu0 %v2295
      %2322 = vmatprep.subr.bf16.mxu0 0
      %2323 = vmatpush1.bf16.msra.mxu0 %v2294
      %2324 = vmatprep.subr.bf16.mxu0 0
      %2325 = vmatpush1.bf16.msra.mxu0 %v2293
      %2326 = vmatprep.subr.bf16.mxu0 0
      %2327 = vmatpush1.bf16.msra.mxu0 %v2292
      %2328 = vmatprep.subr.bf16.mxu0 0
      %2329 = vmatpush1.bf16.msra.mxu0 %v2291
      %2330 = vmatprep.subr.bf16.mxu0 0
      %2331 = vmatpush1.bf16.msra.mxu0 %v2290
      %2332 = vmatprep.subr.bf16.mxu0 0
      %2333 = vmatpush1.bf16.msra.mxu0 %v2289
      %2334 = vmatprep.subr.bf16.mxu0 0
      %2335 = vmatpush1.bf16.msra.mxu0 %v2288
      %2336 = vmatprep.subr.bf16.mxu0 0
      %2337 = vmatpush2.bf16.msra.mxu0 %v2303
      %2338 = vmatprep.subr.bf16.mxu0 0
      %2339 = vmatpush2.bf16.msra.mxu0 %v2302
      %2340 = vmatprep.subr.bf16.mxu0 0
      %2341 = vmatpush2.bf16.msra.mxu0 %v2301
      %2342 = vmatprep.subr.bf16.mxu0 0
      %2343 = vmatpush2.bf16.msra.mxu0 %v2300
      %2344 = vmatprep.subr.bf16.mxu0 0
      %2345 = vmatpush2.bf16.msra.mxu0 %v2299
      %2346 = vmatprep.subr.bf16.mxu0 0
      %2347 = vmatpush2.bf16.msra.mxu0 %v2298
      %2348 = vmatprep.subr.bf16.mxu0 0
      %2349 = vmatpush2.bf16.msra.mxu0 %v2297
      %2350 = vmatprep.subr.bf16.mxu0 0
      %2351 = vmatpush2.bf16.msra.mxu0 %v2296
      %2352 = vmatprep.mubr.bf16.mxu0 %v1195
      %2353 = vmatmul.mubr.bf16.gmra.mxu0 %v1194
      %v2354 = vpop.f32.mrf.mxu0
      %v2355 = vadd.f32 0.0, %v2354
      %v2356 = vpop.f32.mrf.mxu0
      %v2357 = vpop.f32.mrf.mxu0
      %v2358 = vadd.f32 0.0, %v2357
      %v2359 = vpop.f32.mrf.mxu0
      %2360 = vmatprep.mubr.bf16.mxu0 %v1197
      %2361 = vmatmul.mubr.bf16.gmra.mxu0 %v1196
      %v2362 = vpop.f32.mrf.mxu0
      %v2363 = vadd.f32 0.0, %v2362
      %v2364 = vpop.f32.mrf.mxu0
      %v2365 = vpop.f32.mrf.mxu0
      %v2366 = vadd.f32 0.0, %v2365
      %v2367 = vpop.f32.mrf.mxu0
      %2368 = vmatprep.mubr.bf16.mxu0 %v1199
      %2369 = vmatmul.mubr.bf16.gmra.mxu0 %v1198
      %v2370 = vpop.f32.mrf.mxu0
      %v2371 = vadd.f32 0.0, %v2370
      %v2372 = vpop.f32.mrf.mxu0
      %v2373 = vpop.f32.mrf.mxu0
      %v2374 = vadd.f32 0.0, %v2373
      %v2375 = vpop.f32.mrf.mxu0
      %2376 = vmatprep.mubr.bf16.mxu0 %v1201
      %2377 = vmatmul.mubr.bf16.gmra.mxu0 %v1200
      %v2378 = vpop.f32.mrf.mxu0
      %v2379 = vadd.f32 0.0, %v2378
      %v2380 = vpop.f32.mrf.mxu0
      %v2381 = vpop.f32.mrf.mxu0
      %v2382 = vadd.f32 0.0, %v2381
      %v2383 = vpop.f32.mrf.mxu0
      %2384 = vmatprep.mubr.bf16.mxu0 %v1203
      %2385 = vmatmul.mubr.bf16.gmra.mxu0 %v1202
      %v2386 = vpop.f32.mrf.mxu0
      %v2387 = vadd.f32 0.0, %v2386
      %v2388 = vpop.f32.mrf.mxu0
      %v2389 = vpop.f32.mrf.mxu0
      %v2390 = vadd.f32 0.0, %v2389
      %v2391 = vpop.f32.mrf.mxu0
      %2392 = vmatprep.mubr.bf16.mxu0 %v1205
      %2393 = vmatmul.mubr.bf16.gmra.mxu0 %v1204
      %v2394 = vpop.f32.mrf.mxu0
      %v2395 = vadd.f32 0.0, %v2394
      %v2396 = vpop.f32.mrf.mxu0
      %v2397 = vpop.f32.mrf.mxu0
      %v2398 = vadd.f32 0.0, %v2397
      %v2399 = vpop.f32.mrf.mxu0
      %2400 = vmatprep.mubr.bf16.mxu0 %v1207
      %2401 = vmatmul.mubr.bf16.gmra.mxu0 %v1206
      %v2402 = vpop.f32.mrf.mxu0
      %v2403 = vadd.f32 0.0, %v2402
      %v2404 = vpop.f32.mrf.mxu0
      %v2405 = vpop.f32.mrf.mxu0
      %v2406 = vadd.f32 0.0, %v2405
      %v2407 = vpop.f32.mrf.mxu0
      %2408 = vmatprep.mubr.bf16.mxu0 %v1209
      %2409 = vmatmul.mubr.bf16.gmra.mxu0 %v1208
      %v2410 = vpop.f32.mrf.mxu0
      %v2411 = vadd.f32 0.0, %v2410
      %v2412 = vpop.f32.mrf.mxu0
      %v2413 = vpop.f32.mrf.mxu0
      %v2414 = vadd.f32 0.0, %v2413
      %v2415 = vpop.f32.mrf.mxu0
      %2416 = vmatprep.mubr.bf16.mxu0 %v1211
      %2417 = vmatmul.mubr.bf16.gmra.mxu0 %v1210
      %v2418 = vpop.f32.mrf.mxu0
      %v2419 = vadd.f32 0.0, %v2418
      %v2420 = vpop.f32.mrf.mxu0
      %v2421 = vpop.f32.mrf.mxu0
      %v2422 = vadd.f32 0.0, %v2421
      %v2423 = vpop.f32.mrf.mxu0
      %2424 = vmatprep.mubr.bf16.mxu0 %v1213
      %2425 = vmatmul.mubr.bf16.gmra.mxu0 %v1212
      %v2426 = vpop.f32.mrf.mxu0
      %v2427 = vadd.f32 0.0, %v2426
      %v2428 = vpop.f32.mrf.mxu0
      %v2429 = vpop.f32.mrf.mxu0
      %v2430 = vadd.f32 0.0, %v2429
      %v2431 = vpop.f32.mrf.mxu0
      %2432 = vmatprep.mubr.bf16.mxu0 %v1215
      %2433 = vmatmul.mubr.bf16.gmra.mxu0 %v1214
      %v2434 = vpop.f32.mrf.mxu0
      %v2435 = vadd.f32 0.0, %v2434
      %v2436 = vpop.f32.mrf.mxu0
      %v2437 = vpop.f32.mrf.mxu0
      %v2438 = vadd.f32 0.0, %v2437
      %v2439 = vpop.f32.mrf.mxu0
      %2440 = vmatprep.mubr.bf16.mxu0 %v1217
      %2441 = vmatmul.mubr.bf16.gmra.mxu0 %v1216
      %v2442 = vpop.f32.mrf.mxu0
      %v2443 = vadd.f32 0.0, %v2442
      %v2444 = vpop.f32.mrf.mxu0
      %v2445 = vpop.f32.mrf.mxu0
      %v2446 = vadd.f32 0.0, %v2445
      %v2447 = vpop.f32.mrf.mxu0
      %2448 = vmatprep.mubr.bf16.mxu0 %v1219
      %2449 = vmatmul.mubr.bf16.gmra.mxu0 %v1218
      %v2450 = vpop.f32.mrf.mxu0
      %v2451 = vadd.f32 0.0, %v2450
      %v2452 = vpop.f32.mrf.mxu0
      %v2453 = vpop.f32.mrf.mxu0
      %v2454 = vadd.f32 0.0, %v2453
      %v2455 = vpop.f32.mrf.mxu0
      %2456 = vmatprep.mubr.bf16.mxu0 %v1221
      %2457 = vmatmul.mubr.bf16.gmra.mxu0 %v1220
      %v2458 = vpop.f32.mrf.mxu0
      %v2459 = vadd.f32 0.0, %v2458
      %v2460 = vpop.f32.mrf.mxu0
      %v2461 = vpop.f32.mrf.mxu0
      %v2462 = vadd.f32 0.0, %v2461
      %v2463 = vpop.f32.mrf.mxu0
      %2464 = vmatprep.mubr.bf16.mxu0 %v1223
      %2465 = vmatmul.mubr.bf16.gmra.mxu0 %v1222
      %v2466 = vpop.f32.mrf.mxu0
      %v2467 = vadd.f32 0.0, %v2466
      %v2468 = vpop.f32.mrf.mxu0
      %v2469 = vpop.f32.mrf.mxu0
      %v2470 = vadd.f32 0.0, %v2469
      %v2471 = vpop.f32.mrf.mxu0
      %2472 = vmatprep.mubr.bf16.mxu0 %v1225
      %2473 = vmatmul.mubr.bf16.gmra.mxu0 %v1224
      %v2474 = vpop.f32.mrf.mxu0
      %v2475 = vadd.f32 0.0, %v2474
      %v2476 = vpop.f32.mrf.mxu0
      %v2477 = vpop.f32.mrf.mxu0
      %v2478 = vadd.f32 0.0, %v2477
      %v2479 = vpop.f32.mrf.mxu0
      %2480 = vmatprep.mubr.bf16.mxu0 %v1227
      %2481 = vmatmul.mubr.bf16.gmra.mxu0 %v1226
      %v2482 = vpop.f32.mrf.mxu0
      %v2483 = vadd.f32 0.0, %v2482
      %v2484 = vpop.f32.mrf.mxu0
      %v2485 = vpop.f32.mrf.mxu0
      %v2486 = vadd.f32 0.0, %v2485
      %v2487 = vpop.f32.mrf.mxu0
      %2488 = vmatprep.mubr.bf16.mxu0 %v1229
      %2489 = vmatmul.mubr.bf16.gmra.mxu0 %v1228
      %v2490 = vpop.f32.mrf.mxu0
      %v2491 = vadd.f32 0.0, %v2490
      %v2492 = vpop.f32.mrf.mxu0
      %v2493 = vpop.f32.mrf.mxu0
      %v2494 = vadd.f32 0.0, %v2493
      %v2495 = vpop.f32.mrf.mxu0
      %2496 = vmatprep.mubr.bf16.mxu0 %v1231
      %2497 = vmatmul.mubr.bf16.gmra.mxu0 %v1230
      %v2498 = vpop.f32.mrf.mxu0
      %v2499 = vadd.f32 0.0, %v2498
      %v2500 = vpop.f32.mrf.mxu0
      %v2501 = vpop.f32.mrf.mxu0
      %v2502 = vadd.f32 0.0, %v2501
      %v2503 = vpop.f32.mrf.mxu0
      %2504 = vmatprep.mubr.bf16.mxu0 %v1233
      %2505 = vmatmul.mubr.bf16.gmra.mxu0 %v1232
      %v2506 = vpop.f32.mrf.mxu0
      %v2507 = vadd.f32 0.0, %v2506
      %v2508 = vpop.f32.mrf.mxu0
      %v2509 = vpop.f32.mrf.mxu0
      %v2510 = vadd.f32 0.0, %v2509
      %v2511 = vpop.f32.mrf.mxu0
      %2512 = vmatprep.mubr.bf16.mxu0 %v1235
      %2513 = vmatmul.mubr.bf16.gmra.mxu0 %v1234
      %v2514 = vpop.f32.mrf.mxu0
      %v2515 = vadd.f32 0.0, %v2514
      %v2516 = vpop.f32.mrf.mxu0
      %v2517 = vpop.f32.mrf.mxu0
      %v2518 = vadd.f32 0.0, %v2517
      %v2519 = vpop.f32.mrf.mxu0
      %2520 = vmatprep.mubr.bf16.mxu0 %v1237
      %2521 = vmatmul.mubr.bf16.gmra.mxu0 %v1236
      %v2522 = vpop.f32.mrf.mxu0
      %v2523 = vadd.f32 0.0, %v2522
      %v2524 = vpop.f32.mrf.mxu0
      %v2525 = vpop.f32.mrf.mxu0
      %v2526 = vadd.f32 0.0, %v2525
      %v2527 = vpop.f32.mrf.mxu0
      %2528 = vmatprep.mubr.bf16.mxu0 %v1239
      %2529 = vmatmul.mubr.bf16.gmra.mxu0 %v1238
      %v2530 = vpop.f32.mrf.mxu0
      %v2531 = vadd.f32 0.0, %v2530
      %v2532 = vpop.f32.mrf.mxu0
      %v2533 = vpop.f32.mrf.mxu0
      %v2534 = vadd.f32 0.0, %v2533
      %v2535 = vpop.f32.mrf.mxu0
      %2536 = vmatprep.mubr.bf16.mxu0 %v1241
      %2537 = vmatmul.mubr.bf16.gmra.mxu0 %v1240
      %v2538 = vpop.f32.mrf.mxu0
      %v2539 = vadd.f32 0.0, %v2538
      %v2540 = vpop.f32.mrf.mxu0
      %v2541 = vpop.f32.mrf.mxu0
      %v2542 = vadd.f32 0.0, %v2541
      %v2543 = vpop.f32.mrf.mxu0
      %2544 = vmatprep.mubr.bf16.mxu0 %v1243
      %2545 = vmatmul.mubr.bf16.gmra.mxu0 %v1242
      %v2546 = vpop.f32.mrf.mxu0
      %v2547 = vadd.f32 0.0, %v2546
      %v2548 = vpop.f32.mrf.mxu0
      %v2549 = vpop.f32.mrf.mxu0
      %v2550 = vadd.f32 0.0, %v2549
      %v2551 = vpop.f32.mrf.mxu0
      %2552 = vmatprep.mubr.bf16.mxu0 %v1245
      %2553 = vmatmul.mubr.bf16.gmra.mxu0 %v1244
      %v2554 = vpop.f32.mrf.mxu0
      %v2555 = vadd.f32 0.0, %v2554
      %v2556 = vpop.f32.mrf.mxu0
      %v2557 = vpop.f32.mrf.mxu0
      %v2558 = vadd.f32 0.0, %v2557
      %v2559 = vpop.f32.mrf.mxu0
      %2560 = vmatprep.mubr.bf16.mxu0 %v1247
      %2561 = vmatmul.mubr.bf16.gmra.mxu0 %v1246
      %v2562 = vpop.f32.mrf.mxu0
      %v2563 = vadd.f32 0.0, %v2562
      %v2564 = vpop.f32.mrf.mxu0
      %v2565 = vpop.f32.mrf.mxu0
      %v2566 = vadd.f32 0.0, %v2565
      %v2567 = vpop.f32.mrf.mxu0
      %2568 = vmatprep.mubr.bf16.mxu0 %v1249
      %2569 = vmatmul.mubr.bf16.gmra.mxu0 %v1248
      %v2570 = vpop.f32.mrf.mxu0
      %v2571 = vadd.f32 0.0, %v2570
      %v2572 = vpop.f32.mrf.mxu0
      %v2573 = vpop.f32.mrf.mxu0
      %v2574 = vadd.f32 0.0, %v2573
      %v2575 = vpop.f32.mrf.mxu0
      %2576 = vmatprep.mubr.bf16.mxu0 %v1251
      %2577 = vmatmul.mubr.bf16.gmra.mxu0 %v1250
      %v2578 = vpop.f32.mrf.mxu0
      %v2579 = vadd.f32 0.0, %v2578
      %v2580 = vpop.f32.mrf.mxu0
      %v2581 = vpop.f32.mrf.mxu0
      %v2582 = vadd.f32 0.0, %v2581
      %v2583 = vpop.f32.mrf.mxu0
      %2584 = vmatprep.mubr.bf16.mxu0 %v1253
      %2585 = vmatmul.mubr.bf16.gmra.mxu0 %v1252
      %v2586 = vpop.f32.mrf.mxu0
      %v2587 = vadd.f32 0.0, %v2586
      %v2588 = vpop.f32.mrf.mxu0
      %v2589 = vpop.f32.mrf.mxu0
      %v2590 = vadd.f32 0.0, %v2589
      %v2591 = vpop.f32.mrf.mxu0
      %2592 = vmatprep.mubr.bf16.mxu0 %v1255
      %2593 = vmatmul.mubr.bf16.gmra.mxu0 %v1254
      %v2594 = vpop.f32.mrf.mxu0
      %v2595 = vadd.f32 0.0, %v2594
      %v2596 = vpop.f32.mrf.mxu0
      %v2597 = vpop.f32.mrf.mxu0
      %v2598 = vadd.f32 0.0, %v2597
      %v2599 = vpop.f32.mrf.mxu0
      %2600 = vmatprep.mubr.bf16.mxu0 %v1257
      %2601 = vmatmul.mubr.bf16.gmra.mxu0 %v1256
      %v2602 = vpop.f32.mrf.mxu0
      %v2603 = vadd.f32 0.0, %v2602
      %v2604 = vpop.f32.mrf.mxu0
      %v2605 = vpop.f32.mrf.mxu0
      %v2606 = vadd.f32 0.0, %v2605
      %v2607 = vpop.f32.mrf.mxu0
      %2608 = vdwg.mxu0
      %v2609 = vrot.slane %v2355, 1
      %v2610 = vrot.slane %v2358, 1
      %v2611 = vrot.slane %v2363, 1
      %v2612 = vrot.slane %v2366, 1
      %v2613 = vrot.slane %v2371, 1
      %v2614 = vrot.slane %v2374, 1
      %v2615 = vrot.slane %v2379, 1
      %v2616 = vrot.slane %v2382, 1
      %v2617 = vrot.slane %v2387, 1
      %v2618 = vrot.slane %v2390, 1
      %v2619 = vrot.slane %v2395, 1
      %v2620 = vrot.slane %v2398, 1
      %v2621 = vrot.slane %v2403, 1
      %v2622 = vrot.slane %v2406, 1
      %v2623 = vrot.slane %v2411, 1
      %v2624 = vrot.slane %v2414, 1
      %v2625 = vrot.slane %v2419, 1
      %v2626 = vrot.slane %v2422, 1
      %v2627 = vrot.slane %v2427, 1
      %v2628 = vrot.slane %v2430, 1
      %v2629 = vrot.slane %v2435, 1
      %v2630 = vrot.slane %v2438, 1
      %v2631 = vrot.slane %v2443, 1
      %v2632 = vrot.slane %v2446, 1
      %v2633 = vrot.slane %v2451, 1
      %v2634 = vrot.slane %v2454, 1
      %v2635 = vrot.slane %v2459, 1
      %v2636 = vrot.slane %v2462, 1
      %v2637 = vrot.slane %v2467, 1
      %v2638 = vrot.slane %v2470, 1
      %v2639 = vrot.slane %v2475, 1
      %v2640 = vrot.slane %v2478, 1
      %v2641 = vrot.slane %v2483, 1
      %v2642 = vrot.slane %v2486, 1
      %v2643 = vrot.slane %v2491, 1
      %v2644 = vrot.slane %v2494, 1
      %v2645 = vrot.slane %v2499, 1
      %v2646 = vrot.slane %v2502, 1
      %v2647 = vrot.slane %v2507, 1
      %v2648 = vrot.slane %v2510, 1
      %v2649 = vrot.slane %v2515, 1
      %v2650 = vrot.slane %v2518, 1
      %v2651 = vrot.slane %v2523, 1
      %v2652 = vrot.slane %v2526, 1
      %v2653 = vrot.slane %v2531, 1
      %v2654 = vrot.slane %v2534, 1
      %v2655 = vrot.slane %v2539, 1
      %v2656 = vrot.slane %v2542, 1
      %v2657 = vrot.slane %v2547, 1
      %v2658 = vrot.slane %v2550, 1
      %v2659 = vrot.slane %v2555, 1
      %v2660 = vrot.slane %v2558, 1
      %v2661 = vrot.slane %v2563, 1
      %v2662 = vrot.slane %v2566, 1
      %v2663 = vrot.slane %v2571, 1
      %v2664 = vrot.slane %v2574, 1
      %v2665 = vrot.slane %v2579, 1
      %v2666 = vrot.slane %v2582, 1
      %v2667 = vrot.slane %v2587, 1
      %v2668 = vrot.slane %v2590, 1
      %v2669 = vrot.slane %v2595, 1
      %v2670 = vrot.slane %v2598, 1
      %v2671 = vrot.slane %v2603, 1
      %v2672 = vrot.slane %v2606, 1
      %v2673 = vsel %vm1685, %v2671, %v2672
      %v2674 = vsel %vm1685, %v2670, %v2671
      %v2675 = vsel %vm1685, %v2669, %v2670
      %v2676 = vsel %vm1685, %v2668, %v2669
      %v2677 = vsel %vm1685, %v2667, %v2668
      %v2678 = vsel %vm1685, %v2666, %v2667
      %v2679 = vsel %vm1685, %v2665, %v2666
      %v2680 = vsel %vm1685, %v2664, %v2665
      %v2681 = vsel %vm1685, %v2663, %v2664
      %v2682 = vsel %vm1685, %v2662, %v2663
      %v2683 = vsel %vm1685, %v2661, %v2662
      %v2684 = vsel %vm1685, %v2660, %v2661
      %v2685 = vsel %vm1685, %v2659, %v2660
      %v2686 = vsel %vm1685, %v2658, %v2659
      %v2687 = vsel %vm1685, %v2657, %v2658
      %v2688 = vsel %vm1685, %v2656, %v2657
      %v2689 = vsel %vm1685, %v2655, %v2656
      %v2690 = vsel %vm1685, %v2654, %v2655
      %v2691 = vsel %vm1685, %v2653, %v2654
      %v2692 = vsel %vm1685, %v2652, %v2653
      %v2693 = vsel %vm1685, %v2651, %v2652
      %v2694 = vsel %vm1685, %v2650, %v2651
      %v2695 = vsel %vm1685, %v2649, %v2650
      %v2696 = vsel %vm1685, %v2648, %v2649
      %v2697 = vsel %vm1685, %v2647, %v2648
      %v2698 = vsel %vm1685, %v2646, %v2647
      %v2699 = vsel %vm1685, %v2645, %v2646
      %v2700 = vsel %vm1685, %v2644, %v2645
      %v2701 = vsel %vm1685, %v2643, %v2644
      %v2702 = vsel %vm1685, %v2642, %v2643
      %v2703 = vsel %vm1685, %v2641, %v2642
      %v2704 = vsel %vm1685, %v2640, %v2641
      %v2705 = vsel %vm1685, %v2639, %v2640
      %v2706 = vsel %vm1685, %v2638, %v2639
      %v2707 = vsel %vm1685, %v2637, %v2638
      %v2708 = vsel %vm1685, %v2636, %v2637
      %v2709 = vsel %vm1685, %v2635, %v2636
      %v2710 = vsel %vm1685, %v2634, %v2635
      %v2711 = vsel %vm1685, %v2633, %v2634
      %v2712 = vsel %vm1685, %v2632, %v2633
      %v2713 = vsel %vm1685, %v2631, %v2632
      %v2714 = vsel %vm1685, %v2630, %v2631
      %v2715 = vsel %vm1685, %v2629, %v2630
      %v2716 = vsel %vm1685, %v2628, %v2629
      %v2717 = vsel %vm1685, %v2627, %v2628
      %v2718 = vsel %vm1685, %v2626, %v2627
      %v2719 = vsel %vm1685, %v2625, %v2626
      %v2720 = vsel %vm1685, %v2624, %v2625
      %v2721 = vsel %vm1685, %v2623, %v2624
      %v2722 = vsel %vm1685, %v2622, %v2623
      %v2723 = vsel %vm1685, %v2621, %v2622
      %v2724 = vsel %vm1685, %v2620, %v2621
      %v2725 = vsel %vm1685, %v2619, %v2620
      %v2726 = vsel %vm1685, %v2618, %v2619
      %v2727 = vsel %vm1685, %v2617, %v2618
      %v2728 = vsel %vm1685, %v2616, %v2617
      %v2729 = vsel %vm1685, %v2615, %v2616
      %v2730 = vsel %vm1685, %v2614, %v2615
      %v2731 = vsel %vm1685, %v2613, %v2614
      %v2732 = vsel %vm1685, %v2612, %v2613
      %v2733 = vsel %vm1685, %v2611, %v2612
      %v2734 = vsel %vm1685, %v2610, %v2611
      %v2735 = vsel %vm1685, %v2609, %v2610
      %v2736 = vsel %vm1685, %v2672, %v2609
      %v2769 = vunpack.c.l.b16 %v2160
      %v2770 = vunpack.c.l.b16 %v2161
      %v2771 = vunpack.c.l.b16 %v2162
      %v2772 = vunpack.c.l.b16 %v2163
      %v2773 = vunpack.c.l.b16 %v2164
      %v2774 = vunpack.c.l.b16 %v2165
      %v2775 = vunpack.c.l.b16 %v2166
      %v2776 = vunpack.c.l.b16 %v2167
      %v2777 = vunpack.c.l.b16 %v2168
      %v2778 = vunpack.c.l.b16 %v2169
      %v2779 = vunpack.c.l.b16 %v2170
      %v2780 = vunpack.c.l.b16 %v2171
      %v2781 = vunpack.c.l.b16 %v2172
      %v2782 = vunpack.c.l.b16 %v2173
      %v2783 = vunpack.c.l.b16 %v2174
      %v2784 = vunpack.c.l.b16 %v2175
      %v2785 = vunpack.c.l.b16 %v2176
      %v2786 = vunpack.c.l.b16 %v2177
      %v2787 = vunpack.c.l.b16 %v2178
      %v2788 = vunpack.c.l.b16 %v2179
      %v2789 = vunpack.c.l.b16 %v2180
      %v2790 = vunpack.c.l.b16 %v2181
      %v2791 = vunpack.c.l.b16 %v2182
      %v2792 = vunpack.c.l.b16 %v2183
      %v2793 = vunpack.c.l.b16 %v2184
      %v2794 = vunpack.c.l.b16 %v2185
      %v2795 = vunpack.c.l.b16 %v2186
      %v2796 = vunpack.c.l.b16 %v2187
      %v2797 = vunpack.c.l.b16 %v2188
      %v2798 = vunpack.c.l.b16 %v2189
      %v2799 = vunpack.c.l.b16 %v2190
      %v2800 = vunpack.c.l.b16 %v2191
      %v2801 = vpack.c.b16 %v2770, %v2769
      %v2802 = vpack.c.b16 %v2772, %v2771
      %v2803 = vpack.c.b16 %v2774, %v2773
      %v2804 = vpack.c.b16 %v2776, %v2775
      %v2805 = vpack.c.b16 %v2778, %v2777
      %v2806 = vpack.c.b16 %v2780, %v2779
      %v2807 = vpack.c.b16 %v2782, %v2781
      %v2808 = vpack.c.b16 %v2784, %v2783
      %v2809 = vpack.c.b16 %v2786, %v2785
      %v2810 = vpack.c.b16 %v2788, %v2787
      %v2811 = vpack.c.b16 %v2790, %v2789
      %v2812 = vpack.c.b16 %v2792, %v2791
      %v2813 = vpack.c.b16 %v2794, %v2793
      %v2814 = vpack.c.b16 %v2796, %v2795
      %v2815 = vpack.c.b16 %v2798, %v2797
      %v2816 = vpack.c.b16 %v2800, %v2799
      %2833 = vmatprep.subr.bf16.mxu0 0
      %2834 = vmatpush1.bf16.msra.mxu0 %v2808
      %2835 = vmatprep.subr.bf16.mxu0 0
      %2836 = vmatpush1.bf16.msra.mxu0 %v2807
      %2837 = vmatprep.subr.bf16.mxu0 0
      %2838 = vmatpush1.bf16.msra.mxu0 %v2806
      %2839 = vmatprep.subr.bf16.mxu0 0
      %2840 = vmatpush1.bf16.msra.mxu0 %v2805
      %2841 = vmatprep.subr.bf16.mxu0 0
      %2842 = vmatpush1.bf16.msra.mxu0 %v2804
      %2843 = vmatprep.subr.bf16.mxu0 0
      %2844 = vmatpush1.bf16.msra.mxu0 %v2803
      %2845 = vmatprep.subr.bf16.mxu0 0
      %2846 = vmatpush1.bf16.msra.mxu0 %v2802
      %2847 = vmatprep.subr.bf16.mxu0 0
      %2848 = vmatpush1.bf16.msra.mxu0 %v2801
      %2849 = vmatprep.subr.bf16.mxu0 0
      %2850 = vmatpush2.bf16.msra.mxu0 %v2816
      %2851 = vmatprep.subr.bf16.mxu0 0
      %2852 = vmatpush2.bf16.msra.mxu0 %v2815
      %2853 = vmatprep.subr.bf16.mxu0 0
      %2854 = vmatpush2.bf16.msra.mxu0 %v2814
      %2855 = vmatprep.subr.bf16.mxu0 0
      %2856 = vmatpush2.bf16.msra.mxu0 %v2813
      %2857 = vmatprep.subr.bf16.mxu0 0
      %2858 = vmatpush2.bf16.msra.mxu0 %v2812
      %2859 = vmatprep.subr.bf16.mxu0 0
      %2860 = vmatpush2.bf16.msra.mxu0 %v2811
      %2861 = vmatprep.subr.bf16.mxu0 0
      %2862 = vmatpush2.bf16.msra.mxu0 %v2810
      %2863 = vmatprep.subr.bf16.mxu0 0
      %2864 = vmatpush2.bf16.msra.mxu0 %v2809
      %2865 = vmatprep.mubr.bf16.mxu0 %v1195
      %2866 = vmatmul.mubr.bf16.gmra.mxu0 %v1194
      %v2867 = vpop.f32.mrf.mxu0
      %v2868 = vadd.f32 %v2735, %v2867
      %v2869 = vpop.f32.mrf.mxu0
      %v2870 = vpop.f32.mrf.mxu0
      %v2871 = vadd.f32 %v2734, %v2870
      %v2872 = vpop.f32.mrf.mxu0
      %2873 = vmatprep.mubr.bf16.mxu0 %v1197
      %2874 = vmatmul.mubr.bf16.gmra.mxu0 %v1196
      %v2875 = vpop.f32.mrf.mxu0
      %v2876 = vadd.f32 %v2733, %v2875
      %v2877 = vpop.f32.mrf.mxu0
      %v2878 = vpop.f32.mrf.mxu0
      %v2879 = vadd.f32 %v2732, %v2878
      %v2880 = vpop.f32.mrf.mxu0
      %2881 = vmatprep.mubr.bf16.mxu0 %v1199
      %2882 = vmatmul.mubr.bf16.gmra.mxu0 %v1198
      %v2883 = vpop.f32.mrf.mxu0
      %v2884 = vadd.f32 %v2731, %v2883
      %v2885 = vpop.f32.mrf.mxu0
      %v2886 = vpop.f32.mrf.mxu0
      %v2887 = vadd.f32 %v2730, %v2886
      %v2888 = vpop.f32.mrf.mxu0
      %2889 = vmatprep.mubr.bf16.mxu0 %v1201
      %2890 = vmatmul.mubr.bf16.gmra.mxu0 %v1200
      %v2891 = vpop.f32.mrf.mxu0
      %v2892 = vadd.f32 %v2729, %v2891
      %v2893 = vpop.f32.mrf.mxu0
      %v2894 = vpop.f32.mrf.mxu0
      %v2895 = vadd.f32 %v2728, %v2894
      %v2896 = vpop.f32.mrf.mxu0
      %2897 = vmatprep.mubr.bf16.mxu0 %v1203
      %2898 = vmatmul.mubr.bf16.gmra.mxu0 %v1202
      %v2899 = vpop.f32.mrf.mxu0
      %v2900 = vadd.f32 %v2727, %v2899
      %v2901 = vpop.f32.mrf.mxu0
      %v2902 = vpop.f32.mrf.mxu0
      %v2903 = vadd.f32 %v2726, %v2902
      %v2904 = vpop.f32.mrf.mxu0
      %2905 = vmatprep.mubr.bf16.mxu0 %v1205
      %2906 = vmatmul.mubr.bf16.gmra.mxu0 %v1204
      %v2907 = vpop.f32.mrf.mxu0
      %v2908 = vadd.f32 %v2725, %v2907
      %v2909 = vpop.f32.mrf.mxu0
      %v2910 = vpop.f32.mrf.mxu0
      %v2911 = vadd.f32 %v2724, %v2910
      %v2912 = vpop.f32.mrf.mxu0
      %2913 = vmatprep.mubr.bf16.mxu0 %v1207
      %2914 = vmatmul.mubr.bf16.gmra.mxu0 %v1206
      %v2915 = vpop.f32.mrf.mxu0
      %v2916 = vadd.f32 %v2723, %v2915
      %v2917 = vpop.f32.mrf.mxu0
      %v2918 = vpop.f32.mrf.mxu0
      %v2919 = vadd.f32 %v2722, %v2918
      %v2920 = vpop.f32.mrf.mxu0
      %2921 = vmatprep.mubr.bf16.mxu0 %v1209
      %2922 = vmatmul.mubr.bf16.gmra.mxu0 %v1208
      %v2923 = vpop.f32.mrf.mxu0
      %v2924 = vadd.f32 %v2721, %v2923
      %v2925 = vpop.f32.mrf.mxu0
      %v2926 = vpop.f32.mrf.mxu0
      %v2927 = vadd.f32 %v2720, %v2926
      %v2928 = vpop.f32.mrf.mxu0
      %2929 = vmatprep.mubr.bf16.mxu0 %v1211
      %2930 = vmatmul.mubr.bf16.gmra.mxu0 %v1210
      %v2931 = vpop.f32.mrf.mxu0
      %v2932 = vadd.f32 %v2719, %v2931
      %v2933 = vpop.f32.mrf.mxu0
      %v2934 = vpop.f32.mrf.mxu0
      %v2935 = vadd.f32 %v2718, %v2934
      %v2936 = vpop.f32.mrf.mxu0
      %2937 = vmatprep.mubr.bf16.mxu0 %v1213
      %2938 = vmatmul.mubr.bf16.gmra.mxu0 %v1212
      %v2939 = vpop.f32.mrf.mxu0
      %v2940 = vadd.f32 %v2717, %v2939
      %v2941 = vpop.f32.mrf.mxu0
      %v2942 = vpop.f32.mrf.mxu0
      %v2943 = vadd.f32 %v2716, %v2942
      %v2944 = vpop.f32.mrf.mxu0
      %2945 = vmatprep.mubr.bf16.mxu0 %v1215
      %2946 = vmatmul.mubr.bf16.gmra.mxu0 %v1214
      %v2947 = vpop.f32.mrf.mxu0
      %v2948 = vadd.f32 %v2715, %v2947
      %v2949 = vpop.f32.mrf.mxu0
      %v2950 = vpop.f32.mrf.mxu0
      %v2951 = vadd.f32 %v2714, %v2950
      %v2952 = vpop.f32.mrf.mxu0
      %2953 = vmatprep.mubr.bf16.mxu0 %v1217
      %2954 = vmatmul.mubr.bf16.gmra.mxu0 %v1216
      %v2955 = vpop.f32.mrf.mxu0
      %v2956 = vadd.f32 %v2713, %v2955
      %v2957 = vpop.f32.mrf.mxu0
      %v2958 = vpop.f32.mrf.mxu0
      %v2959 = vadd.f32 %v2712, %v2958
      %v2960 = vpop.f32.mrf.mxu0
      %2961 = vmatprep.mubr.bf16.mxu0 %v1219
      %2962 = vmatmul.mubr.bf16.gmra.mxu0 %v1218
      %v2963 = vpop.f32.mrf.mxu0
      %v2964 = vadd.f32 %v2711, %v2963
      %v2965 = vpop.f32.mrf.mxu0
      %v2966 = vpop.f32.mrf.mxu0
      %v2967 = vadd.f32 %v2710, %v2966
      %v2968 = vpop.f32.mrf.mxu0
      %2969 = vmatprep.mubr.bf16.mxu0 %v1221
      %2970 = vmatmul.mubr.bf16.gmra.mxu0 %v1220
      %v2971 = vpop.f32.mrf.mxu0
      %v2972 = vadd.f32 %v2709, %v2971
      %v2973 = vpop.f32.mrf.mxu0
      %v2974 = vpop.f32.mrf.mxu0
      %v2975 = vadd.f32 %v2708, %v2974
      %v2976 = vpop.f32.mrf.mxu0
      %2977 = vmatprep.mubr.bf16.mxu0 %v1223
      %2978 = vmatmul.mubr.bf16.gmra.mxu0 %v1222
      %v2979 = vpop.f32.mrf.mxu0
      %v2980 = vadd.f32 %v2707, %v2979
      %v2981 = vpop.f32.mrf.mxu0
      %v2982 = vpop.f32.mrf.mxu0
      %v2983 = vadd.f32 %v2706, %v2982
      %v2984 = vpop.f32.mrf.mxu0
      %2985 = vmatprep.mubr.bf16.mxu0 %v1225
      %2986 = vmatmul.mubr.bf16.gmra.mxu0 %v1224
      %v2987 = vpop.f32.mrf.mxu0
      %v2988 = vadd.f32 %v2705, %v2987
      %v2989 = vpop.f32.mrf.mxu0
      %v2990 = vpop.f32.mrf.mxu0
      %v2991 = vadd.f32 %v2704, %v2990
      %v2992 = vpop.f32.mrf.mxu0
      %2993 = vmatprep.mubr.bf16.mxu0 %v1227
      %2994 = vmatmul.mubr.bf16.gmra.mxu0 %v1226
      %v2995 = vpop.f32.mrf.mxu0
      %v2996 = vadd.f32 %v2703, %v2995
      %v2997 = vpop.f32.mrf.mxu0
      %v2998 = vpop.f32.mrf.mxu0
      %v2999 = vadd.f32 %v2702, %v2998
      %v3000 = vpop.f32.mrf.mxu0
      %3001 = vmatprep.mubr.bf16.mxu0 %v1229
      %3002 = vmatmul.mubr.bf16.gmra.mxu0 %v1228
      %v3003 = vpop.f32.mrf.mxu0
      %v3004 = vadd.f32 %v2701, %v3003
      %v3005 = vpop.f32.mrf.mxu0
      %v3006 = vpop.f32.mrf.mxu0
      %v3007 = vadd.f32 %v2700, %v3006
      %v3008 = vpop.f32.mrf.mxu0
      %3009 = vmatprep.mubr.bf16.mxu0 %v1231
      %3010 = vmatmul.mubr.bf16.gmra.mxu0 %v1230
      %v3011 = vpop.f32.mrf.mxu0
      %v3012 = vadd.f32 %v2699, %v3011
      %v3013 = vpop.f32.mrf.mxu0
      %v3014 = vpop.f32.mrf.mxu0
      %v3015 = vadd.f32 %v2698, %v3014
      %v3016 = vpop.f32.mrf.mxu0
      %3017 = vmatprep.mubr.bf16.mxu0 %v1233
      %3018 = vmatmul.mubr.bf16.gmra.mxu0 %v1232
      %v3019 = vpop.f32.mrf.mxu0
      %v3020 = vadd.f32 %v2697, %v3019
      %v3021 = vpop.f32.mrf.mxu0
      %v3022 = vpop.f32.mrf.mxu0
      %v3023 = vadd.f32 %v2696, %v3022
      %v3024 = vpop.f32.mrf.mxu0
      %3025 = vmatprep.mubr.bf16.mxu0 %v1235
      %3026 = vmatmul.mubr.bf16.gmra.mxu0 %v1234
      %v3027 = vpop.f32.mrf.mxu0
      %v3028 = vadd.f32 %v2695, %v3027
      %v3029 = vpop.f32.mrf.mxu0
      %v3030 = vpop.f32.mrf.mxu0
      %v3031 = vadd.f32 %v2694, %v3030
      %v3032 = vpop.f32.mrf.mxu0
      %3033 = vmatprep.mubr.bf16.mxu0 %v1237
      %3034 = vmatmul.mubr.bf16.gmra.mxu0 %v1236
      %v3035 = vpop.f32.mrf.mxu0
      %v3036 = vadd.f32 %v2693, %v3035
      %v3037 = vpop.f32.mrf.mxu0
      %v3038 = vpop.f32.mrf.mxu0
      %v3039 = vadd.f32 %v2692, %v3038
      %v3040 = vpop.f32.mrf.mxu0
      %3041 = vmatprep.mubr.bf16.mxu0 %v1239
      %3042 = vmatmul.mubr.bf16.gmra.mxu0 %v1238
      %v3043 = vpop.f32.mrf.mxu0
      %v3044 = vadd.f32 %v2691, %v3043
      %v3045 = vpop.f32.mrf.mxu0
      %v3046 = vpop.f32.mrf.mxu0
      %v3047 = vadd.f32 %v2690, %v3046
      %v3048 = vpop.f32.mrf.mxu0
      %3049 = vmatprep.mubr.bf16.mxu0 %v1241
      %3050 = vmatmul.mubr.bf16.gmra.mxu0 %v1240
      %v3051 = vpop.f32.mrf.mxu0
      %v3052 = vadd.f32 %v2689, %v3051
      %v3053 = vpop.f32.mrf.mxu0
      %v3054 = vpop.f32.mrf.mxu0
      %v3055 = vadd.f32 %v2688, %v3054
      %v3056 = vpop.f32.mrf.mxu0
      %3057 = vmatprep.mubr.bf16.mxu0 %v1243
      %3058 = vmatmul.mubr.bf16.gmra.mxu0 %v1242
      %v3059 = vpop.f32.mrf.mxu0
      %v3060 = vadd.f32 %v2687, %v3059
      %v3061 = vpop.f32.mrf.mxu0
      %v3062 = vpop.f32.mrf.mxu0
      %v3063 = vadd.f32 %v2686, %v3062
      %v3064 = vpop.f32.mrf.mxu0
      %3065 = vmatprep.mubr.bf16.mxu0 %v1245
      %3066 = vmatmul.mubr.bf16.gmra.mxu0 %v1244
      %v3067 = vpop.f32.mrf.mxu0
      %v3068 = vadd.f32 %v2685, %v3067
      %v3069 = vpop.f32.mrf.mxu0
      %v3070 = vpop.f32.mrf.mxu0
      %v3071 = vadd.f32 %v2684, %v3070
      %v3072 = vpop.f32.mrf.mxu0
      %3073 = vmatprep.mubr.bf16.mxu0 %v1247
      %3074 = vmatmul.mubr.bf16.gmra.mxu0 %v1246
      %v3075 = vpop.f32.mrf.mxu0
      %v3076 = vadd.f32 %v2683, %v3075
      %v3077 = vpop.f32.mrf.mxu0
      %v3078 = vpop.f32.mrf.mxu0
      %v3079 = vadd.f32 %v2682, %v3078
      %v3080 = vpop.f32.mrf.mxu0
      %3081 = vmatprep.mubr.bf16.mxu0 %v1249
      %3082 = vmatmul.mubr.bf16.gmra.mxu0 %v1248
      %v3083 = vpop.f32.mrf.mxu0
      %v3084 = vadd.f32 %v2681, %v3083
      %v3085 = vpop.f32.mrf.mxu0
      %v3086 = vpop.f32.mrf.mxu0
      %v3087 = vadd.f32 %v2680, %v3086
      %v3088 = vpop.f32.mrf.mxu0
      %3089 = vmatprep.mubr.bf16.mxu0 %v1251
      %3090 = vmatmul.mubr.bf16.gmra.mxu0 %v1250
      %v3091 = vpop.f32.mrf.mxu0
      %v3092 = vadd.f32 %v2679, %v3091
      %v3093 = vpop.f32.mrf.mxu0
      %v3094 = vpop.f32.mrf.mxu0
      %v3095 = vadd.f32 %v2678, %v3094
      %v3096 = vpop.f32.mrf.mxu0
      %3097 = vmatprep.mubr.bf16.mxu0 %v1253
      %3098 = vmatmul.mubr.bf16.gmra.mxu0 %v1252
      %v3099 = vpop.f32.mrf.mxu0
      %v3100 = vadd.f32 %v2677, %v3099
      %v3101 = vpop.f32.mrf.mxu0
      %v3102 = vpop.f32.mrf.mxu0
      %v3103 = vadd.f32 %v2676, %v3102
      %v3104 = vpop.f32.mrf.mxu0
      %3105 = vmatprep.mubr.bf16.mxu0 %v1255
      %3106 = vmatmul.mubr.bf16.gmra.mxu0 %v1254
      %v3107 = vpop.f32.mrf.mxu0
      %v3108 = vadd.f32 %v2675, %v3107
      %v3109 = vpop.f32.mrf.mxu0
      %v3110 = vpop.f32.mrf.mxu0
      %v3111 = vadd.f32 %v2674, %v3110
      %v3112 = vpop.f32.mrf.mxu0
      %3113 = vmatprep.mubr.bf16.mxu0 %v1257
      %3114 = vmatmul.mubr.bf16.gmra.mxu0 %v1256
      %v3115 = vpop.f32.mrf.mxu0
      %v3116 = vadd.f32 %v2673, %v3115
      %v3117 = vpop.f32.mrf.mxu0
      %v3118 = vpop.f32.mrf.mxu0
      %v3119 = vadd.f32 %v2736, %v3118
      %v3120 = vpop.f32.mrf.mxu0
      %3121 = vdwg.mxu0
      %v3122 = vadd.f32 %v1906, %v2871
      %v3123 = vadd.f32 %v1909, %v2876
      %v3124 = vadd.f32 %v1914, %v2879
      %v3125 = vadd.f32 %v1917, %v2884
      %v3126 = vadd.f32 %v1922, %v2887
      %v3127 = vadd.f32 %v1925, %v2892
      %v3128 = vadd.f32 %v1930, %v2895
      %v3129 = vadd.f32 %v1933, %v2900
      %v3130 = vadd.f32 %v1938, %v2903
      %v3131 = vadd.f32 %v1941, %v2908
      %v3132 = vadd.f32 %v1946, %v2911
      %v3133 = vadd.f32 %v1949, %v2916
      %v3134 = vadd.f32 %v1954, %v2919
      %v3135 = vadd.f32 %v1957, %v2924
      %v3136 = vadd.f32 %v1962, %v2927
      %v3137 = vadd.f32 %v1965, %v2932
      %v3138 = vadd.f32 %v1970, %v2935
      %v3139 = vadd.f32 %v1973, %v2940
      %v3140 = vadd.f32 %v1978, %v2943
      %v3141 = vadd.f32 %v1981, %v2948
      %v3142 = vadd.f32 %v1986, %v2951
      %v3143 = vadd.f32 %v1989, %v2956
      %v3144 = vadd.f32 %v1994, %v2959
      %v3145 = vadd.f32 %v1997, %v2964
      %v3146 = vadd.f32 %v2002, %v2967
      %v3147 = vadd.f32 %v2005, %v2972
      %v3148 = vadd.f32 %v2010, %v2975
      %v3149 = vadd.f32 %v2013, %v2980
      %v3150 = vadd.f32 %v2018, %v2983
      %v3151 = vadd.f32 %v2021, %v2988
      %v3152 = vadd.f32 %v2026, %v2991
      %v3153 = vadd.f32 %v2029, %v2996
      %v3154 = vadd.f32 %v2034, %v2999
      %v3155 = vadd.f32 %v2037, %v3004
      %v3156 = vadd.f32 %v2042, %v3007
      %v3157 = vadd.f32 %v2045, %v3012
      %v3158 = vadd.f32 %v2050, %v3015
      %v3159 = vadd.f32 %v2053, %v3020
      %v3160 = vadd.f32 %v2058, %v3023
      %v3161 = vadd.f32 %v2061, %v3028
      %v3162 = vadd.f32 %v2066, %v3031
      %v3163 = vadd.f32 %v2069, %v3036
      %v3164 = vadd.f32 %v2074, %v3039
      %v3165 = vadd.f32 %v2077, %v3044
      %v3166 = vadd.f32 %v2082, %v3047
      %v3167 = vadd.f32 %v2085, %v3052
      %v3168 = vadd.f32 %v2090, %v3055
      %v3169 = vadd.f32 %v2093, %v3060
      %v3170 = vadd.f32 %v2098, %v3063
      %v3171 = vadd.f32 %v2101, %v3068
      %v3172 = vadd.f32 %v2106, %v3071
      %v3173 = vadd.f32 %v2109, %v3076
      %v3174 = vadd.f32 %v2114, %v3079
      %v3175 = vadd.f32 %v2117, %v3084
      %v3176 = vadd.f32 %v2122, %v3087
      %v3177 = vadd.f32 %v2125, %v3092
      %v3178 = vadd.f32 %v2130, %v3095
      %v3179 = vadd.f32 %v2133, %v3100
      %v3180 = vadd.f32 %v2138, %v3103
      %v3181 = vadd.f32 %v2141, %v3108
      %v3182 = vadd.f32 %v2146, %v3111
      %v3183 = vadd.f32 %v2149, %v3116
      %v3184 = vadd.f32 %v2154, %v3119
      %v3185 = vadd.f32 %v2157, %v2868
      %v3186 = vmul.f32 %v3122, 0.2
      %v3187 = vmul.f32 %v3123, 0.2
      %v3188 = vmul.f32 %v3124, 0.2
      %v3189 = vmul.f32 %v3125, 0.2
      %v3190 = vmul.f32 %v3126, 0.2
      %v3191 = vmul.f32 %v3127, 0.2
      %v3192 = vmul.f32 %v3128, 0.2
      %v3193 = vmul.f32 %v3129, 0.2
      %v3194 = vmul.f32 %v3130, 0.2
      %v3195 = vmul.f32 %v3131, 0.2
      %v3196 = vmul.f32 %v3132, 0.2
      %v3197 = vmul.f32 %v3133, 0.2
      %v3198 = vmul.f32 %v3134, 0.2
      %v3199 = vmul.f32 %v3135, 0.2
      %v3200 = vmul.f32 %v3136, 0.2
      %v3201 = vmul.f32 %v3137, 0.2
      %v3202 = vmul.f32 %v3138, 0.2
      %v3203 = vmul.f32 %v3139, 0.2
      %v3204 = vmul.f32 %v3140, 0.2
      %v3205 = vmul.f32 %v3141, 0.2
      %v3206 = vmul.f32 %v3142, 0.2
      %v3207 = vmul.f32 %v3143, 0.2
      %v3208 = vmul.f32 %v3144, 0.2
      %v3209 = vmul.f32 %v3145, 0.2
      %v3210 = vmul.f32 %v3146, 0.2
      %v3211 = vmul.f32 %v3147, 0.2
      %v3212 = vmul.f32 %v3148, 0.2
      %v3213 = vmul.f32 %v3149, 0.2
      %v3214 = vmul.f32 %v3150, 0.2
      %v3215 = vmul.f32 %v3151, 0.2
      %v3216 = vmul.f32 %v3152, 0.2
      %v3217 = vmul.f32 %v3153, 0.2
      %v3218 = vmul.f32 %v3154, 0.2
      %v3219 = vmul.f32 %v3155, 0.2
      %v3220 = vmul.f32 %v3156, 0.2
      %v3221 = vmul.f32 %v3157, 0.2
      %v3222 = vmul.f32 %v3158, 0.2
      %v3223 = vmul.f32 %v3159, 0.2
      %v3224 = vmul.f32 %v3160, 0.2
      %v3225 = vmul.f32 %v3161, 0.2
      %v3226 = vmul.f32 %v3162, 0.2
      %v3227 = vmul.f32 %v3163, 0.2
      %v3228 = vmul.f32 %v3164, 0.2
      %v3229 = vmul.f32 %v3165, 0.2
      %v3230 = vmul.f32 %v3166, 0.2
      %v3231 = vmul.f32 %v3167, 0.2
      %v3232 = vmul.f32 %v3168, 0.2
      %v3233 = vmul.f32 %v3169, 0.2
      %v3234 = vmul.f32 %v3170, 0.2
      %v3235 = vmul.f32 %v3171, 0.2
      %v3236 = vmul.f32 %v3172, 0.2
      %v3237 = vmul.f32 %v3173, 0.2
      %v3238 = vmul.f32 %v3174, 0.2
      %v3239 = vmul.f32 %v3175, 0.2
      %v3240 = vmul.f32 %v3176, 0.2
      %v3241 = vmul.f32 %v3177, 0.2
      %v3242 = vmul.f32 %v3178, 0.2
      %v3243 = vmul.f32 %v3179, 0.2
      %v3244 = vmul.f32 %v3180, 0.2
      %v3245 = vmul.f32 %v3181, 0.2
      %v3246 = vmul.f32 %v3182, 0.2
      %v3247 = vmul.f32 %v3183, 0.2
      %v3248 = vmul.f32 %v3184, 0.2
      %v3249 = vmul.f32 %v3185, 0.2
      %v3250 = vmax.f32 %v3122, %v3186
      %v3251 = vmax.f32 %v3123, %v3187
      %v3252 = vmax.f32 %v3124, %v3188
      %v3253 = vmax.f32 %v3125, %v3189
      %v3254 = vmax.f32 %v3126, %v3190
      %v3255 = vmax.f32 %v3127, %v3191
      %v3256 = vmax.f32 %v3128, %v3192
      %v3257 = vmax.f32 %v3129, %v3193
      %v3258 = vmax.f32 %v3130, %v3194
      %v3259 = vmax.f32 %v3131, %v3195
      %v3260 = vmax.f32 %v3132, %v3196
      %v3261 = vmax.f32 %v3133, %v3197
      %v3262 = vmax.f32 %v3134, %v3198
      %v3263 = vmax.f32 %v3135, %v3199
      %v3264 = vmax.f32 %v3136, %v3200
      %v3265 = vmax.f32 %v3137, %v3201
      %v3266 = vmax.f32 %v3138, %v3202
      %v3267 = vmax.f32 %v3139, %v3203
      %v3268 = vmax.f32 %v3140, %v3204
      %v3269 = vmax.f32 %v3141, %v3205
      %v3270 = vmax.f32 %v3142, %v3206
      %v3271 = vmax.f32 %v3143, %v3207
      %v3272 = vmax.f32 %v3144, %v3208
      %v3273 = vmax.f32 %v3145, %v3209
      %v3274 = vmax.f32 %v3146, %v3210
      %v3275 = vmax.f32 %v3147, %v3211
      %v3276 = vmax.f32 %v3148, %v3212
      %v3277 = vmax.f32 %v3149, %v3213
      %v3278 = vmax.f32 %v3150, %v3214
      %v3279 = vmax.f32 %v3151, %v3215
      %v3280 = vmax.f32 %v3152, %v3216
      %v3281 = vmax.f32 %v3153, %v3217
      %v3282 = vmax.f32 %v3154, %v3218
      %v3283 = vmax.f32 %v3155, %v3219
      %v3284 = vmax.f32 %v3156, %v3220
      %v3285 = vmax.f32 %v3157, %v3221
      %v3286 = vmax.f32 %v3158, %v3222
      %v3287 = vmax.f32 %v3159, %v3223
      %v3288 = vmax.f32 %v3160, %v3224
      %v3289 = vmax.f32 %v3161, %v3225
      %v3290 = vmax.f32 %v3162, %v3226
      %v3291 = vmax.f32 %v3163, %v3227
      %v3292 = vmax.f32 %v3164, %v3228
      %v3293 = vmax.f32 %v3165, %v3229
      %v3294 = vmax.f32 %v3166, %v3230
      %v3295 = vmax.f32 %v3167, %v3231
      %v3296 = vmax.f32 %v3168, %v3232
      %v3297 = vmax.f32 %v3169, %v3233
      %v3298 = vmax.f32 %v3170, %v3234
      %v3299 = vmax.f32 %v3171, %v3235
      %v3300 = vmax.f32 %v3172, %v3236
      %v3301 = vmax.f32 %v3173, %v3237
      %v3302 = vmax.f32 %v3174, %v3238
      %v3303 = vmax.f32 %v3175, %v3239
      %v3304 = vmax.f32 %v3176, %v3240
      %v3305 = vmax.f32 %v3177, %v3241
      %v3306 = vmax.f32 %v3178, %v3242
      %v3307 = vmax.f32 %v3179, %v3243
      %v3308 = vmax.f32 %v3180, %v3244
      %v3309 = vmax.f32 %v3181, %v3245
      %v3310 = vmax.f32 %v3182, %v3246
      %v3311 = vmax.f32 %v3183, %v3247
      %v3312 = vmax.f32 %v3184, %v3248
      %v3313 = vmax.f32 %v3185, %v3249
      %v3314 = vld [vmem:[%s3] sm:$0xff]
      %v3315 = vld [vmem:[%s3 + $0x8] sm:$0xff]
      %v3316 = vld [vmem:[%s3 + $0x10] sm:$0xff]
      %v3317 = vld [vmem:[%s3 + $0x18] sm:$0xff]
      %v3318 = vld [vmem:[%s3 + $0x20] sm:$0xff]
      %v3319 = vld [vmem:[%s3 + $0x28] sm:$0xff]
      %v3320 = vld [vmem:[%s3 + $0x30] sm:$0xff]
      %v3321 = vld [vmem:[%s3 + $0x38] sm:$0xff]
      %v3322 = vmul.f32 %v3250, %v3314
      %v3323 = vmul.f32 %v3251, %v3315
      %v3324 = vmul.f32 %v3252, %v3316
      %v3325 = vmul.f32 %v3253, %v3317
      %v3326 = vmul.f32 %v3254, %v3318
      %v3327 = vmul.f32 %v3255, %v3319
      %v3328 = vmul.f32 %v3256, %v3320
      %v3329 = vmul.f32 %v3257, %v3321
      %v3330 = vmul.f32 %v3258, %v3314
      %v3331 = vmul.f32 %v3259, %v3315
      %v3332 = vmul.f32 %v3260, %v3316
      %v3333 = vmul.f32 %v3261, %v3317
      %v3334 = vmul.f32 %v3262, %v3318
      %v3335 = vmul.f32 %v3263, %v3319
      %v3336 = vmul.f32 %v3264, %v3320
      %v3337 = vmul.f32 %v3265, %v3321
      %v3338 = vmul.f32 %v3266, %v3314
      %v3339 = vmul.f32 %v3267, %v3315
      %v3340 = vmul.f32 %v3268, %v3316
      %v3341 = vmul.f32 %v3269, %v3317
      %v3342 = vmul.f32 %v3270, %v3318
      %v3343 = vmul.f32 %v3271, %v3319
      %v3344 = vmul.f32 %v3272, %v3320
      %v3345 = vmul.f32 %v3273, %v3321
      %v3346 = vmul.f32 %v3274, %v3314
      %v3347 = vmul.f32 %v3275, %v3315
      %v3348 = vmul.f32 %v3276, %v3316
      %v3349 = vmul.f32 %v3277, %v3317
      %v3350 = vmul.f32 %v3278, %v3318
      %v3351 = vmul.f32 %v3279, %v3319
      %v3352 = vmul.f32 %v3280, %v3320
      %v3353 = vmul.f32 %v3281, %v3321
      %v3354 = vmul.f32 %v3282, %v3314
      %v3355 = vmul.f32 %v3283, %v3315
      %v3356 = vmul.f32 %v3284, %v3316
      %v3357 = vmul.f32 %v3285, %v3317
      %v3358 = vmul.f32 %v3286, %v3318
      %v3359 = vmul.f32 %v3287, %v3319
      %v3360 = vmul.f32 %v3288, %v3320
      %v3361 = vmul.f32 %v3289, %v3321
      %v3362 = vmul.f32 %v3290, %v3314
      %v3363 = vmul.f32 %v3291, %v3315
      %v3364 = vmul.f32 %v3292, %v3316
      %v3365 = vmul.f32 %v3293, %v3317
      %v3366 = vmul.f32 %v3294, %v3318
      %v3367 = vmul.f32 %v3295, %v3319
      %v3368 = vmul.f32 %v3296, %v3320
      %v3369 = vmul.f32 %v3297, %v3321
      %v3370 = vmul.f32 %v3298, %v3314
      %v3371 = vmul.f32 %v3299, %v3315
      %v3372 = vmul.f32 %v3300, %v3316
      %v3373 = vmul.f32 %v3301, %v3317
      %v3374 = vmul.f32 %v3302, %v3318
      %v3375 = vmul.f32 %v3303, %v3319
      %v3376 = vmul.f32 %v3304, %v3320
      %v3377 = vmul.f32 %v3305, %v3321
      %v3378 = vmul.f32 %v3306, %v3314
      %v3379 = vmul.f32 %v3307, %v3315
      %v3380 = vmul.f32 %v3308, %v3316
      %v3381 = vmul.f32 %v3309, %v3317
      %v3382 = vmul.f32 %v3310, %v3318
      %v3383 = vmul.f32 %v3311, %v3319
      %v3384 = vmul.f32 %v3312, %v3320
      %v3385 = vmul.f32 %v3313, %v3321
      %v3386 = vadd.f32 %v3322, %v3323
      %v3387 = vadd.f32 %v3386, %v3324
      %v3388 = vadd.f32 %v3387, %v3325
      %v3389 = vadd.f32 %v3388, %v3326
      %v3390 = vadd.f32 %v3389, %v3327
      %v3391 = vadd.f32 %v3390, %v3328
      %v3392 = vadd.f32 %v3391, %v3329
      %v3393 = vrot.slane %v3392, 4
      %v3394 = vadd.f32 %v3392, %v3393
      %v3395 = vrot.slane %v3394, 2
      %v3396 = vadd.f32 %v3394, %v3395
      %v3397 = vrot.slane %v3396, 1
      %v3398 = vadd.f32 %v3396, %v3397
      %v3399 = vadd.f32 %v3330, %v3331
      %v3400 = vadd.f32 %v3399, %v3332
      %v3401 = vadd.f32 %v3400, %v3333
      %v3402 = vadd.f32 %v3401, %v3334
      %v3403 = vadd.f32 %v3402, %v3335
      %v3404 = vadd.f32 %v3403, %v3336
      %v3405 = vadd.f32 %v3404, %v3337
      %v3406 = vrot.slane %v3405, 4
      %v3407 = vadd.f32 %v3405, %v3406
      %v3408 = vrot.slane %v3407, 2
      %v3409 = vadd.f32 %v3407, %v3408
      %v3410 = vrot.slane %v3409, 1
      %v3411 = vadd.f32 %v3409, %v3410
      %v3412 = vadd.f32 %v3338, %v3339
      %v3413 = vadd.f32 %v3412, %v3340
      %v3414 = vadd.f32 %v3413, %v3341
      %v3415 = vadd.f32 %v3414, %v3342
      %v3416 = vadd.f32 %v3415, %v3343
      %v3417 = vadd.f32 %v3416, %v3344
      %v3418 = vadd.f32 %v3417, %v3345
      %v3419 = vrot.slane %v3418, 4
      %v3420 = vadd.f32 %v3418, %v3419
      %v3421 = vrot.slane %v3420, 2
      %v3422 = vadd.f32 %v3420, %v3421
      %v3423 = vrot.slane %v3422, 1
      %v3424 = vadd.f32 %v3422, %v3423
      %v3425 = vadd.f32 %v3346, %v3347
      %v3426 = vadd.f32 %v3425, %v3348
      %v3427 = vadd.f32 %v3426, %v3349
      %v3428 = vadd.f32 %v3427, %v3350
      %v3429 = vadd.f32 %v3428, %v3351
      %v3430 = vadd.f32 %v3429, %v3352
      %v3431 = vadd.f32 %v3430, %v3353
      %v3432 = vrot.slane %v3431, 4
      %v3433 = vadd.f32 %v3431, %v3432
      %v3434 = vrot.slane %v3433, 2
      %v3435 = vadd.f32 %v3433, %v3434
      %v3436 = vrot.slane %v3435, 1
      %v3437 = vadd.f32 %v3435, %v3436
      %v3438 = vadd.f32 %v3354, %v3355
      %v3439 = vadd.f32 %v3438, %v3356
      %v3440 = vadd.f32 %v3439, %v3357
      %v3441 = vadd.f32 %v3440, %v3358
      %v3442 = vadd.f32 %v3441, %v3359
      %v3443 = vadd.f32 %v3442, %v3360
      %v3444 = vadd.f32 %v3443, %v3361
      %v3445 = vrot.slane %v3444, 4
      %v3446 = vadd.f32 %v3444, %v3445
      %v3447 = vrot.slane %v3446, 2
      %v3448 = vadd.f32 %v3446, %v3447
      %v3449 = vrot.slane %v3448, 1
      %v3450 = vadd.f32 %v3448, %v3449
      %v3451 = vadd.f32 %v3362, %v3363
      %v3452 = vadd.f32 %v3451, %v3364
      %v3453 = vadd.f32 %v3452, %v3365
      %v3454 = vadd.f32 %v3453, %v3366
      %v3455 = vadd.f32 %v3454, %v3367
      %v3456 = vadd.f32 %v3455, %v3368
      %v3457 = vadd.f32 %v3456, %v3369
      %v3458 = vrot.slane %v3457, 4
      %v3459 = vadd.f32 %v3457, %v3458
      %v3460 = vrot.slane %v3459, 2
      %v3461 = vadd.f32 %v3459, %v3460
      %v3462 = vrot.slane %v3461, 1
      %v3463 = vadd.f32 %v3461, %v3462
      %v3464 = vadd.f32 %v3370, %v3371
      %v3465 = vadd.f32 %v3464, %v3372
      %v3466 = vadd.f32 %v3465, %v3373
      %v3467 = vadd.f32 %v3466, %v3374
      %v3468 = vadd.f32 %v3467, %v3375
      %v3469 = vadd.f32 %v3468, %v3376
      %v3470 = vadd.f32 %v3469, %v3377
      %v3471 = vrot.slane %v3470, 4
      %v3472 = vadd.f32 %v3470, %v3471
      %v3473 = vrot.slane %v3472, 2
      %v3474 = vadd.f32 %v3472, %v3473
      %v3475 = vrot.slane %v3474, 1
      %v3476 = vadd.f32 %v3474, %v3475
      %v3477 = vadd.f32 %v3378, %v3379
      %v3478 = vadd.f32 %v3477, %v3380
      %v3479 = vadd.f32 %v3478, %v3381
      %v3480 = vadd.f32 %v3479, %v3382
      %v3481 = vadd.f32 %v3480, %v3383
      %v3482 = vadd.f32 %v3481, %v3384
      %v3483 = vadd.f32 %v3482, %v3385
      %v3484 = vrot.slane %v3483, 4
      %v3485 = vadd.f32 %v3483, %v3484
      %v3486 = vrot.slane %v3485, 2
      %v3487 = vadd.f32 %v3485, %v3486
      %v3488 = vrot.slane %v3487, 1
      %v3489 = vadd.f32 %v3487, %v3488
      %vm3498 = vcmask 1041409
      %v3499 = vsel %vm3498, %v3411, %v3398
      %vm3500 = vcmask 1042434
      %v3501 = vsel %vm3500, %v3424, %v3499
      %vm3502 = vcmask 1043459
      %v3503 = vsel %vm3502, %v3437, %v3501
      %vm3504 = vcmask 1044484
      %v3505 = vsel %vm3504, %v3450, %v3503
      %vm3506 = vcmask 1045509
      %v3507 = vsel %vm3506, %v3463, %v3505
      %vm3508 = vcmask 1046534
      %v3509 = vsel %vm3508, %v3476, %v3507
      %vm3510 = vcmask 1047559
      %v3511 = vsel %vm3510, %v3489, %v3509
      %3513 = vadd.xlane.f32.xlu0 %v3511
      %v3514 = vpop.xlane.xlu0 %3513
      %s3515 = sld [smem:[#allocation2]]
      %v3516 = vstv %s3515
      %v3517 = vadd.f32 %v3514, %v3516
      %v3518 = vsub.f32 0.0, %v3517
      %v3519 = vmul.f32 %v3518, 1.442695
      %v3520 = vpow.pop %v3519
      %v3521 = vadd.f32 %v3520, 1.0
      %v3522 = vrcp.pop %v3521
      %v3523 = vmul.f32 1.0, %v3522
      %3524 = vst [vmem:[%s225] sm:$0xff] %v3523
      %p3525 = scmp.lt.s32.totalorder %s17, 1
      %s3526 = scalar_select %p3525, %s17, 1
      %s3527 = smul.addr %s3526, 8
      %s3528 = scalar_lea.vmem %s5, %s3527
      // Predicated region
      $region41: #{discriminator_forward.1} parent=39 // pred_check
        %p3529 = pneg %p145
      $region42: #{discriminator_forward.1} parent=39 // pred_check_branch
        %3531 = sbr.rel (%p3529) target = $region44
      $region43: #{discriminator_forward.1} parent=39 // pred_region
        _
      $region44: #{discriminator_forward.1} parent=39 // pred_fallthru
        _
    $region40: #{discriminator_forward.1} parent=5 // pred_fallthru
      _
    %p3532 = scmp.le.s32.totalorder 2, %s12
    // Predicated region
    $region45: #{discriminator_forward.1} parent=5 // pred_check
      %p3533 = pneg %p3532
    $region46: #{discriminator_forward.1} parent=5 // pred_check_branch
      %3535 = sbr.rel (%p3533) target = $region48
    $region47: #{discriminator_forward.1} parent=5 // pred_region
      %s3536 = ssub.s32 %s12, 2
      // Predicated region
      $region49: #{discriminator_forward.1} parent=47 // pred_check
        %p3537 = pneg %p151
      $region50: #{discriminator_forward.1} parent=47 // pred_check_branch
        %3539 = sbr.rel (%p3537) target = $region52
      $region51: #{discriminator_forward.1} parent=47 // pred_region
        %p3540 = scmp.lt.s32.totalorder %s18, 1
        %s3541 = scalar_select %p3540, %s18, 1
        %s3542 = smul.addr %s3541, 8
        %s3543 = scalar_lea.vmem %s5, %s3542
      $region52: #{discriminator_forward.1} parent=47 // pred_fallthru
        _
    $region48: #{discriminator_forward.1} parent=5 // pred_fallthru
      _
  $region6: #{discriminator_forward.1} parent=0 // loop_footer
    %s16 = sadd.s32 1, %s12
  $region7: #{discriminator_forward.1} parent=0 // loop_footer_branch
    %11 = sbr.rel target = $region3
  $region8: #{discriminator_forward.1} parent=0 // loop_exit
    _

</llo_original>
